<compile_context>
chip_gen: v5e
topology: v5e:2x2
jax: 0.10.0
libtpu: 0.0.40
codegen_flags: <defaults>
</compile_context>

<pallas_src>
import math
import numpy as np
import jax
import jax.numpy as jnp
from jax.experimental import pallas as pl
from jax.experimental.pallas import tpu as pltpu

# ---- module-consistent sizes ----
D  = 32   # emb_dim
H  = 4    # num_heads
DH = 8    # head_dim (inner_dim = H*DH = 32 = D)
N  = 8    # max nodes per graph
E  = 16   # max edges per graph
G  = 8    # graphs packed per grid step


def gnn_attention_kernel(x_ref, ea_ref, ssrc_ref, sdst_ref, abias_ref,
                         wslab_ref, bslab_ref, out_ref):
    f32 = jnp.float32
    GN = x_ref.shape[1]       # packed nodes per step (G*N)
    GE = ea_ref.shape[1]      # packed edges per step (G*E)
    Dk = x_ref.shape[2]       # emb_dim

    x     = x_ref[0]                      # [GN, D]  f32
    ea    = ea_ref[0]                     # [GE, D]  f32
    # bf16 on the wire (exact 0/1 and -1e9 values), f32 in the math path.
    ssrc  = ssrc_ref[0].astype(f32)       # [GE, GN] block-diag one-hot(source) * edge_mask
    sdst  = sdst_ref[0].astype(f32)       # [GE, GN] block-diag one-hot(target) * edge_mask
    abias = abias_ref[0].astype(f32)      # [GN, GN] additive attention bias (0 / -1e9)

    # parameter slabs, sliced statically (H*DH == D)
    w_lin = wslab_ref[:, 0 * Dk:1 * Dk]
    wq    = wslab_ref[:, 1 * Dk:2 * Dk]
    wk    = wslab_ref[:, 2 * Dk:3 * Dk]
    wv    = wslab_ref[:, 3 * Dk:4 * Dk]
    wo    = wslab_ref[:, 4 * Dk:5 * Dk]
    b_lin = bslab_ref[:, 0 * Dk:1 * Dk]
    root  = bslab_ref[:, 1 * Dk:2 * Dk]
    bo    = bslab_ref[:, 2 * Dk:3 * Dk]

    # ---------------- GCNConv (G graphs at once, block-diagonal) ----------------
    h = jnp.dot(x, w_lin, preferred_element_type=f32) + b_lin                   # [GN, D]

    # source degree + 1 as a column vector; contraction over the edge axis rides the MXU.
    ones_e  = jnp.ones((GE, 1), f32)
    deg_col = jax.lax.dot_general(ssrc, ones_e, (((0,), (0,)), ((), ())),
                                  preferred_element_type=f32) + 1.0             # [GN, 1]
    dis_col = jax.lax.rsqrt(deg_col)                                            # deg^-1/2
    inv_deg = dis_col * dis_col                                                 # deg^-1

    # per-edge deg_inv_sqrt[src] / [dst] as MXU gathers of the column vector
    dis_src = jnp.dot(ssrc, dis_col, preferred_element_type=f32)                # [GE, 1]
    dis_dst = jnp.dot(sdst, dis_col, preferred_element_type=f32)                # [GE, 1]
    norm    = dis_src * dis_dst                                                 # [GE, 1]

    h_j  = jnp.dot(ssrc, h, preferred_element_type=f32)                         # [GE, D] gather x_j
    msg  = norm * jnp.maximum(h_j + ea, 0.0)                                    # [GE, D]
    aggr = jax.lax.dot_general(sdst, msg, (((0,), (0,)), ((), ())),
                               preferred_element_type=f32)                      # [GN, D] scatter-add
    g = aggr + jnp.maximum(h + root, 0.0) * inv_deg                             # [GN, D]

    # ------- multi-head self-attention, block-diagonal over the packed graphs -------
    q = jnp.dot(g, wq, preferred_element_type=f32)                              # [GN, H*DH]
    k = jnp.dot(g, wk, preferred_element_type=f32)
    v = jnp.dot(g, wv, preferred_element_type=f32)
    scale = 1.0 / math.sqrt(DH)

    o_acc = jnp.zeros((GN, Dk), f32)
    for hh in range(H):                                    # unrolled, H == 4 tiny heads
        sl = slice(hh * DH, (hh + 1) * DH)
        sim = jax.lax.dot_general(q[:, sl], k[:, sl], (((1,), (1,)), ((), ())),
                                  preferred_element_type=f32) * scale + abias   # [GN, GN]
        sim = sim - jnp.max(sim, axis=-1, keepdims=True)
        p = jnp.exp(sim)
        p = p * pl.reciprocal(jnp.sum(p, axis=-1, keepdims=True), approx=True)
        pv = jnp.dot(p, v[:, sl], preferred_element_type=f32)                   # [GN, DH]
        # fold output projection per head: o @ Wo == sum_h o_h @ Wo[h*DH:(h+1)*DH]
        o_acc = o_acc + jnp.dot(pv, wo[sl, :], preferred_element_type=f32)      # [GN, D]
    out = o_acc + bo                                                            # [GN, D]

    # ---- lane-dense store: row-major pack [GN, D] -> [GN*D/128, 128] so the output
    # ---- write is an unmasked full-lane store (one-hot row-select matmuls + lane concat).
    pack = 128 // Dk
    rp   = (GN * Dk) // 128
    r_base = jax.lax.broadcasted_iota(jnp.int32, (rp, GN), 0) * pack
    n_idx  = jax.lax.broadcasted_iota(jnp.int32, (rp, GN), 1)
    cols = []
    for j in range(pack):
        sel = (n_idx == r_base + j).astype(f32)                                 # [rp, GN]
        cols.append(jnp.dot(sel, out, preferred_element_type=f32))              # [rp, D]
    out_ref[0] = jnp.concatenate(cols, axis=-1).astype(out_ref.dtype)           # [rp, 128]


def gnn_attention_block(node_feat, edge_index, edge_attr, node_mask, edge_mask,
                        params, group=G):
    """Dense-batched forward. Returns [B, N, D]; only rows where node_mask is True are valid
    (masked rows are garbage and must be dropped by the dense_to_sparse glue)."""
    f32, bf16 = jnp.float32, jnp.bfloat16
    assert D == H * DH and 128 % D == 0
    Bb = node_feat.shape[0]

    # pad the batch with empty graphs to a multiple of `group`
    n_grp = -(-Bb // group)
    Bp = n_grp * group
    pad = Bp - Bb
    if pad:
        node_feat  = jnp.pad(node_feat,  ((0, pad), (0, 0), (0, 0)))
        edge_attr  = jnp.pad(edge_attr,  ((0, pad), (0, 0), (0, 0)))
        edge_index = jnp.pad(edge_index, ((0, pad), (0, 0), (0, 0)))
        node_mask  = jnp.pad(node_mask,  ((0, pad), (0, 0)))
        edge_mask  = jnp.pad(edge_mask,  ((0, pad), (0, 0)))
    GN, GE = group * N, group * E
    assert (GN * D) % 128 == 0

    nm = node_mask.astype(f32).reshape(n_grp, GN)
    em = edge_mask.astype(f32).reshape(n_grp, GE)
    x_blk  = node_feat.astype(f32).reshape(n_grp, GN, D)
    ea_blk = edge_attr.astype(f32).reshape(n_grp, GE, D)

    # block-diagonal one-hot edge->node operators (index-prep glue; exact in bf16)
    g_edge_off = (jnp.arange(GE, dtype=jnp.int32) // E) * N
    src_g = edge_index[..., 0].reshape(n_grp, GE) + g_edge_off[None, :]
    dst_g = edge_index[..., 1].reshape(n_grp, GE) + g_edge_off[None, :]
    iota_gn = jnp.arange(GN, dtype=jnp.int32)
    ssrc = ((src_g[..., None] == iota_gn).astype(f32) * em[..., None]).astype(bf16)  # [n_grp,GE,GN]
    sdst = ((dst_g[..., None] == iota_gn).astype(f32) * em[..., None]).astype(bf16)  # [n_grp,GE,GN]

    # block-diagonal attention mask -> additive bias (0 keep / -1e9 drop)
    g_node = jnp.arange(GN, dtype=jnp.int32) // N
    same_g = (g_node[:, None] == g_node[None, :]).astype(f32)
    amask  = nm[:, :, None] * nm[:, None, :] * same_g[None]
    abias  = ((amask - 1.0) * 1e9).astype(bf16)                                      # [n_grp,GN,GN]

    # pack the 8 small parameter tensors into two VMEM-resident slabs
    wslab = jnp.concatenate([params["w_lin"], params["wq"], params["wk"],
                             params["wv"], params["wo"]], axis=1).astype(f32)        # [D, 5D]
    bslab = jnp.concatenate([params["b_lin"], params["root"],
                             params["bo"]], axis=1).astype(f32)                      # [1, 3D]

    rp = (GN * D) // 128
    grp3 = lambda d1, d2: pl.BlockSpec((1, d1, d2), lambda i: (i, 0, 0))
    rep2 = lambda d1, d2: pl.BlockSpec((d1, d2), lambda i: (0, 0))

    out_packed = pl.pallas_call(
        gnn_attention_kernel,
        out_shape=jax.ShapeDtypeStruct((n_grp, rp, 128), jnp.float32),
        grid_spec=pltpu.PrefetchScalarGridSpec(
            num_scalar_prefetch=0,
            grid=(n_grp,),
            in_specs=[
                grp3(GN, D),        # x          (f32)
                grp3(GE, D),        # edge_attr  (f32)
                grp3(GE, GN),       # ssrc       (bf16, exact)
                grp3(GE, GN),       # sdst       (bf16, exact)
                grp3(GN, GN),       # attn bias  (bf16)
                rep2(D, 5 * D),     # weight slab
                rep2(1, 3 * D),     # bias slab
            ],
            out_specs=pl.BlockSpec((1, rp, 128), lambda i: (i, 0, 0)),
        ),
        compiler_params=pltpu.CompilerParams(dimension_semantics=("parallel",)),
    )(x_blk, ea_blk, ssrc, sdst, abias, wslab, bslab)

    out = out_packed.reshape(n_grp, GN, D).reshape(Bp, N, D)
    return out[:Bb]


def init_params(key):
    ks = jax.random.split(key, 9)
    f = jnp.float32
    return {
        "w_lin": jax.random.normal(ks[0], (D, D), f) * 0.1,
        "b_lin": jax.random.normal(ks[1], (1, D), f) * 0.1,
        "root":  jax.random.normal(ks[2], (1, D), f) * 0.1,
        "wq":    jax.random.normal(ks[3], (D, H * DH), f) * 0.1,
        "wk":    jax.random.normal(ks[4], (D, H * DH), f) * 0.1,
        "wv":    jax.random.normal(ks[5], (D, H * DH), f) * 0.1,
        "wo":    jax.random.normal(ks[6], (H * DH, D), f) * 0.1,
        "bo":    jax.random.normal(ks[7], (1, D), f) * 0.1,
    }


def reference(node_feat, edge_index, edge_attr, node_mask, edge_mask, params):
    """Pure numpy, sparse-form reference matching the torch module semantics."""
    node_feat = np.asarray(node_feat); edge_index = np.asarray(edge_index)
    edge_attr = np.asarray(edge_attr); node_mask = np.asarray(node_mask)
    edge_mask = np.asarray(edge_mask)
    p = {kk: np.asarray(vv) for kk, vv in params.items()}
    outs = []
    for b in range(node_feat.shape[0]):
        nn = int(node_mask[b].sum()); ne = int(edge_mask[b].sum())
        x = node_feat[b, :nn].astype(np.float64)
        ei = edge_index[b, :ne]
        ea = edge_attr[b, :ne].astype(np.float64)
        # GCNConv
        h = x @ p["w_lin"] + p["b_lin"]
        deg = np.ones(nn)
        for e in range(ne):
            deg[ei[e, 0]] += 1.0
        dis = deg ** -0.5
        aggr = np.zeros((nn, D))
        for e in range(ne):
            s, t = int(ei[e, 0]), int(ei[e, 1])
            aggr[t] += dis[s] * dis[t] * np.maximum(h[s] + ea[e], 0.0)
        g = aggr + np.maximum(h + p["root"], 0.0) / deg[:, None]
        # attention (all nn nodes valid -> mask is all-ones over them)
        q = g @ p["wq"]; k = g @ p["wk"]; v = g @ p["wv"]
        heads = []
        for hh in range(H):
            sl = slice(hh * DH, (hh + 1) * DH)
            sim = (q[:, sl] @ k[:, sl].T) / math.sqrt(DH)
            sim = sim - sim.max(-1, keepdims=True)
            pr = np.exp(sim); pr = pr / pr.sum(-1, keepdims=True)
            heads.append(pr @ v[:, sl])
        o = np.concatenate(heads, -1) @ p["wo"] + p["bo"]
        outs.append(o)
    return np.concatenate(outs, axis=0).astype(np.float32)   # sparse [total_nodes, D]


if __name__ == "__main__":
    key = jax.random.PRNGKey(0)
    k_feat, k_ea, k_src, k_dst, k_nn, k_ne, k_par = jax.random.split(key, 7)

    B = 13   # deliberately not a multiple of G to exercise the empty-graph padding path
    n_nodes = jax.random.randint(k_nn, (B,), 2, N + 1)
    n_edges = jax.random.randint(k_ne, (B,), 1, E + 1)
    node_mask = jnp.arange(N)[None, :] < n_nodes[:, None]           # [B, N]
    edge_mask = jnp.arange(E)[None, :] < n_edges[:, None]           # [B, E]

    node_feat = jax.random.normal(k_feat, (B, N, D), jnp.float32)
    edge_attr = jax.random.normal(k_ea, (B, E, D), jnp.float32)
    src = jax.random.randint(k_src, (B, E), 0, 1 << 16) % n_nodes[:, None]
    dst = jax.random.randint(k_dst, (B, E), 0, 1 << 16) % n_nodes[:, None]
    edge_index = jnp.stack([src, dst], axis=-1).astype(jnp.int32)   # [B, E, 2]
    edge_index = jnp.where(edge_mask[..., None], edge_index, 0)

    params = init_params(k_par)

    out_dense = gnn_attention_block(node_feat, edge_index, edge_attr,
                                    node_mask, edge_mask, params)
    out_dense = jax.block_until_ready(out_dense)

    # dense_to_sparse glue: keep only real nodes (eager boolean indexing)
    out_sparse = np.asarray(out_dense)[np.asarray(node_mask)]       # [total_nodes, D]

    ref_sparse = reference(node_feat, edge_index, edge_attr, node_mask, edge_mask, params)
    np.testing.assert_allclose(out_sparse, ref_sparse, rtol=2e-2, atol=2e-3)

    print("KERNEL_OK")
</pallas_src>

<mosaic_0001>
module attributes {stable_mosaic.version = 11 : i64} {
  func.func @gnn_attention_kernel(%arg0: i32, %arg1: memref<1x64x32xf32, #tpu.memory_space<vmem>>, %arg2: memref<1x128x32xf32, #tpu.memory_space<vmem>>, %arg3: memref<1x128x64xbf16, #tpu.memory_space<vmem>>, %arg4: memref<1x128x64xbf16, #tpu.memory_space<vmem>>, %arg5: memref<1x64x64xbf16, #tpu.memory_space<vmem>>, %arg6: memref<32x160xf32, #tpu.memory_space<vmem>>, %arg7: memref<1x96xf32, #tpu.memory_space<vmem>>, %arg8: memref<1x16x128xf32, #tpu.memory_space<vmem>>) attributes {dimension_semantics = [#tpu.dimension_semantics<parallel>], iteration_bounds = array<i64: 2>, scalar_prefetch = 0 : i64, scratch_operands = 0 : i64, tpu.core_type = #tpu.core_type<tc>, window_params = [{transform_indices = @transform_0, window_bounds = array<i64: 1, 64, 32>}, {transform_indices = @transform_1, window_bounds = array<i64: 1, 128, 32>}, {transform_indices = @transform_2, window_bounds = array<i64: 1, 128, 64>}, {transform_indices = @transform_3, window_bounds = array<i64: 1, 128, 64>}, {transform_indices = @transform_4, window_bounds = array<i64: 1, 64, 64>}, {pipeline_mode = #tpu.pipeline_mode<synchronous>, transform_indices = @transform_5, window_bounds = array<i64: 32, 160>}, {pipeline_mode = #tpu.pipeline_mode<synchronous>, transform_indices = @transform_6, window_bounds = array<i64: 1, 96>}, {transform_indices = @transform_7, window_bounds = array<i64: 1, 16, 128>}]} {
    %c0 = arith.constant 0 : index
    %c0_0 = arith.constant 0 : index
    %c0_1 = arith.constant 0 : index
    %0 = vector.load %arg1[%c0, %c0_0, %c0_1] : memref<1x64x32xf32, #tpu.memory_space<vmem>>, vector<1x64x32xf32>
    %1 = vector.shape_cast %0 : vector<1x64x32xf32> to vector<64x32xf32>
    %c0_2 = arith.constant 0 : index
    %c0_3 = arith.constant 0 : index
    %c0_4 = arith.constant 0 : index
    %2 = vector.load %arg2[%c0_2, %c0_3, %c0_4] : memref<1x128x32xf32, #tpu.memory_space<vmem>>, vector<1x128x32xf32>
    %3 = vector.shape_cast %2 : vector<1x128x32xf32> to vector<128x32xf32>
    %c0_5 = arith.constant 0 : index
    %c0_6 = arith.constant 0 : index
    %c0_7 = arith.constant 0 : index
    %4 = vector.load %arg3[%c0_5, %c0_6, %c0_7] : memref<1x128x64xbf16, #tpu.memory_space<vmem>>, vector<1x128x64xbf16>
    %5 = vector.shape_cast %4 : vector<1x128x64xbf16> to vector<128x64xbf16>
    %6 = arith.extf %5 : vector<128x64xbf16> to vector<128x64xf32>
    %c0_8 = arith.constant 0 : index
    %c0_9 = arith.constant 0 : index
    %c0_10 = arith.constant 0 : index
    %7 = vector.load %arg4[%c0_8, %c0_9, %c0_10] : memref<1x128x64xbf16, #tpu.memory_space<vmem>>, vector<1x128x64xbf16>
    %8 = vector.shape_cast %7 : vector<1x128x64xbf16> to vector<128x64xbf16>
    %9 = arith.extf %8 : vector<128x64xbf16> to vector<128x64xf32>
    %c0_11 = arith.constant 0 : index
    %c0_12 = arith.constant 0 : index
    %c0_13 = arith.constant 0 : index
    %10 = vector.load %arg5[%c0_11, %c0_12, %c0_13] : memref<1x64x64xbf16, #tpu.memory_space<vmem>>, vector<1x64x64xbf16>
    %11 = vector.shape_cast %10 : vector<1x64x64xbf16> to vector<64x64xbf16>
    %12 = arith.extf %11 : vector<64x64xbf16> to vector<64x64xf32>
    %c0_14 = arith.constant 0 : index
    %c0_15 = arith.constant 0 : index
    %13 = vector.load %arg6[%c0_14, %c0_15] : memref<32x160xf32, #tpu.memory_space<vmem>>, vector<32x32xf32>
    %c0_16 = arith.constant 0 : index
    %c32 = arith.constant 32 : index
    %14 = vector.load %arg6[%c0_16, %c32] : memref<32x160xf32, #tpu.memory_space<vmem>>, vector<32x32xf32>
    %c0_17 = arith.constant 0 : index
    %c64 = arith.constant 64 : index
    %15 = vector.load %arg6[%c0_17, %c64] : memref<32x160xf32, #tpu.memory_space<vmem>>, vector<32x32xf32>
    %c0_18 = arith.constant 0 : index
    %c96 = arith.constant 96 : index
    %16 = vector.load %arg6[%c0_18, %c96] : memref<32x160xf32, #tpu.memory_space<vmem>>, vector<32x32xf32>
    %c0_19 = arith.constant 0 : index
    %c128 = arith.constant 128 : index
    %17 = vector.load %arg6[%c0_19, %c128] : memref<32x160xf32, #tpu.memory_space<vmem>>, vector<32x32xf32>
    %c0_20 = arith.constant 0 : index
    %c0_21 = arith.constant 0 : index
    %18 = vector.load %arg7[%c0_20, %c0_21] : memref<1x96xf32, #tpu.memory_space<vmem>>, vector<1x32xf32>
    %c0_22 = arith.constant 0 : index
    %c32_23 = arith.constant 32 : index
    %19 = vector.load %arg7[%c0_22, %c32_23] : memref<1x96xf32, #tpu.memory_space<vmem>>, vector<1x32xf32>
    %c0_24 = arith.constant 0 : index
    %c64_25 = arith.constant 64 : index
    %20 = vector.load %arg7[%c0_24, %c64_25] : memref<1x96xf32, #tpu.memory_space<vmem>>, vector<1x32xf32>
    %cst = arith.constant dense<0.000000e+00> : vector<64x32xf32>
    %21 = tpu.matmul %1, %13, %cst {dimension_numbers = #tpu.dot_dimension_numbers<[1], [0], [0], [1], [0, 0, 1, 1], [], []>} : vector<64x32xf32>, vector<32x32xf32>, vector<64x32xf32> -> vector<64x32xf32>
    %22 = vector.broadcast %18 : vector<1x32xf32> to vector<64x32xf32>
    %23 = arith.addf %21, %22 : vector<64x32xf32>
    %cst_26 = arith.constant 1.000000e+00 : f32
    %24 = vector.broadcast %cst_26 : f32 to vector<128x1xf32>
    %cst_27 = arith.constant dense<0.000000e+00> : vector<64x1xf32>
    %25 = tpu.matmul %6, %24, %cst_27 {dimension_numbers = #tpu.dot_dimension_numbers<[0], [0], [1], [1], [0, 1, 1, 1], [], []>} : vector<128x64xf32>, vector<128x1xf32>, vector<64x1xf32> -> vector<64x1xf32>
    %cst_28 = arith.constant 1.000000e+00 : f32
    %26 = vector.broadcast %cst_28 : f32 to vector<64x1xf32>
    %27 = arith.addf %25, %26 : vector<64x1xf32>
    %28 = math.rsqrt %27 : vector<64x1xf32>
    %29 = arith.mulf %28, %28 : vector<64x1xf32>
    %cst_29 = arith.constant dense<0.000000e+00> : vector<128x1xf32>
    %30 = tpu.matmul %6, %28, %cst_29 {dimension_numbers = #tpu.dot_dimension_numbers<[1], [0], [0], [1], [0, 0, 1, 1], [], []>} : vector<128x64xf32>, vector<64x1xf32>, vector<128x1xf32> -> vector<128x1xf32>
    %cst_30 = arith.constant dense<0.000000e+00> : vector<128x1xf32>
    %31 = tpu.matmul %9, %28, %cst_30 {dimension_numbers = #tpu.dot_dimension_numbers<[1], [0], [0], [1], [0, 0, 1, 1], [], []>} : vector<128x64xf32>, vector<64x1xf32>, vector<128x1xf32> -> vector<128x1xf32>
    %32 = arith.mulf %30, %31 : vector<128x1xf32>
    %cst_31 = arith.constant dense<0.000000e+00> : vector<128x32xf32>
    %33 = tpu.matmul %6, %23, %cst_31 {dimension_numbers = #tpu.dot_dimension_numbers<[1], [0], [0], [1], [0, 0, 1, 1], [], []>} : vector<128x64xf32>, vector<64x32xf32>, vector<128x32xf32> -> vector<128x32xf32>
    %34 = arith.addf %33, %3 : vector<128x32xf32>
    %cst_32 = arith.constant 0.000000e+00 : f32
    %35 = vector.broadcast %cst_32 : f32 to vector<128x32xf32>
    %36 = arith.maximumf %34, %35 : vector<128x32xf32>
    %37 = vector.broadcast %32 : vector<128x1xf32> to vector<128x32xf32>
    %38 = arith.mulf %37, %36 : vector<128x32xf32>
    %cst_33 = arith.constant dense<0.000000e+00> : vector<64x32xf32>
    %39 = tpu.matmul %9, %38, %cst_33 {dimension_numbers = #tpu.dot_dimension_numbers<[0], [0], [1], [1], [0, 1, 1, 1], [], []>} : vector<128x64xf32>, vector<128x32xf32>, vector<64x32xf32> -> vector<64x32xf32>
    %40 = vector.broadcast %19 : vector<1x32xf32> to vector<64x32xf32>
    %41 = arith.addf %23, %40 : vector<64x32xf32>
    %cst_34 = arith.constant 0.000000e+00 : f32
    %42 = vector.broadcast %cst_34 : f32 to vector<64x32xf32>
    %43 = arith.maximumf %41, %42 : vector<64x32xf32>
    %44 = vector.broadcast %29 : vector<64x1xf32> to vector<64x32xf32>
    %45 = arith.mulf %43, %44 : vector<64x32xf32>
    %46 = arith.addf %39, %45 : vector<64x32xf32>
    %cst_35 = arith.constant dense<0.000000e+00> : vector<64x32xf32>
    %47 = tpu.matmul %46, %14, %cst_35 {dimension_numbers = #tpu.dot_dimension_numbers<[1], [0], [0], [1], [0, 0, 1, 1], [], []>} : vector<64x32xf32>, vector<32x32xf32>, vector<64x32xf32> -> vector<64x32xf32>
    %cst_36 = arith.constant dense<0.000000e+00> : vector<64x32xf32>
    %48 = tpu.matmul %46, %15, %cst_36 {dimension_numbers = #tpu.dot_dimension_numbers<[1], [0], [0], [1], [0, 0, 1, 1], [], []>} : vector<64x32xf32>, vector<32x32xf32>, vector<64x32xf32> -> vector<64x32xf32>
    %cst_37 = arith.constant dense<0.000000e+00> : vector<64x32xf32>
    %49 = tpu.matmul %46, %16, %cst_37 {dimension_numbers = #tpu.dot_dimension_numbers<[1], [0], [0], [1], [0, 0, 1, 1], [], []>} : vector<64x32xf32>, vector<32x32xf32>, vector<64x32xf32> -> vector<64x32xf32>
    %cst_38 = arith.constant 0.000000e+00 : f32
    %50 = vector.broadcast %cst_38 : f32 to vector<64x32xf32>
    %51 = vector.extract_strided_slice %47 {offsets = [0, 0], sizes = [64, 8], strides = [1, 1]} : vector<64x32xf32> to vector<64x8xf32>
    %52 = vector.extract_strided_slice %48 {offsets = [0, 0], sizes = [64, 8], strides = [1, 1]} : vector<64x32xf32> to vector<64x8xf32>
    %cst_39 = arith.constant dense<0.000000e+00> : vector<64x64xf32>
    %53 = tpu.matmul %51, %52, %cst_39 {dimension_numbers = #tpu.dot_dimension_numbers<[1], [1], [0], [0], [0, 0, 1, 0], [], []>} : vector<64x8xf32>, vector<64x8xf32>, vector<64x64xf32> -> vector<64x64xf32>
    %cst_40 = arith.constant 0.353553385 : f32
    %54 = vector.broadcast %cst_40 : f32 to vector<64x64xf32>
    %55 = arith.mulf %53, %54 : vector<64x64xf32>
    %56 = arith.addf %55, %12 : vector<64x64xf32>
    %cst_41 = arith.constant dense<0xFF800000> : vector<64xf32>
    %57 = vector.multi_reduction <maximumf>, %56, %cst_41 [1] : vector<64x64xf32> to vector<64xf32>
    %58 = vector.shape_cast %57 : vector<64xf32> to vector<64x1xf32>
    %59 = vector.broadcast %58 : vector<64x1xf32> to vector<64x64xf32>
    %60 = arith.subf %56, %59 : vector<64x64xf32>
    %61 = math.exp %60 : vector<64x64xf32>
    %cst_42 = arith.constant dense<0.000000e+00> : vector<64xf32>
    %62 = vector.multi_reduction <add>, %61, %cst_42 [1] : vector<64x64xf32> to vector<64xf32>
    %63 = vector.shape_cast %62 : vector<64xf32> to vector<64x1xf32>
    %64 = tpu.reciprocal %63 {approx = true} : vector<64x1xf32> -> vector<64x1xf32>
    %65 = vector.broadcast %64 : vector<64x1xf32> to vector<64x64xf32>
    %66 = arith.mulf %61, %65 : vector<64x64xf32>
    %67 = vector.extract_strided_slice %49 {offsets = [0, 0], sizes = [64, 8], strides = [1, 1]} : vector<64x32xf32> to vector<64x8xf32>
    %cst_43 = arith.constant dense<0.000000e+00> : vector<64x8xf32>
    %68 = tpu.matmul %66, %67, %cst_43 {dimension_numbers = #tpu.dot_dimension_numbers<[1], [0], [0], [1], [0, 0, 1, 1], [], []>} : vector<64x64xf32>, vector<64x8xf32>, vector<64x8xf32> -> vector<64x8xf32>
    %69 = vector.extract_strided_slice %17 {offsets = [0, 0], sizes = [8, 32], strides = [1, 1]} : vector<32x32xf32> to vector<8x32xf32>
    %cst_44 = arith.constant dense<0.000000e+00> : vector<64x32xf32>
    %70 = tpu.matmul %68, %69, %cst_44 {dimension_numbers = #tpu.dot_dimension_numbers<[1], [0], [0], [1], [0, 0, 1, 1], [], []>} : vector<64x8xf32>, vector<8x32xf32>, vector<64x32xf32> -> vector<64x32xf32>
    %71 = arith.addf %50, %70 : vector<64x32xf32>
    %72 = vector.extract_strided_slice %47 {offsets = [0, 8], sizes = [64, 8], strides = [1, 1]} : vector<64x32xf32> to vector<64x8xf32>
    %73 = vector.extract_strided_slice %48 {offsets = [0, 8], sizes = [64, 8], strides = [1, 1]} : vector<64x32xf32> to vector<64x8xf32>
    %cst_45 = arith.constant dense<0.000000e+00> : vector<64x64xf32>
    %74 = tpu.matmul %72, %73, %cst_45 {dimension_numbers = #tpu.dot_dimension_numbers<[1], [1], [0], [0], [0, 0, 1, 0], [], []>} : vector<64x8xf32>, vector<64x8xf32>, vector<64x64xf32> -> vector<64x64xf32>
    %cst_46 = arith.constant 0.353553385 : f32
    %75 = vector.broadcast %cst_46 : f32 to vector<64x64xf32>
    %76 = arith.mulf %74, %75 : vector<64x64xf32>
    %77 = arith.addf %76, %12 : vector<64x64xf32>
    %cst_47 = arith.constant dense<0xFF800000> : vector<64xf32>
    %78 = vector.multi_reduction <maximumf>, %77, %cst_47 [1] : vector<64x64xf32> to vector<64xf32>
    %79 = vector.shape_cast %78 : vector<64xf32> to vector<64x1xf32>
    %80 = vector.broadcast %79 : vector<64x1xf32> to vector<64x64xf32>
    %81 = arith.subf %77, %80 : vector<64x64xf32>
    %82 = math.exp %81 : vector<64x64xf32>
    %cst_48 = arith.constant dense<0.000000e+00> : vector<64xf32>
    %83 = vector.multi_reduction <add>, %82, %cst_48 [1] : vector<64x64xf32> to vector<64xf32>
    %84 = vector.shape_cast %83 : vector<64xf32> to vector<64x1xf32>
    %85 = tpu.reciprocal %84 {approx = true} : vector<64x1xf32> -> vector<64x1xf32>
    %86 = vector.broadcast %85 : vector<64x1xf32> to vector<64x64xf32>
    %87 = arith.mulf %82, %86 : vector<64x64xf32>
    %88 = vector.extract_strided_slice %49 {offsets = [0, 8], sizes = [64, 8], strides = [1, 1]} : vector<64x32xf32> to vector<64x8xf32>
    %cst_49 = arith.constant dense<0.000000e+00> : vector<64x8xf32>
    %89 = tpu.matmul %87, %88, %cst_49 {dimension_numbers = #tpu.dot_dimension_numbers<[1], [0], [0], [1], [0, 0, 1, 1], [], []>} : vector<64x64xf32>, vector<64x8xf32>, vector<64x8xf32> -> vector<64x8xf32>
    %90 = vector.extract_strided_slice %17 {offsets = [8, 0], sizes = [8, 32], strides = [1, 1]} : vector<32x32xf32> to vector<8x32xf32>
    %cst_50 = arith.constant dense<0.000000e+00> : vector<64x32xf32>
    %91 = tpu.matmul %89, %90, %cst_50 {dimension_numbers = #tpu.dot_dimension_numbers<[1], [0], [0], [1], [0, 0, 1, 1], [], []>} : vector<64x8xf32>, vector<8x32xf32>, vector<64x32xf32> -> vector<64x32xf32>
    %92 = arith.addf %71, %91 : vector<64x32xf32>
    %93 = vector.extract_strided_slice %47 {offsets = [0, 16], sizes = [64, 8], strides = [1, 1]} : vector<64x32xf32> to vector<64x8xf32>
    %94 = vector.extract_strided_slice %48 {offsets = [0, 16], sizes = [64, 8], strides = [1, 1]} : vector<64x32xf32> to vector<64x8xf32>
    %cst_51 = arith.constant dense<0.000000e+00> : vector<64x64xf32>
    %95 = tpu.matmul %93, %94, %cst_51 {dimension_numbers = #tpu.dot_dimension_numbers<[1], [1], [0], [0], [0, 0, 1, 0], [], []>} : vector<64x8xf32>, vector<64x8xf32>, vector<64x64xf32> -> vector<64x64xf32>
    %cst_52 = arith.constant 0.353553385 : f32
    %96 = vector.broadcast %cst_52 : f32 to vector<64x64xf32>
    %97 = arith.mulf %95, %96 : vector<64x64xf32>
    %98 = arith.addf %97, %12 : vector<64x64xf32>
    %cst_53 = arith.constant dense<0xFF800000> : vector<64xf32>
    %99 = vector.multi_reduction <maximumf>, %98, %cst_53 [1] : vector<64x64xf32> to vector<64xf32>
    %100 = vector.shape_cast %99 : vector<64xf32> to vector<64x1xf32>
    %101 = vector.broadcast %100 : vector<64x1xf32> to vector<64x64xf32>
    %102 = arith.subf %98, %101 : vector<64x64xf32>
    %103 = math.exp %102 : vector<64x64xf32>
    %cst_54 = arith.constant dense<0.000000e+00> : vector<64xf32>
    %104 = vector.multi_reduction <add>, %103, %cst_54 [1] : vector<64x64xf32> to vector<64xf32>
    %105 = vector.shape_cast %104 : vector<64xf32> to vector<64x1xf32>
    %106 = tpu.reciprocal %105 {approx = true} : vector<64x1xf32> -> vector<64x1xf32>
    %107 = vector.broadcast %106 : vector<64x1xf32> to vector<64x64xf32>
    %108 = arith.mulf %103, %107 : vector<64x64xf32>
    %109 = vector.extract_strided_slice %49 {offsets = [0, 16], sizes = [64, 8], strides = [1, 1]} : vector<64x32xf32> to vector<64x8xf32>
    %cst_55 = arith.constant dense<0.000000e+00> : vector<64x8xf32>
    %110 = tpu.matmul %108, %109, %cst_55 {dimension_numbers = #tpu.dot_dimension_numbers<[1], [0], [0], [1], [0, 0, 1, 1], [], []>} : vector<64x64xf32>, vector<64x8xf32>, vector<64x8xf32> -> vector<64x8xf32>
    %111 = vector.extract_strided_slice %17 {offsets = [16, 0], sizes = [8, 32], strides = [1, 1]} : vector<32x32xf32> to vector<8x32xf32>
    %cst_56 = arith.constant dense<0.000000e+00> : vector<64x32xf32>
    %112 = tpu.matmul %110, %111, %cst_56 {dimension_numbers = #tpu.dot_dimension_numbers<[1], [0], [0], [1], [0, 0, 1, 1], [], []>} : vector<64x8xf32>, vector<8x32xf32>, vector<64x32xf32> -> vector<64x32xf32>
    %113 = arith.addf %92, %112 : vector<64x32xf32>
    %114 = vector.extract_strided_slice %47 {offsets = [0, 24], sizes = [64, 8], strides = [1, 1]} : vector<64x32xf32> to vector<64x8xf32>
    %115 = vector.extract_strided_slice %48 {offsets = [0, 24], sizes = [64, 8], strides = [1, 1]} : vector<64x32xf32> to vector<64x8xf32>
    %cst_57 = arith.constant dense<0.000000e+00> : vector<64x64xf32>
    %116 = tpu.matmul %114, %115, %cst_57 {dimension_numbers = #tpu.dot_dimension_numbers<[1], [1], [0], [0], [0, 0, 1, 0], [], []>} : vector<64x8xf32>, vector<64x8xf32>, vector<64x64xf32> -> vector<64x64xf32>
    %cst_58 = arith.constant 0.353553385 : f32
    %117 = vector.broadcast %cst_58 : f32 to vector<64x64xf32>
    %118 = arith.mulf %116, %117 : vector<64x64xf32>
    %119 = arith.addf %118, %12 : vector<64x64xf32>
    %cst_59 = arith.constant dense<0xFF800000> : vector<64xf32>
    %120 = vector.multi_reduction <maximumf>, %119, %cst_59 [1] : vector<64x64xf32> to vector<64xf32>
    %121 = vector.shape_cast %120 : vector<64xf32> to vector<64x1xf32>
    %122 = vector.broadcast %121 : vector<64x1xf32> to vector<64x64xf32>
    %123 = arith.subf %119, %122 : vector<64x64xf32>
    %124 = math.exp %123 : vector<64x64xf32>
    %cst_60 = arith.constant dense<0.000000e+00> : vector<64xf32>
    %125 = vector.multi_reduction <add>, %124, %cst_60 [1] : vector<64x64xf32> to vector<64xf32>
    %126 = vector.shape_cast %125 : vector<64xf32> to vector<64x1xf32>
    %127 = tpu.reciprocal %126 {approx = true} : vector<64x1xf32> -> vector<64x1xf32>
    %128 = vector.broadcast %127 : vector<64x1xf32> to vector<64x64xf32>
    %129 = arith.mulf %124, %128 : vector<64x64xf32>
    %130 = vector.extract_strided_slice %49 {offsets = [0, 24], sizes = [64, 8], strides = [1, 1]} : vector<64x32xf32> to vector<64x8xf32>
    %cst_61 = arith.constant dense<0.000000e+00> : vector<64x8xf32>
    %131 = tpu.matmul %129, %130, %cst_61 {dimension_numbers = #tpu.dot_dimension_numbers<[1], [0], [0], [1], [0, 0, 1, 1], [], []>} : vector<64x64xf32>, vector<64x8xf32>, vector<64x8xf32> -> vector<64x8xf32>
    %132 = vector.extract_strided_slice %17 {offsets = [24, 0], sizes = [8, 32], strides = [1, 1]} : vector<32x32xf32> to vector<8x32xf32>
    %cst_62 = arith.constant dense<0.000000e+00> : vector<64x32xf32>
    %133 = tpu.matmul %131, %132, %cst_62 {dimension_numbers = #tpu.dot_dimension_numbers<[1], [0], [0], [1], [0, 0, 1, 1], [], []>} : vector<64x8xf32>, vector<8x32xf32>, vector<64x32xf32> -> vector<64x32xf32>
    %134 = arith.addf %113, %133 : vector<64x32xf32>
    %135 = vector.broadcast %20 : vector<1x32xf32> to vector<64x32xf32>
    %136 = arith.addf %134, %135 : vector<64x32xf32>
    %137 = tpu.iota {dimensions = array<i32: 0>} : vector<16x64xi32>
    %c4_i32 = arith.constant 4 : i32
    %138 = vector.broadcast %c4_i32 : i32 to vector<16x64xi32>
    %139 = arith.muli %137, %138 : vector<16x64xi32>
    %140 = tpu.iota {dimensions = array<i32: 1>} : vector<16x64xi32>
    %c0_i32 = arith.constant 0 : i32
    %141 = vector.broadcast %c0_i32 : i32 to vector<16x64xi32>
    %142 = arith.addi %139, %141 : vector<16x64xi32>
    %143 = arith.cmpi eq, %140, %142 : vector<16x64xi32>
    %144 = arith.extui %143 : vector<16x64xi1> to vector<16x64xi32>
    %145 = arith.sitofp %144 : vector<16x64xi32> to vector<16x64xf32>
    %cst_63 = arith.constant dense<0.000000e+00> : vector<16x32xf32>
    %146 = tpu.matmul %145, %136, %cst_63 {dimension_numbers = #tpu.dot_dimension_numbers<[1], [0], [0], [1], [0, 0, 1, 1], [], []>} : vector<16x64xf32>, vector<64x32xf32>, vector<16x32xf32> -> vector<16x32xf32>
    %c1_i32 = arith.constant 1 : i32
    %147 = vector.broadcast %c1_i32 : i32 to vector<16x64xi32>
    %148 = arith.addi %139, %147 : vector<16x64xi32>
    %149 = arith.cmpi eq, %140, %148 : vector<16x64xi32>
    %150 = arith.extui %149 : vector<16x64xi1> to vector<16x64xi32>
    %151 = arith.sitofp %150 : vector<16x64xi32> to vector<16x64xf32>
    %cst_64 = arith.constant dense<0.000000e+00> : vector<16x32xf32>
    %152 = tpu.matmul %151, %136, %cst_64 {dimension_numbers = #tpu.dot_dimension_numbers<[1], [0], [0], [1], [0, 0, 1, 1], [], []>} : vector<16x64xf32>, vector<64x32xf32>, vector<16x32xf32> -> vector<16x32xf32>
    %c2_i32 = arith.constant 2 : i32
    %153 = vector.broadcast %c2_i32 : i32 to vector<16x64xi32>
    %154 = arith.addi %139, %153 : vector<16x64xi32>
    %155 = arith.cmpi eq, %140, %154 : vector<16x64xi32>
    %156 = arith.extui %155 : vector<16x64xi1> to vector<16x64xi32>
    %157 = arith.sitofp %156 : vector<16x64xi32> to vector<16x64xf32>
    %cst_65 = arith.constant dense<0.000000e+00> : vector<16x32xf32>
    %158 = tpu.matmul %157, %136, %cst_65 {dimension_numbers = #tpu.dot_dimension_numbers<[1], [0], [0], [1], [0, 0, 1, 1], [], []>} : vector<16x64xf32>, vector<64x32xf32>, vector<16x32xf32> -> vector<16x32xf32>
    %c3_i32 = arith.constant 3 : i32
    %159 = vector.broadcast %c3_i32 : i32 to vector<16x64xi32>
    %160 = arith.addi %139, %159 : vector<16x64xi32>
    %161 = arith.cmpi eq, %140, %160 : vector<16x64xi32>
    %162 = arith.extui %161 : vector<16x64xi1> to vector<16x64xi32>
    %163 = arith.sitofp %162 : vector<16x64xi32> to vector<16x64xf32>
    %cst_66 = arith.constant dense<0.000000e+00> : vector<16x32xf32>
    %164 = tpu.matmul %163, %136, %cst_66 {dimension_numbers = #tpu.dot_dimension_numbers<[1], [0], [0], [1], [0, 0, 1, 1], [], []>} : vector<16x64xf32>, vector<64x32xf32>, vector<16x32xf32> -> vector<16x32xf32>
    %165 = tpu.concatenate %146, %152, %158, %164 in 1 : vector<16x32xf32>, vector<16x32xf32>, vector<16x32xf32>, vector<16x32xf32> -> vector<16x128xf32>
    %c0_67 = arith.constant 0 : index
    %c0_68 = arith.constant 0 : index
    %c0_69 = arith.constant 0 : index
    %166 = vector.load %arg8[%c0_67, %c0_68, %c0_69] : memref<1x16x128xf32, #tpu.memory_space<vmem>>, vector<1x16x128xf32>
    %167 = vector.shape_cast %166 : vector<1x16x128xf32> to vector<16x128xf32>
    %168 = vector.shape_cast %165 : vector<16x128xf32> to vector<1x16x128xf32>
    tpu.vector_store %arg8[%c0_67, %c0_68, %c0_69], %168 {strides = array<i32>} : memref<1x16x128xf32, #tpu.memory_space<vmem>>, vector<1x16x128xf32>,
    return
  }
  func.func @transform_0(%arg0: i32) -> (i32, i32, i32) {
    %c0_i32 = arith.constant 0 : i32
    %c0_i32_0 = arith.constant 0 : i32
    %c0_i32_1 = arith.constant 0 : i32
    return %arg0, %c0_i32, %c0_i32_0 : i32, i32, i32
  }
  func.func @transform_1(%arg0: i32) -> (i32, i32, i32) {
    %c0_i32 = arith.constant 0 : i32
    %c0_i32_0 = arith.constant 0 : i32
    %c0_i32_1 = arith.constant 0 : i32
    return %arg0, %c0_i32, %c0_i32_0 : i32, i32, i32
  }
  func.func @transform_2(%arg0: i32) -> (i32, i32, i32) {
    %c0_i32 = arith.constant 0 : i32
    %c0_i32_0 = arith.constant 0 : i32
    %c0_i32_1 = arith.constant 0 : i32
    return %arg0, %c0_i32, %c0_i32_0 : i32, i32, i32
  }
  func.func @transform_3(%arg0: i32) -> (i32, i32, i32) {
    %c0_i32 = arith.constant 0 : i32
    %c0_i32_0 = arith.constant 0 : i32
    %c0_i32_1 = arith.constant 0 : i32
    return %arg0, %c0_i32, %c0_i32_0 : i32, i32, i32
  }
  func.func @transform_4(%arg0: i32) -> (i32, i32, i32) {
    %c0_i32 = arith.constant 0 : i32
    %c0_i32_0 = arith.constant 0 : i32
    %c0_i32_1 = arith.constant 0 : i32
    return %arg0, %c0_i32, %c0_i32_0 : i32, i32, i32
  }
  func.func @transform_5(%arg0: i32) -> (i32, i32) {
    %c0_i32 = arith.constant 0 : i32
    %c0_i32_0 = arith.constant 0 : i32
    %c0_i32_1 = arith.constant 0 : i32
    return %c0_i32, %c0_i32_0 : i32, i32
  }
  func.func @transform_6(%arg0: i32) -> (i32, i32) {
    %c0_i32 = arith.constant 0 : i32
    %c0_i32_0 = arith.constant 0 : i32
    %c0_i32_1 = arith.constant 0 : i32
    return %c0_i32, %c0_i32_0 : i32, i32
  }
  func.func @transform_7(%arg0: i32) -> (i32, i32, i32) {
    %c0_i32 = arith.constant 0 : i32
    %c0_i32_0 = arith.constant 0 : i32
    %c0_i32_1 = arith.constant 0 : i32
    return %arg0, %c0_i32, %c0_i32_0 : i32, i32, i32
  }
}

</mosaic_0001>

<llo_original>
// kernel: tpu_custom_call.1
$region0: #{tpu_custom_call.1}
  #allocation0 [shape = 'u32[]', space=smem, size = 0x4, offset = 0x4, fixed_abs, tag = 'smem constant byte address 0x4 - core index']
  #allocation1 [shape = 'u32[72,128]{1,0:T(1,128)}', space=vmem, size = 0x9000, scoped, tag = 'internal scratch']
  %s0 = inlined_call_operand.vmem [shape: f32[2,64,32], index: 0, kind: input, shape index: {}]
  %s1 = inlined_call_operand.vmem [shape: f32[2,128,32], index: 1, kind: input, shape index: {}]
  %s2 = inlined_call_operand.vmem [shape: bf16[2,128,64], index: 2, kind: input, shape index: {}]
  %s3 = inlined_call_operand.vmem [shape: bf16[2,128,64], index: 3, kind: input, shape index: {}]
  %s4 = inlined_call_operand.vmem [shape: bf16[2,64,64], index: 4, kind: input, shape index: {}]
  %s5 = inlined_call_operand.vmem [shape: f32[32,160], index: 5, kind: input, shape index: {}]
  %s6 = inlined_call_operand.vmem [shape: f32[1,96], index: 6, kind: input, shape index: {}]
  %s7 = inlined_call_operand.hbm [shape: f32[2,16,128], index: 7, kind: output, shape index: {}]
  %s8 = sld [smem:[#allocation0]]
  $region61: #{tpu_custom_call.1} parent=0
    _
  %s10 = ssub.s32 1, %s8
  %s11 = scalar_select 0, %s10, %s8
  $region1: #{tpu_custom_call.1} parent=0
    #allocation2 [shape = 'u8[16384]{0}', space=vmem, size = 0x4000, scoped, tag = 'output window, operand 0']
    #allocation3 [shape = 's32[2]{0}', space=sflag, size = 0x8, scoped, tag = 'scoped memory for tpu_custom_call.1']
    %12 = vsyncpa [#allocation3], 0
    %s13 = scalar_lea.sflag [#allocation3], 1
    %14 = vsyncpa %s13, 0
    loop: start=0, step=1, limit=4
    $region2: #{tpu_custom_call.1} parent=1 // loop_pre_header
      _
    $region3: #{tpu_custom_call.1} parent=1 // loop_header
      %s16 = sphi 0, %s20
      %p17 = scmp.ge.s32.totalorder %s16, 4
      %s26 = sphi 0, %s28
      %s29 = sphi 0, %s26
      %s30 = sphi 0, %s29
      %s46 = sphi 0, %s30
      %s52 = sphi 0, %s54
      %s55 = sphi 0, %s52
      %s56 = sphi 0, %s55
      %s72 = sphi 0, %s56
      %s78 = sphi 0, %s80
      %s81 = sphi 0, %s78
      %s82 = sphi 0, %s81
      %s98 = sphi 0, %s82
      %s104 = sphi 0, %s106
      %s107 = sphi 0, %s104
      %s108 = sphi 0, %s107
      %s124 = sphi 0, %s108
      %s130 = sphi 0, %s132
      %s133 = sphi 0, %s130
      %s134 = sphi 0, %s133
      %s150 = sphi 0, %s134
      %s154 = sphi 0, %s154
      %s156 = sphi 0, %s154
      %s157 = sphi 0, %s156
      %s171 = sphi 0, %s157
      %s175 = sphi 0, %s175
      %s177 = sphi 0, %s175
      %s178 = sphi 0, %s177
      %s192 = sphi 0, %s178
      %s198 = sphi 0, %s200
      %s201 = sphi 0, %s198
      %s202 = sphi 0, %s201
      %s218 = sphi 0, %s202
    $region4: #{tpu_custom_call.1} parent=1 // loop_header_branch
      %19 = sbr.rel (%p17) target = $region8
    $region5: #{tpu_custom_call.1} parent=1 // loop_body
      %s21 = ssub.s32 %s16, 1
      %s22 = ssub.s32 %s16, 2
      %s23 = sadd.s32 %s16, 1
      %s24 = ssub.s32 %s16, %s23
      %p25 = scmp.eq.s32.totalorder %s24, 0
      %s27 = sadd.s32 %s26, 1
      %s28 = scalar_select %p25, %s26, %s27
      %p31 = pneg %p25
      %p32 = scmp.eq.s32.totalorder %s16, 1
      %p33 = por %p31, %p32
      %p34 = scmp.ne.s32.totalorder %s26, %s29
      %p35 = scmp.eq.s32.totalorder %s16, 0
      %p36 = por %p34, %p35
      %p37 = scmp.ne.s32.totalorder %s26, %s29
      %p38 = scmp.eq.s32.totalorder %s21, 1
      %p39 = por %p37, %p38
      %p40 = scmp.ne.s32.totalorder %s29, %s30
      %p41 = scmp.eq.s32.totalorder %s21, 0
      %p42 = por %p40, %p41
      %p43 = scmp.ne.s32.totalorder %s29, %s30
      %p44 = scmp.eq.s32.totalorder %s22, 1
      %p45 = por %p43, %p44
      %p47 = scmp.ne.s32.totalorder %s30, %s46
      %p48 = scmp.eq.s32.totalorder %s22, 0
      %p49 = por %p47, %p48
      %s50 = ssub.s32 %s16, %s23
      %p51 = scmp.eq.s32.totalorder %s50, 0
      %s53 = sadd.s32 %s52, 1
      %s54 = scalar_select %p51, %s52, %s53
      %p57 = pneg %p51
      %p58 = scmp.eq.s32.totalorder %s16, 1
      %p59 = por %p57, %p58
      %p60 = scmp.ne.s32.totalorder %s52, %s55
      %p61 = scmp.eq.s32.totalorder %s16, 0
      %p62 = por %p60, %p61
      %p63 = scmp.ne.s32.totalorder %s52, %s55
      %p64 = scmp.eq.s32.totalorder %s21, 1
      %p65 = por %p63, %p64
      %p66 = scmp.ne.s32.totalorder %s55, %s56
      %p67 = scmp.eq.s32.totalorder %s21, 0
      %p68 = por %p66, %p67
      %p69 = scmp.ne.s32.totalorder %s55, %s56
      %p70 = scmp.eq.s32.totalorder %s22, 1
      %p71 = por %p69, %p70
      %p73 = scmp.ne.s32.totalorder %s56, %s72
      %p74 = scmp.eq.s32.totalorder %s22, 0
      %p75 = por %p73, %p74
      %s76 = ssub.s32 %s16, %s23
      %p77 = scmp.eq.s32.totalorder %s76, 0
      %s79 = sadd.s32 %s78, 1
      %s80 = scalar_select %p77, %s78, %s79
      %p83 = pneg %p77
      %p84 = scmp.eq.s32.totalorder %s16, 1
      %p85 = por %p83, %p84
      %p86 = scmp.ne.s32.totalorder %s78, %s81
      %p87 = scmp.eq.s32.totalorder %s16, 0
      %p88 = por %p86, %p87
      %p89 = scmp.ne.s32.totalorder %s78, %s81
      %p90 = scmp.eq.s32.totalorder %s21, 1
      %p91 = por %p89, %p90
      %p92 = scmp.ne.s32.totalorder %s81, %s82
      %p93 = scmp.eq.s32.totalorder %s21, 0
      %p94 = por %p92, %p93
      %p95 = scmp.ne.s32.totalorder %s81, %s82
      %p96 = scmp.eq.s32.totalorder %s22, 1
      %p97 = por %p95, %p96
      %p99 = scmp.ne.s32.totalorder %s82, %s98
      %p100 = scmp.eq.s32.totalorder %s22, 0
      %p101 = por %p99, %p100
      %s102 = ssub.s32 %s16, %s23
      %p103 = scmp.eq.s32.totalorder %s102, 0
      %s105 = sadd.s32 %s104, 1
      %s106 = scalar_select %p103, %s104, %s105
      %p109 = pneg %p103
      %p110 = scmp.eq.s32.totalorder %s16, 1
      %p111 = por %p109, %p110
      %p112 = scmp.ne.s32.totalorder %s104, %s107
      %p113 = scmp.eq.s32.totalorder %s16, 0
      %p114 = por %p112, %p113
      %p115 = scmp.ne.s32.totalorder %s104, %s107
      %p116 = scmp.eq.s32.totalorder %s21, 1
      %p117 = por %p115, %p116
      %p118 = scmp.ne.s32.totalorder %s107, %s108
      %p119 = scmp.eq.s32.totalorder %s21, 0
      %p120 = por %p118, %p119
      %p121 = scmp.ne.s32.totalorder %s107, %s108
      %p122 = scmp.eq.s32.totalorder %s22, 1
      %p123 = por %p121, %p122
      %p125 = scmp.ne.s32.totalorder %s108, %s124
      %p126 = scmp.eq.s32.totalorder %s22, 0
      %p127 = por %p125, %p126
      %s128 = ssub.s32 %s16, %s23
      %p129 = scmp.eq.s32.totalorder %s128, 0
      %s131 = sadd.s32 %s130, 1
      %s132 = scalar_select %p129, %s130, %s131
      %p135 = pneg %p129
      %p136 = scmp.eq.s32.totalorder %s16, 1
      %p137 = por %p135, %p136
      %p138 = scmp.ne.s32.totalorder %s130, %s133
      %p139 = scmp.eq.s32.totalorder %s16, 0
      %p140 = por %p138, %p139
      %p141 = scmp.ne.s32.totalorder %s130, %s133
      %p142 = scmp.eq.s32.totalorder %s21, 1
      %p143 = por %p141, %p142
      %p144 = scmp.ne.s32.totalorder %s133, %s134
      %p145 = scmp.eq.s32.totalorder %s21, 0
      %p146 = por %p144, %p145
      %p147 = scmp.ne.s32.totalorder %s133, %s134
      %p148 = scmp.eq.s32.totalorder %s22, 1
      %p149 = por %p147, %p148
      %p151 = scmp.ne.s32.totalorder %s134, %s150
      %p152 = scmp.eq.s32.totalorder %s22, 0
      %p153 = por %p151, %p152
      %s155 = sadd.s32 %s154, 1
      %p158 = scmp.eq.s32.totalorder %s16, 1
      %p159 = scmp.ne.s32.totalorder %s154, %s156
      %p160 = scmp.eq.s32.totalorder %s16, 0
      %p161 = por %p159, %p160
      %p162 = scmp.ne.s32.totalorder %s154, %s156
      %p163 = scmp.eq.s32.totalorder %s21, 1
      %p164 = por %p162, %p163
      %p165 = scmp.ne.s32.totalorder %s156, %s157
      %p166 = scmp.eq.s32.totalorder %s21, 0
      %p167 = por %p165, %p166
      %p168 = scmp.ne.s32.totalorder %s156, %s157
      %p169 = scmp.eq.s32.totalorder %s22, 1
      %p170 = por %p168, %p169
      %p172 = scmp.ne.s32.totalorder %s157, %s171
      %p173 = scmp.eq.s32.totalorder %s22, 0
      %p174 = por %p172, %p173
      %s176 = sadd.s32 %s175, 1
      %p179 = scmp.eq.s32.totalorder %s16, 1
      %p180 = scmp.ne.s32.totalorder %s175, %s177
      %p181 = scmp.eq.s32.totalorder %s16, 0
      %p182 = por %p180, %p181
      %p183 = scmp.ne.s32.totalorder %s175, %s177
      %p184 = scmp.eq.s32.totalorder %s21, 1
      %p185 = por %p183, %p184
      %p186 = scmp.ne.s32.totalorder %s177, %s178
      %p187 = scmp.eq.s32.totalorder %s21, 0
      %p188 = por %p186, %p187
      %p189 = scmp.ne.s32.totalorder %s177, %s178
      %p190 = scmp.eq.s32.totalorder %s22, 1
      %p191 = por %p189, %p190
      %p193 = scmp.ne.s32.totalorder %s178, %s192
      %p194 = scmp.eq.s32.totalorder %s22, 0
      %p195 = por %p193, %p194
      %s196 = ssub.s32 %s16, %s23
      %p197 = scmp.eq.s32.totalorder %s196, 0
      %s199 = sadd.s32 %s198, 1
      %s200 = scalar_select %p197, %s198, %s199
      %p203 = pneg %p197
      %p204 = scmp.eq.s32.totalorder %s16, 1
      %p205 = por %p203, %p204
      %p206 = scmp.ne.s32.totalorder %s198, %s201
      %p207 = scmp.eq.s32.totalorder %s16, 0
      %p208 = por %p206, %p207
      %p209 = scmp.ne.s32.totalorder %s198, %s201
      %p210 = scmp.eq.s32.totalorder %s21, 1
      %p211 = por %p209, %p210
      %p212 = scmp.ne.s32.totalorder %s201, %s202
      %p213 = scmp.eq.s32.totalorder %s21, 0
      %p214 = por %p212, %p213
      %p215 = scmp.ne.s32.totalorder %s201, %s202
      %p216 = scmp.eq.s32.totalorder %s22, 1
      %p217 = por %p215, %p216
      %p219 = scmp.ne.s32.totalorder %s202, %s218
      %p220 = scmp.eq.s32.totalorder %s22, 0
      %p221 = por %p219, %p220
      %p222 = scmp.le.s32.totalorder 1, %s16
      %p223 = scmp.lt.s32.totalorder %s16, 3
      %p224 = pnand %p222, %p223
      %p225 = pneg %p224
      // Predicated region
      $region9: #{tpu_custom_call.1} parent=5 // pred_check
        _
      $region10: #{tpu_custom_call.1} parent=5 // pred_check_branch
        %227 = sbr.rel (%p224) target = $region12
      $region11: #{tpu_custom_call.1} parent=5 // pred_region
        %s228 = ssub.s32 %s16, 1
        // Predicated region
        $region13: #{tpu_custom_call.1} parent=11 // pred_check
          %p229 = pneg %p167
        $region14: #{tpu_custom_call.1} parent=11 // pred_check_branch
          %231 = sbr.rel (%p229) target = $region16
        $region15: #{tpu_custom_call.1} parent=11 // pred_region
          _
        $region16: #{tpu_custom_call.1} parent=11 // pred_fallthru
          _
        // Predicated region
        $region17: #{tpu_custom_call.1} parent=11 // pred_check
          %p232 = pneg %p188
        $region18: #{tpu_custom_call.1} parent=11 // pred_check_branch
          %234 = sbr.rel (%p232) target = $region20
        $region19: #{tpu_custom_call.1} parent=11 // pred_region
          _
        $region20: #{tpu_custom_call.1} parent=11 // pred_fallthru
          _
      $region12: #{tpu_custom_call.1} parent=5 // pred_fallthru
        _
      %p235 = scmp.lt.s32.totalorder %s16, 2
      // Predicated region
      $region21: #{tpu_custom_call.1} parent=5 // pred_check
        %p236 = pneg %p235
      $region22: #{tpu_custom_call.1} parent=5 // pred_check_branch
        %238 = sbr.rel (%p236) target = $region24
      $region23: #{tpu_custom_call.1} parent=5 // pred_region
        // Predicated region
        $region25: #{tpu_custom_call.1} parent=23 // pred_check
          %p239 = pneg %p36
        $region26: #{tpu_custom_call.1} parent=23 // pred_check_branch
          %241 = sbr.rel (%p239) target = $region28
        $region27: #{tpu_custom_call.1} parent=23 // pred_region
          %p242 = scmp.lt.s32.totalorder %s16, 1
          %s243 = scalar_select %p242, %s16, 1
          %s244 = smul.addr %s243, 8
          %s245 = smul.addr %s244, 8
          %s246 = scalar_lea.vmem %s0, %s245
        $region28: #{tpu_custom_call.1} parent=23 // pred_fallthru
          _
        // Predicated region
        $region29: #{tpu_custom_call.1} parent=23 // pred_check
          %p247 = pneg %p62
        $region30: #{tpu_custom_call.1} parent=23 // pred_check_branch
          %249 = sbr.rel (%p247) target = $region32
        $region31: #{tpu_custom_call.1} parent=23 // pred_region
          %p250 = scmp.lt.s32.totalorder %s16, 1
          %s251 = scalar_select %p250, %s16, 1
          %s252 = smul.addr %s251, 16
          %s253 = smul.addr %s252, 8
          %s254 = scalar_lea.vmem %s1, %s253
        $region32: #{tpu_custom_call.1} parent=23 // pred_fallthru
          _
        // Predicated region
        $region33: #{tpu_custom_call.1} parent=23 // pred_check
          %p255 = pneg %p88
        $region34: #{tpu_custom_call.1} parent=23 // pred_check_branch
          %257 = sbr.rel (%p255) target = $region36
        $region35: #{tpu_custom_call.1} parent=23 // pred_region
          %p258 = scmp.lt.s32.totalorder %s16, 1
          %s259 = scalar_select %p258, %s16, 1
          %s260 = smul.addr %s259, 16
          %s261 = smul.addr %s260, 4
          %s262 = scalar_lea.vmem %s2, %s261
        $region36: #{tpu_custom_call.1} parent=23 // pred_fallthru
          _
        // Predicated region
        $region37: #{tpu_custom_call.1} parent=23 // pred_check
          %p263 = pneg %p114
        $region38: #{tpu_custom_call.1} parent=23 // pred_check_branch
          %265 = sbr.rel (%p263) target = $region40
        $region39: #{tpu_custom_call.1} parent=23 // pred_region
          %p266 = scmp.lt.s32.totalorder %s16, 1
          %s267 = scalar_select %p266, %s16, 1
          %s268 = smul.addr %s267, 16
          %s269 = smul.addr %s268, 4
          %s270 = scalar_lea.vmem %s3, %s269
        $region40: #{tpu_custom_call.1} parent=23 // pred_fallthru
          _
        // Predicated region
        $region41: #{tpu_custom_call.1} parent=23 // pred_check
          %p271 = pneg %p140
        $region42: #{tpu_custom_call.1} parent=23 // pred_check_branch
          %273 = sbr.rel (%p271) target = $region44
        $region43: #{tpu_custom_call.1} parent=23 // pred_region
          %p274 = scmp.lt.s32.totalorder %s16, 1
          %s275 = scalar_select %p274, %s16, 1
          %s276 = smul.addr %s275, 8
          %s277 = smul.addr %s276, 4
          %s278 = scalar_lea.vmem %s4, %s277
        $region44: #{tpu_custom_call.1} parent=23 // pred_fallthru
          _
      $region24: #{tpu_custom_call.1} parent=5 // pred_fallthru
        _
      %p279 = scmp.le.s32.totalorder 1, %s16
      %p280 = scmp.lt.s32.totalorder %s16, 3
      %p281 = pnand %p279, %p280
      %p282 = pneg %p281
      // Predicated region
      $region45: #{tpu_custom_call.1} parent=5 // pred_check
        _
      $region46: #{tpu_custom_call.1} parent=5 // pred_check_branch
        %284 = sbr.rel (%p281) target = $region48
      $region47: #{tpu_custom_call.1} parent=5 // pred_region
        %s285 = ssub.s32 %s16, 1
        %p286 = scmp.lt.s32.totalorder %s21, 1
        %s287 = scalar_select %p286, %s21, 1
        %s288 = smul.addr %s287, 8
        %s289 = smul.addr %s288, 8
        %s290 = scalar_lea.vmem %s0, %s289
        %p291 = pneg %p42
        %p292 = pneg %p39
        %p293 = scmp.lt.s32.totalorder %s21, 1
        %s294 = scalar_select %p293, %s21, 1
        %s295 = smul.addr %s294, 16
        %s296 = smul.addr %s295, 8
        %s297 = scalar_lea.vmem %s1, %s296
        %p298 = pneg %p68
        %p299 = pneg %p65
        %p300 = scmp.lt.s32.totalorder %s21, 1
        %s301 = scalar_select %p300, %s21, 1
        %s302 = smul.addr %s301, 16
        %s303 = smul.addr %s302, 4
        %s304 = scalar_lea.vmem %s2, %s303
        %p305 = pneg %p94
        %p306 = pneg %p91
        %p307 = scmp.lt.s32.totalorder %s21, 1
        %s308 = scalar_select %p307, %s21, 1
        %s309 = smul.addr %s308, 16
        %s310 = smul.addr %s309, 4
        %s311 = scalar_lea.vmem %s3, %s310
        %p312 = pneg %p120
        %p313 = pneg %p117
        %p314 = scmp.lt.s32.totalorder %s21, 1
        %s315 = scalar_select %p314, %s21, 1
        %s316 = smul.addr %s315, 8
        %s317 = smul.addr %s316, 4
        %s318 = scalar_lea.vmem %s4, %s317
        %p319 = pneg %p146
        %p320 = pneg %p143
        %p321 = pneg %p167
        %p322 = pneg %p164
        %p323 = pneg %p188
        %p324 = pneg %p185
        %p325 = pneg %p214
        %p326 = pneg %p211
        %s327 = sand.u32 %s201, 1
        %s328 = scalar_lea.sflag [#allocation3], %s327
        %s329 = sand.u32 %s201, 1
        %s330 = smul.addr %s329, 16
        %s331 = scalar_lea.vmem [#allocation2], %s330
        %p332 = scmp.lt.s32.totalorder %s21, 1
        %s333 = scalar_select %p332, %s21, 1
        %s334 = smul.addr %s333, 8
        %s335 = smul.addr %s334, 8
        %s336 = scalar_lea.vmem %s0, %s335
        %p337 = scmp.lt.s32.totalorder %s21, 1
        %s338 = scalar_select %p337, %s21, 1
        %s339 = smul.addr %s338, 16
        %s340 = smul.addr %s339, 8
        %s341 = scalar_lea.vmem %s1, %s340
        %p342 = scmp.lt.s32.totalorder %s21, 1
        %s343 = scalar_select %p342, %s21, 1
        %s344 = smul.addr %s343, 16
        %s345 = smul.addr %s344, 4
        %s346 = scalar_lea.vmem %s2, %s345
        %p347 = scmp.lt.s32.totalorder %s21, 1
        %s348 = scalar_select %p347, %s21, 1
        %s349 = smul.addr %s348, 16
        %s350 = smul.addr %s349, 4
        %s351 = scalar_lea.vmem %s3, %s350
        %p352 = scmp.lt.s32.totalorder %s21, 1
        %s353 = scalar_select %p352, %s21, 1
        %s354 = smul.addr %s353, 8
        %s355 = smul.addr %s354, 4
        %s356 = scalar_lea.vmem %s4, %s355
        %v357 = vld [vmem:[%s336] sm:$0xff]
        %v358 = vld [vmem:[%s336 + $0x8] sm:$0xff]
        %v359 = vld [vmem:[%s336 + $0x10] sm:$0xff]
        %v360 = vld [vmem:[%s336 + $0x18] sm:$0xff]
        %v361 = vld [vmem:[%s336 + $0x20] sm:$0xff]
        %v362 = vld [vmem:[%s336 + $0x28] sm:$0xff]
        %v363 = vld [vmem:[%s336 + $0x30] sm:$0xff]
        %v364 = vld [vmem:[%s336 + $0x38] sm:$0xff]
        %v365 = vld [vmem:[%s341] sm:$0xff]
        %v366 = vld [vmem:[%s341 + $0x8] sm:$0xff]
        %v367 = vld [vmem:[%s341 + $0x10] sm:$0xff]
        %v368 = vld [vmem:[%s341 + $0x18] sm:$0xff]
        %v369 = vld [vmem:[%s341 + $0x20] sm:$0xff]
        %v370 = vld [vmem:[%s341 + $0x28] sm:$0xff]
        %v371 = vld [vmem:[%s341 + $0x30] sm:$0xff]
        %v372 = vld [vmem:[%s341 + $0x38] sm:$0xff]
        %v373 = vld [vmem:[%s341 + $0x40] sm:$0xff]
        %v374 = vld [vmem:[%s341 + $0x48] sm:$0xff]
        %v375 = vld [vmem:[%s341 + $0x50] sm:$0xff]
        %v376 = vld [vmem:[%s341 + $0x58] sm:$0xff]
        %v377 = vld [vmem:[%s341 + $0x60] sm:$0xff]
        %v378 = vld [vmem:[%s341 + $0x68] sm:$0xff]
        %v379 = vld [vmem:[%s341 + $0x70] sm:$0xff]
        %v380 = vld [vmem:[%s341 + $0x78] sm:$0xff]
        %v381 = vld [vmem:[%s346] sm:$0xf]
        %v382 = vld [vmem:[%s346 + $0x4] sm:$0xf]
        %v383 = vld [vmem:[%s346 + $0x8] sm:$0xf]
        %v384 = vld [vmem:[%s346 + $0xc] sm:$0xf]
        %v385 = vld [vmem:[%s346 + $0x10] sm:$0xf]
        %v386 = vld [vmem:[%s346 + $0x14] sm:$0xf]
        %v387 = vld [vmem:[%s346 + $0x18] sm:$0xf]
        %v388 = vld [vmem:[%s346 + $0x1c] sm:$0xf]
        %v389 = vld [vmem:[%s346 + $0x20] sm:$0xf]
        %v390 = vld [vmem:[%s346 + $0x24] sm:$0xf]
        %v391 = vld [vmem:[%s346 + $0x28] sm:$0xf]
        %v392 = vld [vmem:[%s346 + $0x2c] sm:$0xf]
        %v393 = vld [vmem:[%s346 + $0x30] sm:$0xf]
        %v394 = vld [vmem:[%s346 + $0x34] sm:$0xf]
        %v395 = vld [vmem:[%s346 + $0x38] sm:$0xf]
        %v396 = vld [vmem:[%s346 + $0x3c] sm:$0xf]
        %v397 = vunpack.c.l.bf16 %v381
        %v398 = vunpack.c.l.bf16 %v382
        %v399 = vunpack.c.l.bf16 %v383
        %v400 = vunpack.c.l.bf16 %v384
        %v401 = vunpack.c.l.bf16 %v385
        %v402 = vunpack.c.l.bf16 %v386
        %v403 = vunpack.c.l.bf16 %v387
        %v404 = vunpack.c.l.bf16 %v388
        %v405 = vunpack.c.l.bf16 %v389
        %v406 = vunpack.c.l.bf16 %v390
        %v407 = vunpack.c.l.bf16 %v391
        %v408 = vunpack.c.l.bf16 %v392
        %v409 = vunpack.c.l.bf16 %v393
        %v410 = vunpack.c.l.bf16 %v394
        %v411 = vunpack.c.l.bf16 %v395
        %v412 = vunpack.c.l.bf16 %v396
        %v413 = vld [vmem:[%s351] sm:$0xf]
        %v414 = vld [vmem:[%s351 + $0x4] sm:$0xf]
        %v415 = vld [vmem:[%s351 + $0x8] sm:$0xf]
        %v416 = vld [vmem:[%s351 + $0xc] sm:$0xf]
        %v417 = vld [vmem:[%s351 + $0x10] sm:$0xf]
        %v418 = vld [vmem:[%s351 + $0x14] sm:$0xf]
        %v419 = vld [vmem:[%s351 + $0x18] sm:$0xf]
        %v420 = vld [vmem:[%s351 + $0x1c] sm:$0xf]
        %v421 = vld [vmem:[%s351 + $0x20] sm:$0xf]
        %v422 = vld [vmem:[%s351 + $0x24] sm:$0xf]
        %v423 = vld [vmem:[%s351 + $0x28] sm:$0xf]
        %v424 = vld [vmem:[%s351 + $0x2c] sm:$0xf]
        %v425 = vld [vmem:[%s351 + $0x30] sm:$0xf]
        %v426 = vld [vmem:[%s351 + $0x34] sm:$0xf]
        %v427 = vld [vmem:[%s351 + $0x38] sm:$0xf]
        %v428 = vld [vmem:[%s351 + $0x3c] sm:$0xf]
        %v429 = vunpack.c.l.bf16 %v413
        %v430 = vunpack.c.l.bf16 %v414
        %v431 = vunpack.c.l.bf16 %v415
        %v432 = vunpack.c.l.bf16 %v416
        %v433 = vunpack.c.l.bf16 %v417
        %v434 = vunpack.c.l.bf16 %v418
        %v435 = vunpack.c.l.bf16 %v419
        %v436 = vunpack.c.l.bf16 %v420
        %v437 = vunpack.c.l.bf16 %v421
        %v438 = vunpack.c.l.bf16 %v422
        %v439 = vunpack.c.l.bf16 %v423
        %v440 = vunpack.c.l.bf16 %v424
        %v441 = vunpack.c.l.bf16 %v425
        %v442 = vunpack.c.l.bf16 %v426
        %v443 = vunpack.c.l.bf16 %v427
        %v444 = vunpack.c.l.bf16 %v428
        %v445 = vld [vmem:[%s356] sm:$0xf]
        %v446 = vld [vmem:[%s356 + $0x4] sm:$0xf]
        %v447 = vld [vmem:[%s356 + $0x8] sm:$0xf]
        %v448 = vld [vmem:[%s356 + $0xc] sm:$0xf]
        %v449 = vld [vmem:[%s356 + $0x10] sm:$0xf]
        %v450 = vld [vmem:[%s356 + $0x14] sm:$0xf]
        %v451 = vld [vmem:[%s356 + $0x18] sm:$0xf]
        %v452 = vld [vmem:[%s356 + $0x1c] sm:$0xf]
        %v453 = vunpack.c.l.bf16 %v445
        %v454 = vunpack.c.l.bf16 %v446
        %v455 = vunpack.c.l.bf16 %v447
        %v456 = vunpack.c.l.bf16 %v448
        %v457 = vunpack.c.l.bf16 %v449
        %v458 = vunpack.c.l.bf16 %v450
        %v459 = vunpack.c.l.bf16 %v451
        %v460 = vunpack.c.l.bf16 %v452
        %v461 = vld [vmem:[%s5] sm:$0xff]
        %v462 = vld [vmem:[%s5 + $0x10] sm:$0xff]
        %v463 = vld [vmem:[%s5 + $0x20] sm:$0xff]
        %v464 = vld [vmem:[%s5 + $0x30] sm:$0xff]
        %v465 = vld [vmem:[%s5 + $0x8] sm:$0xff]
        %v466 = vld [vmem:[%s5 + $0x18] sm:$0xff]
        %v467 = vld [vmem:[%s5 + $0x28] sm:$0xff]
        %v468 = vld [vmem:[%s5 + $0x38] sm:$0xff]
        %v469 = vld [vmem:[%s6] sm:$0x1]
        %v471 = vperm.slane %v469, 0
        %vm473 = vcmask 261120
        %v475 = vsel %vm473, %v357, 0
        %v478 = vsel %vm473, %v358, 0
        %v481 = vsel %vm473, %v359, 0
        %v484 = vsel %vm473, %v360, 0
        %v487 = vsel %vm473, %v361, 0
        %v490 = vsel %vm473, %v362, 0
        %v493 = vsel %vm473, %v363, 0
        %v496 = vsel %vm473, %v364, 0
        %498 = vmatpush.msra.mxu0 0.0
        %499 = vmatpush.msra.mxu0 0.0
        %500 = vmatpush.msra.mxu0 0.0
        %501 = vmatpush.msra.mxu0 0.0
        %502 = vmatpush.msra.mxu0 0.0
        %503 = vmatpush.msra.mxu0 0.0
        %504 = vmatpush.msra.mxu0 0.0
        %505 = vmatpush.msra.mxu0 0.0
        %506 = vmatpush.msra.mxu0 0.0
        %507 = vmatpush.msra.mxu0 0.0
        %508 = vmatpush.msra.mxu0 0.0
        %509 = vmatpush.msra.mxu0 0.0
        %510 = vmatpush.msra.mxu0 %v464
        %511 = vmatpush.msra.mxu0 %v463
        %512 = vmatpush.msra.mxu0 %v462
        %513 = vmatpush.msra.mxu0 %v461
        %514 = vmatmul.f32.gmra.mxu0 %v475
        %v515 = vpop.f32.mrf.mxu0
        %v516 = vadd.f32 %v471, %v515
        %517 = vmatmul.f32.gmra.mxu0 %v478
        %v518 = vpop.f32.mrf.mxu0
        %v519 = vadd.f32 %v471, %v518
        %520 = vmatmul.f32.gmra.mxu0 %v481
        %v521 = vpop.f32.mrf.mxu0
        %v522 = vadd.f32 %v471, %v521
        %523 = vmatmul.f32.gmra.mxu0 %v484
        %v524 = vpop.f32.mrf.mxu0
        %v525 = vadd.f32 %v471, %v524
        %526 = vmatmul.f32.gmra.mxu0 %v487
        %v527 = vpop.f32.mrf.mxu0
        %v528 = vadd.f32 %v471, %v527
        %529 = vmatmul.f32.gmra.mxu0 %v490
        %v530 = vpop.f32.mrf.mxu0
        %v531 = vadd.f32 %v471, %v530
        %532 = vmatmul.f32.gmra.mxu0 %v493
        %v533 = vpop.f32.mrf.mxu0
        %v534 = vadd.f32 %v471, %v533
        %535 = vmatmul.f32.gmra.mxu0 %v496
        %v536 = vpop.f32.mrf.mxu0
        %v537 = vadd.f32 %v471, %v536
        %538 = vdwg.mxu0
        %539 = vxpose.xlu0.b32.start [1/16] %v397, 128
        %540 = vxpose.xlu0.b32.cont [2/16] %v398, 128
        %541 = vxpose.xlu0.b32.cont [3/16] %v399, 128
        %542 = vxpose.xlu0.b32.cont [4/16] %v400, 128
        %543 = vxpose.xlu0.b32.cont [5/16] %v401, 128
        %544 = vxpose.xlu0.b32.cont [6/16] %v402, 128
        %545 = vxpose.xlu0.b32.cont [7/16] %v403, 128
        %546 = vxpose.xlu0.b32.cont [8/16] %v404, 128
        %547 = vxpose.xlu0.b32.cont [9/16] %v405, 128
        %548 = vxpose.xlu0.b32.cont [10/16] %v406, 128
        %549 = vxpose.xlu0.b32.cont [11/16] %v407, 128
        %550 = vxpose.xlu0.b32.cont [12/16] %v408, 128
        %551 = vxpose.xlu0.b32.cont [13/16] %v409, 128
        %552 = vxpose.xlu0.b32.cont [14/16] %v410, 128
        %553 = vxpose.xlu0.b32.cont [15/16] %v411, 128
        %554 = vxpose.xlu0.b32.end [16/16] %v412, 128
        %v555 = vpop.trf.xlu0
        %v556 = vpop.trf.xlu0
        %v557 = vpop.trf.xlu0
        %v558 = vpop.trf.xlu0
        %v559 = vpop.trf.xlu0
        %v560 = vpop.trf.xlu0
        %v561 = vpop.trf.xlu0
        %v562 = vpop.trf.xlu0
        %v563 = vpop.trf.xlu0
        %v564 = vpop.trf.xlu0
        %v565 = vpop.trf.xlu0
        %v566 = vpop.trf.xlu0
        %v567 = vpop.trf.xlu0
        %v568 = vpop.trf.xlu0
        %v569 = vpop.trf.xlu0
        %v570 = vpop.trf.xlu0
        %571 = vmatpush.msra.mxu0 1.0
        %572 = vmatpush.msra.mxu0 1.0
        %573 = vmatpush.msra.mxu0 1.0
        %574 = vmatpush.msra.mxu0 1.0
        %575 = vmatpush.msra.mxu0 1.0
        %576 = vmatpush.msra.mxu0 1.0
        %577 = vmatpush.msra.mxu0 1.0
        %578 = vmatpush.msra.mxu0 1.0
        %579 = vmatpush.msra.mxu0 1.0
        %580 = vmatpush.msra.mxu0 1.0
        %581 = vmatpush.msra.mxu0 1.0
        %582 = vmatpush.msra.mxu0 1.0
        %583 = vmatpush.msra.mxu0 1.0
        %584 = vmatpush.msra.mxu0 1.0
        %585 = vmatpush.msra.mxu0 1.0
        %586 = vmatpush.msra.mxu0 1.0
        %587 = vmatmul.f32.gmra.mxu0 %v555
        %v588 = vpop.f32.mrf.mxu0
        %v589 = vadd.f32 1.0, %v588
        %590 = vmatmul.f32.gmra.mxu0 %v556
        %v591 = vpop.f32.mrf.mxu0
        %v592 = vadd.f32 1.0, %v591
        %593 = vmatmul.f32.gmra.mxu0 %v557
        %v594 = vpop.f32.mrf.mxu0
        %v595 = vadd.f32 1.0, %v594
        %596 = vmatmul.f32.gmra.mxu0 %v558
        %v597 = vpop.f32.mrf.mxu0
        %v598 = vadd.f32 1.0, %v597
        %599 = vmatmul.f32.gmra.mxu0 %v559
        %v600 = vpop.f32.mrf.mxu0
        %v601 = vadd.f32 1.0, %v600
        %602 = vmatmul.f32.gmra.mxu0 %v560
        %v603 = vpop.f32.mrf.mxu0
        %v604 = vadd.f32 1.0, %v603
        %605 = vmatmul.f32.gmra.mxu0 %v561
        %v606 = vpop.f32.mrf.mxu0
        %v607 = vadd.f32 1.0, %v606
        %608 = vmatmul.f32.gmra.mxu0 %v562
        %v609 = vpop.f32.mrf.mxu0
        %v610 = vadd.f32 1.0, %v609
        %611 = vdwg.mxu0
        %v612 = vrsqrt.pop %v589
        %v613 = vmul.f32 %v612, %v589
        %v614 = vmul.f32 %v613, %v612
        %v615 = vmul.f32 0.5, %v614
        %v616 = vsub.f32 1.5, %v615
        %v617 = vmul.f32 %v612, %v616
        %vm618 = vweird.f32 %v589
        %vm619 = vweird.f32 %v612
        %vm620 = vmor %vm618, %vm619
        %v621 = vsel %vm620, %v612, %v617
        %v622 = vrsqrt.pop %v592
        %v623 = vmul.f32 %v622, %v592
        %v624 = vmul.f32 %v623, %v622
        %v625 = vmul.f32 0.5, %v624
        %v626 = vsub.f32 1.5, %v625
        %v627 = vmul.f32 %v622, %v626
        %vm628 = vweird.f32 %v592
        %vm629 = vweird.f32 %v622
        %vm630 = vmor %vm628, %vm629
        %v631 = vsel %vm630, %v622, %v627
        %v632 = vrsqrt.pop %v595
        %v633 = vmul.f32 %v632, %v595
        %v634 = vmul.f32 %v633, %v632
        %v635 = vmul.f32 0.5, %v634
        %v636 = vsub.f32 1.5, %v635
        %v637 = vmul.f32 %v632, %v636
        %vm638 = vweird.f32 %v595
        %vm639 = vweird.f32 %v632
        %vm640 = vmor %vm638, %vm639
        %v641 = vsel %vm640, %v632, %v637
        %v642 = vrsqrt.pop %v598
        %v643 = vmul.f32 %v642, %v598
        %v644 = vmul.f32 %v643, %v642
        %v645 = vmul.f32 0.5, %v644
        %v646 = vsub.f32 1.5, %v645
        %v647 = vmul.f32 %v642, %v646
        %vm648 = vweird.f32 %v598
        %vm649 = vweird.f32 %v642
        %vm650 = vmor %vm648, %vm649
        %v651 = vsel %vm650, %v642, %v647
        %v652 = vrsqrt.pop %v601
        %v653 = vmul.f32 %v652, %v601
        %v654 = vmul.f32 %v653, %v652
        %v655 = vmul.f32 0.5, %v654
        %v656 = vsub.f32 1.5, %v655
        %v657 = vmul.f32 %v652, %v656
        %vm658 = vweird.f32 %v601
        %vm659 = vweird.f32 %v652
        %vm660 = vmor %vm658, %vm659
        %v661 = vsel %vm660, %v652, %v657
        %v662 = vrsqrt.pop %v604
        %v663 = vmul.f32 %v662, %v604
        %v664 = vmul.f32 %v663, %v662
        %v665 = vmul.f32 0.5, %v664
        %v666 = vsub.f32 1.5, %v665
        %v667 = vmul.f32 %v662, %v666
        %vm668 = vweird.f32 %v604
        %vm669 = vweird.f32 %v662
        %vm670 = vmor %vm668, %vm669
        %v671 = vsel %vm670, %v662, %v667
        %v672 = vrsqrt.pop %v607
        %v673 = vmul.f32 %v672, %v607
        %v674 = vmul.f32 %v673, %v672
        %v675 = vmul.f32 0.5, %v674
        %v676 = vsub.f32 1.5, %v675
        %v677 = vmul.f32 %v672, %v676
        %vm678 = vweird.f32 %v607
        %vm679 = vweird.f32 %v672
        %vm680 = vmor %vm678, %vm679
        %v681 = vsel %vm680, %v672, %v677
        %v682 = vrsqrt.pop %v610
        %v683 = vmul.f32 %v682, %v610
        %v684 = vmul.f32 %v683, %v682
        %v685 = vmul.f32 0.5, %v684
        %v686 = vsub.f32 1.5, %v685
        %v687 = vmul.f32 %v682, %v686
        %vm688 = vweird.f32 %v610
        %vm689 = vweird.f32 %v682
        %vm690 = vmor %vm688, %vm689
        %v691 = vsel %vm690, %v682, %v687
        %v692 = vmul.f32 %v621, %v621
        %v693 = vmul.f32 %v631, %v631
        %v694 = vmul.f32 %v641, %v641
        %v695 = vmul.f32 %v651, %v651
        %v696 = vmul.f32 %v661, %v661
        %v697 = vmul.f32 %v671, %v671
        %v698 = vmul.f32 %v681, %v681
        %v699 = vmul.f32 %v691, %v691
        %vm700 = vcmask 523264
        %v702 = vsel %vm700, %v397, 0
        %v705 = vsel %vm700, %v398, 0
        %v708 = vsel %vm700, %v399, 0
        %v711 = vsel %vm700, %v400, 0
        %v714 = vsel %vm700, %v401, 0
        %v717 = vsel %vm700, %v402, 0
        %v720 = vsel %vm700, %v403, 0
        %v723 = vsel %vm700, %v404, 0
        %v726 = vsel %vm700, %v405, 0
        %v729 = vsel %vm700, %v406, 0
        %v732 = vsel %vm700, %v407, 0
        %v735 = vsel %vm700, %v408, 0
        %v738 = vsel %vm700, %v409, 0
        %v741 = vsel %vm700, %v410, 0
        %v744 = vsel %vm700, %v411, 0
        %v747 = vsel %vm700, %v412, 0
        %749 = vmatpush.msra.mxu0 0.0
        %750 = vmatpush.msra.mxu0 0.0
        %751 = vmatpush.msra.mxu0 0.0
        %752 = vmatpush.msra.mxu0 0.0
        %753 = vmatpush.msra.mxu0 0.0
        %754 = vmatpush.msra.mxu0 0.0
        %755 = vmatpush.msra.mxu0 0.0
        %756 = vmatpush.msra.mxu0 0.0
        %757 = vmatpush.msra.mxu0 %v691
        %758 = vmatpush.msra.mxu0 %v681
        %759 = vmatpush.msra.mxu0 %v671
        %760 = vmatpush.msra.mxu0 %v661
        %761 = vmatpush.msra.mxu0 %v651
        %762 = vmatpush.msra.mxu0 %v641
        %763 = vmatpush.msra.mxu0 %v631
        %764 = vmatpush.msra.mxu0 %v621
        %765 = vmatmul.f32.gmra.mxu0 %v702
        %v766 = vpop.f32.mrf.mxu0
        %v767 = vadd.f32 0.0, %v766
        %768 = vmatmul.f32.gmra.mxu0 %v705
        %v769 = vpop.f32.mrf.mxu0
        %v770 = vadd.f32 0.0, %v769
        %771 = vmatmul.f32.gmra.mxu0 %v708
        %v772 = vpop.f32.mrf.mxu0
        %v773 = vadd.f32 0.0, %v772
        %774 = vmatmul.f32.gmra.mxu0 %v711
        %v775 = vpop.f32.mrf.mxu0
        %v776 = vadd.f32 0.0, %v775
        %777 = vmatmul.f32.gmra.mxu0 %v714
        %v778 = vpop.f32.mrf.mxu0
        %v779 = vadd.f32 0.0, %v778
        %780 = vmatmul.f32.gmra.mxu0 %v717
        %v781 = vpop.f32.mrf.mxu0
        %v782 = vadd.f32 0.0, %v781
        %783 = vmatmul.f32.gmra.mxu0 %v720
        %v784 = vpop.f32.mrf.mxu0
        %v785 = vadd.f32 0.0, %v784
        %786 = vmatmul.f32.gmra.mxu0 %v723
        %v787 = vpop.f32.mrf.mxu0
        %v788 = vadd.f32 0.0, %v787
        %789 = vmatmul.f32.gmra.mxu0 %v726
        %v790 = vpop.f32.mrf.mxu0
        %v791 = vadd.f32 0.0, %v790
        %792 = vmatmul.f32.gmra.mxu0 %v729
        %v793 = vpop.f32.mrf.mxu0
        %v794 = vadd.f32 0.0, %v793
        %795 = vmatmul.f32.gmra.mxu0 %v732
        %v796 = vpop.f32.mrf.mxu0
        %v797 = vadd.f32 0.0, %v796
        %798 = vmatmul.f32.gmra.mxu0 %v735
        %v799 = vpop.f32.mrf.mxu0
        %v800 = vadd.f32 0.0, %v799
        %801 = vmatmul.f32.gmra.mxu0 %v738
        %v802 = vpop.f32.mrf.mxu0
        %v803 = vadd.f32 0.0, %v802
        %804 = vmatmul.f32.gmra.mxu0 %v741
        %v805 = vpop.f32.mrf.mxu0
        %v806 = vadd.f32 0.0, %v805
        %807 = vmatmul.f32.gmra.mxu0 %v744
        %v808 = vpop.f32.mrf.mxu0
        %v809 = vadd.f32 0.0, %v808
        %810 = vmatmul.f32.gmra.mxu0 %v747
        %v811 = vpop.f32.mrf.mxu0
        %v812 = vadd.f32 0.0, %v811
        %813 = vdwg.mxu0
        %v815 = vsel %vm700, %v429, 0
        %v818 = vsel %vm700, %v430, 0
        %v821 = vsel %vm700, %v431, 0
        %v824 = vsel %vm700, %v432, 0
        %v827 = vsel %vm700, %v433, 0
        %v830 = vsel %vm700, %v434, 0
        %v833 = vsel %vm700, %v435, 0
        %v836 = vsel %vm700, %v436, 0
        %v839 = vsel %vm700, %v437, 0
        %v842 = vsel %vm700, %v438, 0
        %v845 = vsel %vm700, %v439, 0
        %v848 = vsel %vm700, %v440, 0
        %v851 = vsel %vm700, %v441, 0
        %v854 = vsel %vm700, %v442, 0
        %v857 = vsel %vm700, %v443, 0
        %v860 = vsel %vm700, %v444, 0
        %862 = vmatpush.msra.mxu0 0.0
        %863 = vmatpush.msra.mxu0 0.0
        %864 = vmatpush.msra.mxu0 0.0
        %865 = vmatpush.msra.mxu0 0.0
        %866 = vmatpush.msra.mxu0 0.0
        %867 = vmatpush.msra.mxu0 0.0
        %868 = vmatpush.msra.mxu0 0.0
        %869 = vmatpush.msra.mxu0 0.0
        %870 = vmatpush.msra.mxu0 %v691
        %871 = vmatpush.msra.mxu0 %v681
        %872 = vmatpush.msra.mxu0 %v671
        %873 = vmatpush.msra.mxu0 %v661
        %874 = vmatpush.msra.mxu0 %v651
        %875 = vmatpush.msra.mxu0 %v641
        %876 = vmatpush.msra.mxu0 %v631
        %877 = vmatpush.msra.mxu0 %v621
        %878 = vmatmul.f32.gmra.mxu0 %v815
        %v879 = vpop.f32.mrf.mxu0
        %v880 = vadd.f32 0.0, %v879
        %881 = vmatmul.f32.gmra.mxu0 %v818
        %v882 = vpop.f32.mrf.mxu0
        %v883 = vadd.f32 0.0, %v882
        %884 = vmatmul.f32.gmra.mxu0 %v821
        %v885 = vpop.f32.mrf.mxu0
        %v886 = vadd.f32 0.0, %v885
        %887 = vmatmul.f32.gmra.mxu0 %v824
        %v888 = vpop.f32.mrf.mxu0
        %v889 = vadd.f32 0.0, %v888
        %890 = vmatmul.f32.gmra.mxu0 %v827
        %v891 = vpop.f32.mrf.mxu0
        %v892 = vadd.f32 0.0, %v891
        %893 = vmatmul.f32.gmra.mxu0 %v830
        %v894 = vpop.f32.mrf.mxu0
        %v895 = vadd.f32 0.0, %v894
        %896 = vmatmul.f32.gmra.mxu0 %v833
        %v897 = vpop.f32.mrf.mxu0
        %v898 = vadd.f32 0.0, %v897
        %899 = vmatmul.f32.gmra.mxu0 %v836
        %v900 = vpop.f32.mrf.mxu0
        %v901 = vadd.f32 0.0, %v900
        %902 = vmatmul.f32.gmra.mxu0 %v839
        %v903 = vpop.f32.mrf.mxu0
        %v904 = vadd.f32 0.0, %v903
        %905 = vmatmul.f32.gmra.mxu0 %v842
        %v906 = vpop.f32.mrf.mxu0
        %v907 = vadd.f32 0.0, %v906
        %908 = vmatmul.f32.gmra.mxu0 %v845
        %v909 = vpop.f32.mrf.mxu0
        %v910 = vadd.f32 0.0, %v909
        %911 = vmatmul.f32.gmra.mxu0 %v848
        %v912 = vpop.f32.mrf.mxu0
        %v913 = vadd.f32 0.0, %v912
        %914 = vmatmul.f32.gmra.mxu0 %v851
        %v915 = vpop.f32.mrf.mxu0
        %v916 = vadd.f32 0.0, %v915
        %917 = vmatmul.f32.gmra.mxu0 %v854
        %v918 = vpop.f32.mrf.mxu0
        %v919 = vadd.f32 0.0, %v918
        %920 = vmatmul.f32.gmra.mxu0 %v857
        %v921 = vpop.f32.mrf.mxu0
        %v922 = vadd.f32 0.0, %v921
        %923 = vmatmul.f32.gmra.mxu0 %v860
        %v924 = vpop.f32.mrf.mxu0
        %v925 = vadd.f32 0.0, %v924
        %926 = vdwg.mxu0
        %v927 = vmul.f32 %v767, %v880
        %v928 = vmul.f32 %v770, %v883
        %v929 = vmul.f32 %v773, %v886
        %v930 = vmul.f32 %v776, %v889
        %v931 = vmul.f32 %v779, %v892
        %v932 = vmul.f32 %v782, %v895
        %v933 = vmul.f32 %v785, %v898
        %v934 = vmul.f32 %v788, %v901
        %v935 = vmul.f32 %v791, %v904
        %v936 = vmul.f32 %v794, %v907
        %v937 = vmul.f32 %v797, %v910
        %v938 = vmul.f32 %v800, %v913
        %v939 = vmul.f32 %v803, %v916
        %v940 = vmul.f32 %v806, %v919
        %v941 = vmul.f32 %v809, %v922
        %v942 = vmul.f32 %v812, %v925
        %943 = vmatpush.msra.mxu0 0.0
        %944 = vmatpush.msra.mxu0 0.0
        %945 = vmatpush.msra.mxu0 0.0
        %946 = vmatpush.msra.mxu0 0.0
        %947 = vmatpush.msra.mxu0 0.0
        %948 = vmatpush.msra.mxu0 0.0
        %949 = vmatpush.msra.mxu0 0.0
        %950 = vmatpush.msra.mxu0 0.0
        %951 = vmatpush.msra.mxu0 %v537
        %952 = vmatpush.msra.mxu0 %v534
        %953 = vmatpush.msra.mxu0 %v531
        %954 = vmatpush.msra.mxu0 %v528
        %955 = vmatpush.msra.mxu0 %v525
        %956 = vmatpush.msra.mxu0 %v522
        %957 = vmatpush.msra.mxu0 %v519
        %958 = vmatpush.msra.mxu0 %v516
        %959 = vmatmul.f32.gmra.mxu0 %v702
        %v960 = vpop.f32.mrf.mxu0
        %v961 = vadd.f32 %v365, %v960
        %962 = vmatmul.f32.gmra.mxu0 %v705
        %v963 = vpop.f32.mrf.mxu0
        %v964 = vadd.f32 %v366, %v963
        %965 = vmatmul.f32.gmra.mxu0 %v708
        %v966 = vpop.f32.mrf.mxu0
        %v967 = vadd.f32 %v367, %v966
        %968 = vmatmul.f32.gmra.mxu0 %v711
        %v969 = vpop.f32.mrf.mxu0
        %v970 = vadd.f32 %v368, %v969
        %971 = vmatmul.f32.gmra.mxu0 %v714
        %v972 = vpop.f32.mrf.mxu0
        %v973 = vadd.f32 %v369, %v972
        %974 = vmatmul.f32.gmra.mxu0 %v717
        %v975 = vpop.f32.mrf.mxu0
        %v976 = vadd.f32 %v370, %v975
        %977 = vmatmul.f32.gmra.mxu0 %v720
        %v978 = vpop.f32.mrf.mxu0
        %v979 = vadd.f32 %v371, %v978
        %980 = vmatmul.f32.gmra.mxu0 %v723
        %v981 = vpop.f32.mrf.mxu0
        %v982 = vadd.f32 %v372, %v981
        %983 = vmatmul.f32.gmra.mxu0 %v726
        %v984 = vpop.f32.mrf.mxu0
        %v985 = vadd.f32 %v373, %v984
        %986 = vmatmul.f32.gmra.mxu0 %v729
        %v987 = vpop.f32.mrf.mxu0
        %v988 = vadd.f32 %v374, %v987
        %989 = vmatmul.f32.gmra.mxu0 %v732
        %v990 = vpop.f32.mrf.mxu0
        %v991 = vadd.f32 %v375, %v990
        %992 = vmatmul.f32.gmra.mxu0 %v735
        %v993 = vpop.f32.mrf.mxu0
        %v994 = vadd.f32 %v376, %v993
        %995 = vmatmul.f32.gmra.mxu0 %v738
        %v996 = vpop.f32.mrf.mxu0
        %v997 = vadd.f32 %v377, %v996
        %998 = vmatmul.f32.gmra.mxu0 %v741
        %v999 = vpop.f32.mrf.mxu0
        %v1000 = vadd.f32 %v378, %v999
        %1001 = vmatmul.f32.gmra.mxu0 %v744
        %v1002 = vpop.f32.mrf.mxu0
        %v1003 = vadd.f32 %v379, %v1002
        %1004 = vmatmul.f32.gmra.mxu0 %v747
        %v1005 = vpop.f32.mrf.mxu0
        %v1006 = vadd.f32 %v380, %v1005
        %1007 = vdwg.mxu0
        %v1008 = vmax.f32 %v961, 0.0
        %v1009 = vmax.f32 %v964, 0.0
        %v1010 = vmax.f32 %v967, 0.0
        %v1011 = vmax.f32 %v970, 0.0
        %v1012 = vmax.f32 %v973, 0.0
        %v1013 = vmax.f32 %v976, 0.0
        %v1014 = vmax.f32 %v979, 0.0
        %v1015 = vmax.f32 %v982, 0.0
        %v1016 = vmax.f32 %v985, 0.0
        %v1017 = vmax.f32 %v988, 0.0
        %v1018 = vmax.f32 %v991, 0.0
        %v1019 = vmax.f32 %v994, 0.0
        %v1020 = vmax.f32 %v997, 0.0
        %v1021 = vmax.f32 %v1000, 0.0
        %v1022 = vmax.f32 %v1003, 0.0
        %v1023 = vmax.f32 %v1006, 0.0
        %1025 = vset.pattern.permute.xlu0 0
        %1026 = vperm.xlu0 %1025, %v927
        %v1027 = vpop.permute.xlu0 %1026
        %1030 = vset.pattern.permute.xlu0 0
        %1031 = vperm.xlu0 %1030, %v928
        %v1032 = vpop.permute.xlu0 %1031
        %1035 = vset.pattern.permute.xlu0 0
        %1036 = vperm.xlu0 %1035, %v929
        %v1037 = vpop.permute.xlu0 %1036
        %1040 = vset.pattern.permute.xlu0 0
        %1041 = vperm.xlu0 %1040, %v930
        %v1042 = vpop.permute.xlu0 %1041
        %1045 = vset.pattern.permute.xlu0 0
        %1046 = vperm.xlu0 %1045, %v931
        %v1047 = vpop.permute.xlu0 %1046
        %1050 = vset.pattern.permute.xlu0 0
        %1051 = vperm.xlu0 %1050, %v932
        %v1052 = vpop.permute.xlu0 %1051
        %1055 = vset.pattern.permute.xlu0 0
        %1056 = vperm.xlu0 %1055, %v933
        %v1057 = vpop.permute.xlu0 %1056
        %1060 = vset.pattern.permute.xlu0 0
        %1061 = vperm.xlu0 %1060, %v934
        %v1062 = vpop.permute.xlu0 %1061
        %1065 = vset.pattern.permute.xlu0 0
        %1066 = vperm.xlu0 %1065, %v935
        %v1067 = vpop.permute.xlu0 %1066
        %1070 = vset.pattern.permute.xlu0 0
        %1071 = vperm.xlu0 %1070, %v936
        %v1072 = vpop.permute.xlu0 %1071
        %1075 = vset.pattern.permute.xlu0 0
        %1076 = vperm.xlu0 %1075, %v937
        %v1077 = vpop.permute.xlu0 %1076
        %1080 = vset.pattern.permute.xlu0 0
        %1081 = vperm.xlu0 %1080, %v938
        %v1082 = vpop.permute.xlu0 %1081
        %1085 = vset.pattern.permute.xlu0 0
        %1086 = vperm.xlu0 %1085, %v939
        %v1087 = vpop.permute.xlu0 %1086
        %1090 = vset.pattern.permute.xlu0 0
        %1091 = vperm.xlu0 %1090, %v940
        %v1092 = vpop.permute.xlu0 %1091
        %1095 = vset.pattern.permute.xlu0 0
        %1096 = vperm.xlu0 %1095, %v941
        %v1097 = vpop.permute.xlu0 %1096
        %1100 = vset.pattern.permute.xlu0 0
        %1101 = vperm.xlu0 %1100, %v942
        %v1102 = vpop.permute.xlu0 %1101
        %v1104 = vmul.f32 %v1027, %v1008
        %v1105 = vmul.f32 %v1032, %v1009
        %v1106 = vmul.f32 %v1037, %v1010
        %v1107 = vmul.f32 %v1042, %v1011
        %v1108 = vmul.f32 %v1047, %v1012
        %v1109 = vmul.f32 %v1052, %v1013
        %v1110 = vmul.f32 %v1057, %v1014
        %v1111 = vmul.f32 %v1062, %v1015
        %v1112 = vmul.f32 %v1067, %v1016
        %v1113 = vmul.f32 %v1072, %v1017
        %v1114 = vmul.f32 %v1077, %v1018
        %v1115 = vmul.f32 %v1082, %v1019
        %v1116 = vmul.f32 %v1087, %v1020
        %v1117 = vmul.f32 %v1092, %v1021
        %v1118 = vmul.f32 %v1097, %v1022
        %v1119 = vmul.f32 %v1102, %v1023
        %1120 = vrot.lane.b32.xlu0 %v471, 96
        %v1121 = vpop.permute.xlu0 %1120
        %v1123 = vadd.f32 %v516, %v1121
        %v1124 = vadd.f32 %v519, %v1121
        %v1125 = vadd.f32 %v522, %v1121
        %v1126 = vadd.f32 %v525, %v1121
        %v1127 = vadd.f32 %v528, %v1121
        %v1128 = vadd.f32 %v531, %v1121
        %v1129 = vadd.f32 %v534, %v1121
        %v1130 = vadd.f32 %v537, %v1121
        %v1131 = vmax.f32 %v1123, 0.0
        %v1132 = vmax.f32 %v1124, 0.0
        %v1133 = vmax.f32 %v1125, 0.0
        %v1134 = vmax.f32 %v1126, 0.0
        %v1135 = vmax.f32 %v1127, 0.0
        %v1136 = vmax.f32 %v1128, 0.0
        %v1137 = vmax.f32 %v1129, 0.0
        %v1138 = vmax.f32 %v1130, 0.0
        %1140 = vset.pattern.permute.xlu0 0
        %1141 = vperm.xlu0 %1140, %v692
        %v1142 = vpop.permute.xlu0 %1141
        %1145 = vset.pattern.permute.xlu0 0
        %1146 = vperm.xlu0 %1145, %v693
        %v1147 = vpop.permute.xlu0 %1146
        %1150 = vset.pattern.permute.xlu0 0
        %1151 = vperm.xlu0 %1150, %v694
        %v1152 = vpop.permute.xlu0 %1151
        %1155 = vset.pattern.permute.xlu0 0
        %1156 = vperm.xlu0 %1155, %v695
        %v1157 = vpop.permute.xlu0 %1156
        %1160 = vset.pattern.permute.xlu0 0
        %1161 = vperm.xlu0 %1160, %v696
        %v1162 = vpop.permute.xlu0 %1161
        %1165 = vset.pattern.permute.xlu0 0
        %1166 = vperm.xlu0 %1165, %v697
        %v1167 = vpop.permute.xlu0 %1166
        %1170 = vset.pattern.permute.xlu0 0
        %1171 = vperm.xlu0 %1170, %v698
        %v1172 = vpop.permute.xlu0 %1171
        %1175 = vset.pattern.permute.xlu0 0
        %1176 = vperm.xlu0 %1175, %v699
        %v1177 = vpop.permute.xlu0 %1176
        %v1179 = vmul.f32 %v1131, %v1142
        %v1180 = vmul.f32 %v1132, %v1147
        %v1181 = vmul.f32 %v1133, %v1152
        %v1182 = vmul.f32 %v1134, %v1157
        %v1183 = vmul.f32 %v1135, %v1162
        %v1184 = vmul.f32 %v1136, %v1167
        %v1185 = vmul.f32 %v1137, %v1172
        %v1186 = vmul.f32 %v1138, %v1177
        %1187 = vxpose.xlu0.b32.start [1/16] %v429, 128
        %1188 = vxpose.xlu0.b32.cont [2/16] %v430, 128
        %1189 = vxpose.xlu0.b32.cont [3/16] %v431, 128
        %1190 = vxpose.xlu0.b32.cont [4/16] %v432, 128
        %1191 = vxpose.xlu0.b32.cont [5/16] %v433, 128
        %1192 = vxpose.xlu0.b32.cont [6/16] %v434, 128
        %1193 = vxpose.xlu0.b32.cont [7/16] %v435, 128
        %1194 = vxpose.xlu0.b32.cont [8/16] %v436, 128
        %1195 = vxpose.xlu0.b32.cont [9/16] %v437, 128
        %1196 = vxpose.xlu0.b32.cont [10/16] %v438, 128
        %1197 = vxpose.xlu0.b32.cont [11/16] %v439, 128
        %1198 = vxpose.xlu0.b32.cont [12/16] %v440, 128
        %1199 = vxpose.xlu0.b32.cont [13/16] %v441, 128
        %1200 = vxpose.xlu0.b32.cont [14/16] %v442, 128
        %1201 = vxpose.xlu0.b32.cont [15/16] %v443, 128
        %1202 = vxpose.xlu0.b32.end [16/16] %v444, 128
        %v1203 = vpop.trf.xlu0
        %v1204 = vpop.trf.xlu0
        %v1205 = vpop.trf.xlu0
        %v1206 = vpop.trf.xlu0
        %v1207 = vpop.trf.xlu0
        %v1208 = vpop.trf.xlu0
        %v1209 = vpop.trf.xlu0
        %v1210 = vpop.trf.xlu0
        %v1211 = vpop.trf.xlu0
        %v1212 = vpop.trf.xlu0
        %v1213 = vpop.trf.xlu0
        %v1214 = vpop.trf.xlu0
        %v1215 = vpop.trf.xlu0
        %v1216 = vpop.trf.xlu0
        %v1217 = vpop.trf.xlu0
        %v1218 = vpop.trf.xlu0
        %1219 = vmatpush.msra.mxu0 %v1119
        %1220 = vmatpush.msra.mxu0 %v1118
        %1221 = vmatpush.msra.mxu0 %v1117
        %1222 = vmatpush.msra.mxu0 %v1116
        %1223 = vmatpush.msra.mxu0 %v1115
        %1224 = vmatpush.msra.mxu0 %v1114
        %1225 = vmatpush.msra.mxu0 %v1113
        %1226 = vmatpush.msra.mxu0 %v1112
        %1227 = vmatpush.msra.mxu0 %v1111
        %1228 = vmatpush.msra.mxu0 %v1110
        %1229 = vmatpush.msra.mxu0 %v1109
        %1230 = vmatpush.msra.mxu0 %v1108
        %1231 = vmatpush.msra.mxu0 %v1107
        %1232 = vmatpush.msra.mxu0 %v1106
        %1233 = vmatpush.msra.mxu0 %v1105
        %1234 = vmatpush.msra.mxu0 %v1104
        %1235 = vmatmul.f32.gmra.mxu0 %v1203
        %v1236 = vpop.f32.mrf.mxu0
        %v1237 = vadd.f32 %v1179, %v1236
        %1238 = vmatmul.f32.gmra.mxu0 %v1204
        %v1239 = vpop.f32.mrf.mxu0
        %v1240 = vadd.f32 %v1180, %v1239
        %1241 = vmatmul.f32.gmra.mxu0 %v1205
        %v1242 = vpop.f32.mrf.mxu0
        %v1243 = vadd.f32 %v1181, %v1242
        %1244 = vmatmul.f32.gmra.mxu0 %v1206
        %v1245 = vpop.f32.mrf.mxu0
        %v1246 = vadd.f32 %v1182, %v1245
        %1247 = vmatmul.f32.gmra.mxu0 %v1207
        %v1248 = vpop.f32.mrf.mxu0
        %v1249 = vadd.f32 %v1183, %v1248
        %1250 = vmatmul.f32.gmra.mxu0 %v1208
        %v1251 = vpop.f32.mrf.mxu0
        %v1252 = vadd.f32 %v1184, %v1251
        %1253 = vmatmul.f32.gmra.mxu0 %v1209
        %v1254 = vpop.f32.mrf.mxu0
        %v1255 = vadd.f32 %v1185, %v1254
        %1256 = vmatmul.f32.gmra.mxu0 %v1210
        %v1257 = vpop.f32.mrf.mxu0
        %v1258 = vadd.f32 %v1186, %v1257
        %1259 = vdwg.mxu0
        %1264 = vrot.lane.b32.xlu0 %v461, 96
        %v1265 = vpop.permute.xlu0 %1264
        %1266 = vrot.lane.b32.xlu0 %v462, 96
        %v1267 = vpop.permute.xlu0 %1266
        %1268 = vrot.lane.b32.xlu0 %v463, 96
        %v1269 = vpop.permute.xlu0 %1268
        %1270 = vrot.lane.b32.xlu0 %v464, 96
        %v1271 = vpop.permute.xlu0 %1270
        %v1277 = vsel %vm473, %v1237, 0
        %v1280 = vsel %vm473, %v1240, 0
        %v1283 = vsel %vm473, %v1243, 0
        %v1286 = vsel %vm473, %v1246, 0
        %v1289 = vsel %vm473, %v1249, 0
        %v1292 = vsel %vm473, %v1252, 0
        %v1295 = vsel %vm473, %v1255, 0
        %v1298 = vsel %vm473, %v1258, 0
        %1300 = vmatpush.msra.mxu0 0.0
        %1301 = vmatpush.msra.mxu0 0.0
        %1302 = vmatpush.msra.mxu0 0.0
        %1303 = vmatpush.msra.mxu0 0.0
        %1304 = vmatpush.msra.mxu0 0.0
        %1305 = vmatpush.msra.mxu0 0.0
        %1306 = vmatpush.msra.mxu0 0.0
        %1307 = vmatpush.msra.mxu0 0.0
        %1308 = vmatpush.msra.mxu0 0.0
        %1309 = vmatpush.msra.mxu0 0.0
        %1310 = vmatpush.msra.mxu0 0.0
        %1311 = vmatpush.msra.mxu0 0.0
        %1312 = vmatpush.msra.mxu0 %v1271
        %1313 = vmatpush.msra.mxu0 %v1269
        %1314 = vmatpush.msra.mxu0 %v1267
        %1315 = vmatpush.msra.mxu0 %v1265
        %1316 = vmatmul.f32.gmra.mxu0 %v1277
        %v1317 = vpop.f32.mrf.mxu0
        %v1318 = vadd.f32 0.0, %v1317
        %1319 = vmatmul.f32.gmra.mxu0 %v1280
        %v1320 = vpop.f32.mrf.mxu0
        %v1321 = vadd.f32 0.0, %v1320
        %1322 = vmatmul.f32.gmra.mxu0 %v1283
        %v1323 = vpop.f32.mrf.mxu0
        %v1324 = vadd.f32 0.0, %v1323
        %1325 = vmatmul.f32.gmra.mxu0 %v1286
        %v1326 = vpop.f32.mrf.mxu0
        %v1327 = vadd.f32 0.0, %v1326
        %1328 = vmatmul.f32.gmra.mxu0 %v1289
        %v1329 = vpop.f32.mrf.mxu0
        %v1330 = vadd.f32 0.0, %v1329
        %1331 = vmatmul.f32.gmra.mxu0 %v1292
        %v1332 = vpop.f32.mrf.mxu0
        %v1333 = vadd.f32 0.0, %v1332
        %1334 = vmatmul.f32.gmra.mxu0 %v1295
        %v1335 = vpop.f32.mrf.mxu0
        %v1336 = vadd.f32 0.0, %v1335
        %1337 = vmatmul.f32.gmra.mxu0 %v1298
        %v1338 = vpop.f32.mrf.mxu0
        %v1339 = vadd.f32 0.0, %v1338
        %1340 = vdwg.mxu0
        %1341 = vrot.lane.b32.xlu0 %v461, 64
        %v1342 = vpop.permute.xlu0 %1341
        %1343 = vrot.lane.b32.xlu0 %v462, 64
        %v1344 = vpop.permute.xlu0 %1343
        %1345 = vrot.lane.b32.xlu0 %v463, 64
        %v1346 = vpop.permute.xlu0 %1345
        %1347 = vrot.lane.b32.xlu0 %v464, 64
        %v1348 = vpop.permute.xlu0 %1347
        %1353 = vmatpush.msra.mxu0 0.0
        %1354 = vmatpush.msra.mxu0 0.0
        %1355 = vmatpush.msra.mxu0 0.0
        %1356 = vmatpush.msra.mxu0 0.0
        %1357 = vmatpush.msra.mxu0 0.0
        %1358 = vmatpush.msra.mxu0 0.0
        %1359 = vmatpush.msra.mxu0 0.0
        %1360 = vmatpush.msra.mxu0 0.0
        %1361 = vmatpush.msra.mxu0 0.0
        %1362 = vmatpush.msra.mxu0 0.0
        %1363 = vmatpush.msra.mxu0 0.0
        %1364 = vmatpush.msra.mxu0 0.0
        %1365 = vmatpush.msra.mxu0 %v1348
        %1366 = vmatpush.msra.mxu0 %v1346
        %1367 = vmatpush.msra.mxu0 %v1344
        %1368 = vmatpush.msra.mxu0 %v1342
        %1369 = vmatmul.f32.gmra.mxu0 %v1277
        %v1370 = vpop.f32.mrf.mxu0
        %v1371 = vadd.f32 0.0, %v1370
        %1372 = vmatmul.f32.gmra.mxu0 %v1280
        %v1373 = vpop.f32.mrf.mxu0
        %v1374 = vadd.f32 0.0, %v1373
        %1375 = vmatmul.f32.gmra.mxu0 %v1283
        %v1376 = vpop.f32.mrf.mxu0
        %v1377 = vadd.f32 0.0, %v1376
        %1378 = vmatmul.f32.gmra.mxu0 %v1286
        %v1379 = vpop.f32.mrf.mxu0
        %v1380 = vadd.f32 0.0, %v1379
        %1381 = vmatmul.f32.gmra.mxu0 %v1289
        %v1382 = vpop.f32.mrf.mxu0
        %v1383 = vadd.f32 0.0, %v1382
        %1384 = vmatmul.f32.gmra.mxu0 %v1292
        %v1385 = vpop.f32.mrf.mxu0
        %v1386 = vadd.f32 0.0, %v1385
        %1387 = vmatmul.f32.gmra.mxu0 %v1295
        %v1388 = vpop.f32.mrf.mxu0
        %v1389 = vadd.f32 0.0, %v1388
        %1390 = vmatmul.f32.gmra.mxu0 %v1298
        %v1391 = vpop.f32.mrf.mxu0
        %v1392 = vadd.f32 0.0, %v1391
        %1393 = vdwg.mxu0
        %1394 = vrot.lane.b32.xlu0 %v461, 32
        %v1395 = vpop.permute.xlu0 %1394
        %1396 = vrot.lane.b32.xlu0 %v462, 32
        %v1397 = vpop.permute.xlu0 %1396
        %1398 = vrot.lane.b32.xlu0 %v463, 32
        %v1399 = vpop.permute.xlu0 %1398
        %1400 = vrot.lane.b32.xlu0 %v464, 32
        %v1401 = vpop.permute.xlu0 %1400
        %1406 = vmatpush.msra.mxu0 0.0
        %1407 = vmatpush.msra.mxu0 0.0
        %1408 = vmatpush.msra.mxu0 0.0
        %1409 = vmatpush.msra.mxu0 0.0
        %1410 = vmatpush.msra.mxu0 0.0
        %1411 = vmatpush.msra.mxu0 0.0
        %1412 = vmatpush.msra.mxu0 0.0
        %1413 = vmatpush.msra.mxu0 0.0
        %1414 = vmatpush.msra.mxu0 0.0
        %1415 = vmatpush.msra.mxu0 0.0
        %1416 = vmatpush.msra.mxu0 0.0
        %1417 = vmatpush.msra.mxu0 0.0
        %1418 = vmatpush.msra.mxu0 %v1401
        %1419 = vmatpush.msra.mxu0 %v1399
        %1420 = vmatpush.msra.mxu0 %v1397
        %1421 = vmatpush.msra.mxu0 %v1395
        %1422 = vmatmul.f32.gmra.mxu0 %v1277
        %v1423 = vpop.f32.mrf.mxu0
        %v1424 = vadd.f32 0.0, %v1423
        %1425 = vmatmul.f32.gmra.mxu0 %v1280
        %v1426 = vpop.f32.mrf.mxu0
        %v1427 = vadd.f32 0.0, %v1426
        %1428 = vmatmul.f32.gmra.mxu0 %v1283
        %v1429 = vpop.f32.mrf.mxu0
        %v1430 = vadd.f32 0.0, %v1429
        %1431 = vmatmul.f32.gmra.mxu0 %v1286
        %v1432 = vpop.f32.mrf.mxu0
        %v1433 = vadd.f32 0.0, %v1432
        %1434 = vmatmul.f32.gmra.mxu0 %v1289
        %v1435 = vpop.f32.mrf.mxu0
        %v1436 = vadd.f32 0.0, %v1435
        %1437 = vmatmul.f32.gmra.mxu0 %v1292
        %v1438 = vpop.f32.mrf.mxu0
        %v1439 = vadd.f32 0.0, %v1438
        %1440 = vmatmul.f32.gmra.mxu0 %v1295
        %v1441 = vpop.f32.mrf.mxu0
        %v1442 = vadd.f32 0.0, %v1441
        %1443 = vmatmul.f32.gmra.mxu0 %v1298
        %v1444 = vpop.f32.mrf.mxu0
        %v1445 = vadd.f32 0.0, %v1444
        %1446 = vdwg.mxu0
        %vm1447 = vcmask 64512
        %v1449 = vsel %vm1447, %v1318, 0
        %v1452 = vsel %vm1447, %v1321, 0
        %v1455 = vsel %vm1447, %v1324, 0
        %v1458 = vsel %vm1447, %v1327, 0
        %v1461 = vsel %vm1447, %v1330, 0
        %v1464 = vsel %vm1447, %v1333, 0
        %v1467 = vsel %vm1447, %v1336, 0
        %v1470 = vsel %vm1447, %v1339, 0
        %v1473 = vsel %vm1447, %v1371, 0
        %v1476 = vsel %vm1447, %v1374, 0
        %v1479 = vsel %vm1447, %v1377, 0
        %v1482 = vsel %vm1447, %v1380, 0
        %v1485 = vsel %vm1447, %v1383, 0
        %v1488 = vsel %vm1447, %v1386, 0
        %v1491 = vsel %vm1447, %v1389, 0
        %v1494 = vsel %vm1447, %v1392, 0
        %1496 = vmatpush.xpose.msra.mxu0 0.0
        %1497 = vmatpush.xpose.msra.mxu0 0.0
        %1498 = vmatpush.xpose.msra.mxu0 0.0
        %1499 = vmatpush.xpose.msra.mxu0 0.0
        %1500 = vmatpush.xpose.msra.mxu0 0.0
        %1501 = vmatpush.xpose.msra.mxu0 0.0
        %1502 = vmatpush.xpose.msra.mxu0 0.0
        %1503 = vmatpush.xpose.msra.mxu0 0.0
        %1504 = vmatpush.xpose.msra.mxu0 %v1494
        %1505 = vmatpush.xpose.msra.mxu0 %v1491
        %1506 = vmatpush.xpose.msra.mxu0 %v1488
        %1507 = vmatpush.xpose.msra.mxu0 %v1485
        %1508 = vmatpush.xpose.msra.mxu0 %v1482
        %1509 = vmatpush.xpose.msra.mxu0 %v1479
        %1510 = vmatpush.xpose.msra.mxu0 %v1476
        %1511 = vmatpush.xpose.msra.mxu0 %v1473
        %1512 = vmatmul.f32.gmra.mxu0 %v1449
        %v1513 = vpop.f32.mrf.mxu0
        %v1514 = vadd.f32 0.0, %v1513
        %1515 = vmatmul.f32.gmra.mxu0 %v1452
        %v1516 = vpop.f32.mrf.mxu0
        %v1517 = vadd.f32 0.0, %v1516
        %1518 = vmatmul.f32.gmra.mxu0 %v1455
        %v1519 = vpop.f32.mrf.mxu0
        %v1520 = vadd.f32 0.0, %v1519
        %1521 = vmatmul.f32.gmra.mxu0 %v1458
        %v1522 = vpop.f32.mrf.mxu0
        %v1523 = vadd.f32 0.0, %v1522
        %1524 = vmatmul.f32.gmra.mxu0 %v1461
        %v1525 = vpop.f32.mrf.mxu0
        %v1526 = vadd.f32 0.0, %v1525
        %1527 = vmatmul.f32.gmra.mxu0 %v1464
        %v1528 = vpop.f32.mrf.mxu0
        %v1529 = vadd.f32 0.0, %v1528
        %1530 = vmatmul.f32.gmra.mxu0 %v1467
        %v1531 = vpop.f32.mrf.mxu0
        %v1532 = vadd.f32 0.0, %v1531
        %1533 = vmatmul.f32.gmra.mxu0 %v1470
        %v1534 = vpop.f32.mrf.mxu0
        %v1535 = vadd.f32 0.0, %v1534
        %1536 = vdwg.mxu0
        %v1537 = vmul.f32 %v1514, 0.35355338
        %v1538 = vmul.f32 %v1517, 0.35355338
        %v1539 = vmul.f32 %v1520, 0.35355338
        %v1540 = vmul.f32 %v1523, 0.35355338
        %v1541 = vmul.f32 %v1526, 0.35355338
        %v1542 = vmul.f32 %v1529, 0.35355338
        %v1543 = vmul.f32 %v1532, 0.35355338
        %v1544 = vmul.f32 %v1535, 0.35355338
        %v1545 = vadd.f32 %v1537, %v453
        %v1546 = vadd.f32 %v1538, %v454
        %v1547 = vadd.f32 %v1539, %v455
        %v1548 = vadd.f32 %v1540, %v456
        %v1549 = vadd.f32 %v1541, %v457
        %v1550 = vadd.f32 %v1542, %v458
        %v1551 = vadd.f32 %v1543, %v459
        %v1552 = vadd.f32 %v1544, %v460
        %v1553 = vsel %vm700, %v1545, -inf
        %1554 = vmax.xlane.f32.xlu0 %v1553
        %v1555 = vpop.xlane.xlu0 %1554
        %v1556 = vsel %vm700, %v1546, -inf
        %1557 = vmax.xlane.f32.xlu0 %v1556
        %v1558 = vpop.xlane.xlu0 %1557
        %v1559 = vsel %vm700, %v1547, -inf
        %1560 = vmax.xlane.f32.xlu0 %v1559
        %v1561 = vpop.xlane.xlu0 %1560
        %v1562 = vsel %vm700, %v1548, -inf
        %1563 = vmax.xlane.f32.xlu0 %v1562
        %v1564 = vpop.xlane.xlu0 %1563
        %v1565 = vsel %vm700, %v1549, -inf
        %1566 = vmax.xlane.f32.xlu0 %v1565
        %v1567 = vpop.xlane.xlu0 %1566
        %v1568 = vsel %vm700, %v1550, -inf
        %1569 = vmax.xlane.f32.xlu0 %v1568
        %v1570 = vpop.xlane.xlu0 %1569
        %v1571 = vsel %vm700, %v1551, -inf
        %1572 = vmax.xlane.f32.xlu0 %v1571
        %v1573 = vpop.xlane.xlu0 %1572
        %v1574 = vsel %vm700, %v1552, -inf
        %1575 = vmax.xlane.f32.xlu0 %v1574
        %v1576 = vpop.xlane.xlu0 %1575
        %v1577 = vsub.f32 %v1545, %v1555
        %v1578 = vsub.f32 %v1546, %v1558
        %v1579 = vsub.f32 %v1547, %v1561
        %v1580 = vsub.f32 %v1548, %v1564
        %v1581 = vsub.f32 %v1549, %v1567
        %v1582 = vsub.f32 %v1550, %v1570
        %v1583 = vsub.f32 %v1551, %v1573
        %v1584 = vsub.f32 %v1552, %v1576
        %v1585 = vmul.f32 %v1577, 1.442695
        %v1586 = vpow.pop %v1585
        %v1587 = vmul.f32 %v1578, 1.442695
        %v1588 = vpow.pop %v1587
        %v1589 = vmul.f32 %v1579, 1.442695
        %v1590 = vpow.pop %v1589
        %v1591 = vmul.f32 %v1580, 1.442695
        %v1592 = vpow.pop %v1591
        %v1593 = vmul.f32 %v1581, 1.442695
        %v1594 = vpow.pop %v1593
        %v1595 = vmul.f32 %v1582, 1.442695
        %v1596 = vpow.pop %v1595
        %v1597 = vmul.f32 %v1583, 1.442695
        %v1598 = vpow.pop %v1597
        %v1599 = vmul.f32 %v1584, 1.442695
        %v1600 = vpow.pop %v1599
        %v1601 = vsel %vm700, %v1586, 0.0
        %1602 = vadd.xlane.f32.xlu0 %v1601
        %v1603 = vpop.xlane.xlu0 %1602
        %v1604 = vsel %vm700, %v1588, 0.0
        %1605 = vadd.xlane.f32.xlu0 %v1604
        %v1606 = vpop.xlane.xlu0 %1605
        %v1607 = vsel %vm700, %v1590, 0.0
        %1608 = vadd.xlane.f32.xlu0 %v1607
        %v1609 = vpop.xlane.xlu0 %1608
        %v1610 = vsel %vm700, %v1592, 0.0
        %1611 = vadd.xlane.f32.xlu0 %v1610
        %v1612 = vpop.xlane.xlu0 %1611
        %v1613 = vsel %vm700, %v1594, 0.0
        %1614 = vadd.xlane.f32.xlu0 %v1613
        %v1615 = vpop.xlane.xlu0 %1614
        %v1616 = vsel %vm700, %v1596, 0.0
        %1617 = vadd.xlane.f32.xlu0 %v1616
        %v1618 = vpop.xlane.xlu0 %1617
        %v1619 = vsel %vm700, %v1598, 0.0
        %1620 = vadd.xlane.f32.xlu0 %v1619
        %v1621 = vpop.xlane.xlu0 %1620
        %v1622 = vsel %vm700, %v1600, 0.0
        %1623 = vadd.xlane.f32.xlu0 %v1622
        %v1624 = vpop.xlane.xlu0 %1623
        %v1625 = vrcp.pop %v1603
        %v1626 = vrcp.pop %v1606
        %v1627 = vrcp.pop %v1609
        %v1628 = vrcp.pop %v1612
        %v1629 = vrcp.pop %v1615
        %v1630 = vrcp.pop %v1618
        %v1631 = vrcp.pop %v1621
        %v1632 = vrcp.pop %v1624
        %v1633 = vmul.f32 %v1586, %v1625
        %v1634 = vmul.f32 %v1588, %v1626
        %v1635 = vmul.f32 %v1590, %v1627
        %v1636 = vmul.f32 %v1592, %v1628
        %v1637 = vmul.f32 %v1594, %v1629
        %v1638 = vmul.f32 %v1596, %v1630
        %v1639 = vmul.f32 %v1598, %v1631
        %v1640 = vmul.f32 %v1600, %v1632
        %v1642 = vsel %vm700, %v1633, 0
        %v1645 = vsel %vm700, %v1634, 0
        %v1648 = vsel %vm700, %v1635, 0
        %v1651 = vsel %vm700, %v1636, 0
        %v1654 = vsel %vm700, %v1637, 0
        %v1657 = vsel %vm700, %v1638, 0
        %v1660 = vsel %vm700, %v1639, 0
        %v1663 = vsel %vm700, %v1640, 0
        %1665 = vmatpush.msra.mxu0 0.0
        %1666 = vmatpush.msra.mxu0 0.0
        %1667 = vmatpush.msra.mxu0 0.0
        %1668 = vmatpush.msra.mxu0 0.0
        %1669 = vmatpush.msra.mxu0 0.0
        %1670 = vmatpush.msra.mxu0 0.0
        %1671 = vmatpush.msra.mxu0 0.0
        %1672 = vmatpush.msra.mxu0 0.0
        %1673 = vmatpush.msra.mxu0 %v1445
        %1674 = vmatpush.msra.mxu0 %v1442
        %1675 = vmatpush.msra.mxu0 %v1439
        %1676 = vmatpush.msra.mxu0 %v1436
        %1677 = vmatpush.msra.mxu0 %v1433
        %1678 = vmatpush.msra.mxu0 %v1430
        %1679 = vmatpush.msra.mxu0 %v1427
        %1680 = vmatpush.msra.mxu0 %v1424
        %1681 = vmatmul.f32.gmra.mxu0 %v1642
        %v1682 = vpop.f32.mrf.mxu0
        %v1683 = vadd.f32 0.0, %v1682
        %1684 = vmatmul.f32.gmra.mxu0 %v1645
        %v1685 = vpop.f32.mrf.mxu0
        %v1686 = vadd.f32 0.0, %v1685
        %1687 = vmatmul.f32.gmra.mxu0 %v1648
        %v1688 = vpop.f32.mrf.mxu0
        %v1689 = vadd.f32 0.0, %v1688
        %1690 = vmatmul.f32.gmra.mxu0 %v1651
        %v1691 = vpop.f32.mrf.mxu0
        %v1692 = vadd.f32 0.0, %v1691
        %1693 = vmatmul.f32.gmra.mxu0 %v1654
        %v1694 = vpop.f32.mrf.mxu0
        %v1695 = vadd.f32 0.0, %v1694
        %1696 = vmatmul.f32.gmra.mxu0 %v1657
        %v1697 = vpop.f32.mrf.mxu0
        %v1698 = vadd.f32 0.0, %v1697
        %1699 = vmatmul.f32.gmra.mxu0 %v1660
        %v1700 = vpop.f32.mrf.mxu0
        %v1701 = vadd.f32 0.0, %v1700
        %1702 = vmatmul.f32.gmra.mxu0 %v1663
        %v1703 = vpop.f32.mrf.mxu0
        %v1704 = vadd.f32 0.0, %v1703
        %1705 = vdwg.mxu0
        %1706 = vrot.lane.b32.xlu0 %v1318, 120
        %v1707 = vpop.permute.xlu0 %1706
        %1708 = vrot.lane.b32.xlu0 %v1321, 120
        %v1709 = vpop.permute.xlu0 %1708
        %1710 = vrot.lane.b32.xlu0 %v1324, 120
        %v1711 = vpop.permute.xlu0 %1710
        %1712 = vrot.lane.b32.xlu0 %v1327, 120
        %v1713 = vpop.permute.xlu0 %1712
        %1714 = vrot.lane.b32.xlu0 %v1330, 120
        %v1715 = vpop.permute.xlu0 %1714
        %1716 = vrot.lane.b32.xlu0 %v1333, 120
        %v1717 = vpop.permute.xlu0 %1716
        %1718 = vrot.lane.b32.xlu0 %v1336, 120
        %v1719 = vpop.permute.xlu0 %1718
        %1720 = vrot.lane.b32.xlu0 %v1339, 120
        %v1721 = vpop.permute.xlu0 %1720
        %1722 = vrot.lane.b32.xlu0 %v1371, 120
        %v1723 = vpop.permute.xlu0 %1722
        %1724 = vrot.lane.b32.xlu0 %v1374, 120
        %v1725 = vpop.permute.xlu0 %1724
        %1726 = vrot.lane.b32.xlu0 %v1377, 120
        %v1727 = vpop.permute.xlu0 %1726
        %1728 = vrot.lane.b32.xlu0 %v1380, 120
        %v1729 = vpop.permute.xlu0 %1728
        %1730 = vrot.lane.b32.xlu0 %v1383, 120
        %v1731 = vpop.permute.xlu0 %1730
        %1732 = vrot.lane.b32.xlu0 %v1386, 120
        %v1733 = vpop.permute.xlu0 %1732
        %1734 = vrot.lane.b32.xlu0 %v1389, 120
        %v1735 = vpop.permute.xlu0 %1734
        %1736 = vrot.lane.b32.xlu0 %v1392, 120
        %v1737 = vpop.permute.xlu0 %1736
        %v1738 = vsel %vm1447, %v1707, 0
        %v1740 = vsel %vm1447, %v1709, 0
        %v1742 = vsel %vm1447, %v1711, 0
        %v1744 = vsel %vm1447, %v1713, 0
        %v1746 = vsel %vm1447, %v1715, 0
        %v1748 = vsel %vm1447, %v1717, 0
        %v1750 = vsel %vm1447, %v1719, 0
        %v1752 = vsel %vm1447, %v1721, 0
        %v1754 = vsel %vm1447, %v1723, 0
        %v1756 = vsel %vm1447, %v1725, 0
        %v1758 = vsel %vm1447, %v1727, 0
        %v1760 = vsel %vm1447, %v1729, 0
        %v1762 = vsel %vm1447, %v1731, 0
        %v1764 = vsel %vm1447, %v1733, 0
        %v1766 = vsel %vm1447, %v1735, 0
        %v1768 = vsel %vm1447, %v1737, 0
        %1770 = vmatpush.xpose.msra.mxu0 0.0
        %1771 = vmatpush.xpose.msra.mxu0 0.0
        %1772 = vmatpush.xpose.msra.mxu0 0.0
        %1773 = vmatpush.xpose.msra.mxu0 0.0
        %1774 = vmatpush.xpose.msra.mxu0 0.0
        %1775 = vmatpush.xpose.msra.mxu0 0.0
        %1776 = vmatpush.xpose.msra.mxu0 0.0
        %1777 = vmatpush.xpose.msra.mxu0 0.0
        %1778 = vmatpush.xpose.msra.mxu0 %v1768
        %1779 = vmatpush.xpose.msra.mxu0 %v1766
        %1780 = vmatpush.xpose.msra.mxu0 %v1764
        %1781 = vmatpush.xpose.msra.mxu0 %v1762
        %1782 = vmatpush.xpose.msra.mxu0 %v1760
        %1783 = vmatpush.xpose.msra.mxu0 %v1758
        %1784 = vmatpush.xpose.msra.mxu0 %v1756
        %1785 = vmatpush.xpose.msra.mxu0 %v1754
        %1786 = vmatmul.f32.gmra.mxu0 %v1738
        %v1787 = vpop.f32.mrf.mxu0
        %v1788 = vadd.f32 0.0, %v1787
        %1789 = vmatmul.f32.gmra.mxu0 %v1740
        %v1790 = vpop.f32.mrf.mxu0
        %v1791 = vadd.f32 0.0, %v1790
        %1792 = vmatmul.f32.gmra.mxu0 %v1742
        %v1793 = vpop.f32.mrf.mxu0
        %v1794 = vadd.f32 0.0, %v1793
        %1795 = vmatmul.f32.gmra.mxu0 %v1744
        %v1796 = vpop.f32.mrf.mxu0
        %v1797 = vadd.f32 0.0, %v1796
        %1798 = vmatmul.f32.gmra.mxu0 %v1746
        %v1799 = vpop.f32.mrf.mxu0
        %v1800 = vadd.f32 0.0, %v1799
        %1801 = vmatmul.f32.gmra.mxu0 %v1748
        %v1802 = vpop.f32.mrf.mxu0
        %v1803 = vadd.f32 0.0, %v1802
        %1804 = vmatmul.f32.gmra.mxu0 %v1750
        %v1805 = vpop.f32.mrf.mxu0
        %v1806 = vadd.f32 0.0, %v1805
        %1807 = vmatmul.f32.gmra.mxu0 %v1752
        %v1808 = vpop.f32.mrf.mxu0
        %v1809 = vadd.f32 0.0, %v1808
        %1810 = vdwg.mxu0
        %v1811 = vmul.f32 %v1788, 0.35355338
        %v1812 = vmul.f32 %v1791, 0.35355338
        %v1813 = vmul.f32 %v1794, 0.35355338
        %v1814 = vmul.f32 %v1797, 0.35355338
        %v1815 = vmul.f32 %v1800, 0.35355338
        %v1816 = vmul.f32 %v1803, 0.35355338
        %v1817 = vmul.f32 %v1806, 0.35355338
        %v1818 = vmul.f32 %v1809, 0.35355338
        %v1819 = vadd.f32 %v1811, %v453
        %v1820 = vadd.f32 %v1812, %v454
        %v1821 = vadd.f32 %v1813, %v455
        %v1822 = vadd.f32 %v1814, %v456
        %v1823 = vadd.f32 %v1815, %v457
        %v1824 = vadd.f32 %v1816, %v458
        %v1825 = vadd.f32 %v1817, %v459
        %v1826 = vadd.f32 %v1818, %v460
        %v1827 = vsel %vm700, %v1819, -inf
        %1828 = vmax.xlane.f32.xlu0 %v1827
        %v1829 = vpop.xlane.xlu0 %1828
        %v1830 = vsel %vm700, %v1820, -inf
        %1831 = vmax.xlane.f32.xlu0 %v1830
        %v1832 = vpop.xlane.xlu0 %1831
        %v1833 = vsel %vm700, %v1821, -inf
        %1834 = vmax.xlane.f32.xlu0 %v1833
        %v1835 = vpop.xlane.xlu0 %1834
        %v1836 = vsel %vm700, %v1822, -inf
        %1837 = vmax.xlane.f32.xlu0 %v1836
        %v1838 = vpop.xlane.xlu0 %1837
        %v1839 = vsel %vm700, %v1823, -inf
        %1840 = vmax.xlane.f32.xlu0 %v1839
        %v1841 = vpop.xlane.xlu0 %1840
        %v1842 = vsel %vm700, %v1824, -inf
        %1843 = vmax.xlane.f32.xlu0 %v1842
        %v1844 = vpop.xlane.xlu0 %1843
        %v1845 = vsel %vm700, %v1825, -inf
        %1846 = vmax.xlane.f32.xlu0 %v1845
        %v1847 = vpop.xlane.xlu0 %1846
        %v1848 = vsel %vm700, %v1826, -inf
        %1849 = vmax.xlane.f32.xlu0 %v1848
        %v1850 = vpop.xlane.xlu0 %1849
        %v1851 = vsub.f32 %v1819, %v1829
        %v1852 = vsub.f32 %v1820, %v1832
        %v1853 = vsub.f32 %v1821, %v1835
        %v1854 = vsub.f32 %v1822, %v1838
        %v1855 = vsub.f32 %v1823, %v1841
        %v1856 = vsub.f32 %v1824, %v1844
        %v1857 = vsub.f32 %v1825, %v1847
        %v1858 = vsub.f32 %v1826, %v1850
        %v1859 = vmul.f32 %v1851, 1.442695
        %v1860 = vpow.pop %v1859
        %v1861 = vmul.f32 %v1852, 1.442695
        %v1862 = vpow.pop %v1861
        %v1863 = vmul.f32 %v1853, 1.442695
        %v1864 = vpow.pop %v1863
        %v1865 = vmul.f32 %v1854, 1.442695
        %v1866 = vpow.pop %v1865
        %v1867 = vmul.f32 %v1855, 1.442695
        %v1868 = vpow.pop %v1867
        %v1869 = vmul.f32 %v1856, 1.442695
        %v1870 = vpow.pop %v1869
        %v1871 = vmul.f32 %v1857, 1.442695
        %v1872 = vpow.pop %v1871
        %v1873 = vmul.f32 %v1858, 1.442695
        %v1874 = vpow.pop %v1873
        %v1875 = vsel %vm700, %v1860, 0.0
        %1876 = vadd.xlane.f32.xlu0 %v1875
        %v1877 = vpop.xlane.xlu0 %1876
        %v1878 = vsel %vm700, %v1862, 0.0
        %1879 = vadd.xlane.f32.xlu0 %v1878
        %v1880 = vpop.xlane.xlu0 %1879
        %v1881 = vsel %vm700, %v1864, 0.0
        %1882 = vadd.xlane.f32.xlu0 %v1881
        %v1883 = vpop.xlane.xlu0 %1882
        %v1884 = vsel %vm700, %v1866, 0.0
        %1885 = vadd.xlane.f32.xlu0 %v1884
        %v1886 = vpop.xlane.xlu0 %1885
        %v1887 = vsel %vm700, %v1868, 0.0
        %1888 = vadd.xlane.f32.xlu0 %v1887
        %v1889 = vpop.xlane.xlu0 %1888
        %v1890 = vsel %vm700, %v1870, 0.0
        %1891 = vadd.xlane.f32.xlu0 %v1890
        %v1892 = vpop.xlane.xlu0 %1891
        %v1893 = vsel %vm700, %v1872, 0.0
        %1894 = vadd.xlane.f32.xlu0 %v1893
        %v1895 = vpop.xlane.xlu0 %1894
        %v1896 = vsel %vm700, %v1874, 0.0
        %1897 = vadd.xlane.f32.xlu0 %v1896
        %v1898 = vpop.xlane.xlu0 %1897
        %v1899 = vrcp.pop %v1877
        %v1900 = vrcp.pop %v1880
        %v1901 = vrcp.pop %v1883
        %v1902 = vrcp.pop %v1886
        %v1903 = vrcp.pop %v1889
        %v1904 = vrcp.pop %v1892
        %v1905 = vrcp.pop %v1895
        %v1906 = vrcp.pop %v1898
        %v1907 = vmul.f32 %v1860, %v1899
        %v1908 = vmul.f32 %v1862, %v1900
        %v1909 = vmul.f32 %v1864, %v1901
        %v1910 = vmul.f32 %v1866, %v1902
        %v1911 = vmul.f32 %v1868, %v1903
        %v1912 = vmul.f32 %v1870, %v1904
        %v1913 = vmul.f32 %v1872, %v1905
        %v1914 = vmul.f32 %v1874, %v1906
        %1923 = vrot.lane.b32.xlu0 %v1424, 120
        %v1924 = vpop.permute.xlu0 %1923
        %1925 = vrot.lane.b32.xlu0 %v1427, 120
        %v1926 = vpop.permute.xlu0 %1925
        %1927 = vrot.lane.b32.xlu0 %v1430, 120
        %v1928 = vpop.permute.xlu0 %1927
        %1929 = vrot.lane.b32.xlu0 %v1433, 120
        %v1930 = vpop.permute.xlu0 %1929
        %1931 = vrot.lane.b32.xlu0 %v1436, 120
        %v1932 = vpop.permute.xlu0 %1931
        %1933 = vrot.lane.b32.xlu0 %v1439, 120
        %v1934 = vpop.permute.xlu0 %1933
        %1935 = vrot.lane.b32.xlu0 %v1442, 120
        %v1936 = vpop.permute.xlu0 %1935
        %1937 = vrot.lane.b32.xlu0 %v1445, 120
        %v1938 = vpop.permute.xlu0 %1937
        %v1948 = vsel %vm700, %v1907, 0
        %v1951 = vsel %vm700, %v1908, 0
        %v1954 = vsel %vm700, %v1909, 0
        %v1957 = vsel %vm700, %v1910, 0
        %v1960 = vsel %vm700, %v1911, 0
        %v1963 = vsel %vm700, %v1912, 0
        %v1966 = vsel %vm700, %v1913, 0
        %v1969 = vsel %vm700, %v1914, 0
        %1971 = vmatpush.msra.mxu0 0.0
        %1972 = vmatpush.msra.mxu0 0.0
        %1973 = vmatpush.msra.mxu0 0.0
        %1974 = vmatpush.msra.mxu0 0.0
        %1975 = vmatpush.msra.mxu0 0.0
        %1976 = vmatpush.msra.mxu0 0.0
        %1977 = vmatpush.msra.mxu0 0.0
        %1978 = vmatpush.msra.mxu0 0.0
        %1979 = vmatpush.msra.mxu0 %v1938
        %1980 = vmatpush.msra.mxu0 %v1936
        %1981 = vmatpush.msra.mxu0 %v1934
        %1982 = vmatpush.msra.mxu0 %v1932
        %1983 = vmatpush.msra.mxu0 %v1930
        %1984 = vmatpush.msra.mxu0 %v1928
        %1985 = vmatpush.msra.mxu0 %v1926
        %1986 = vmatpush.msra.mxu0 %v1924
        %1987 = vmatmul.f32.gmra.mxu0 %v1948
        %v1988 = vpop.f32.mrf.mxu0
        %v1989 = vadd.f32 0.0, %v1988
        %1990 = vmatmul.f32.gmra.mxu0 %v1951
        %v1991 = vpop.f32.mrf.mxu0
        %v1992 = vadd.f32 0.0, %v1991
        %1993 = vmatmul.f32.gmra.mxu0 %v1954
        %v1994 = vpop.f32.mrf.mxu0
        %v1995 = vadd.f32 0.0, %v1994
        %1996 = vmatmul.f32.gmra.mxu0 %v1957
        %v1997 = vpop.f32.mrf.mxu0
        %v1998 = vadd.f32 0.0, %v1997
        %1999 = vmatmul.f32.gmra.mxu0 %v1960
        %v2000 = vpop.f32.mrf.mxu0
        %v2001 = vadd.f32 0.0, %v2000
        %2002 = vmatmul.f32.gmra.mxu0 %v1963
        %v2003 = vpop.f32.mrf.mxu0
        %v2004 = vadd.f32 0.0, %v2003
        %2005 = vmatmul.f32.gmra.mxu0 %v1966
        %v2006 = vpop.f32.mrf.mxu0
        %v2007 = vadd.f32 0.0, %v2006
        %2008 = vmatmul.f32.gmra.mxu0 %v1969
        %v2009 = vpop.f32.mrf.mxu0
        %v2010 = vadd.f32 0.0, %v2009
        %2011 = vdwg.mxu0
        %v2013 = vsel %vm1447, %v1989, 0
        %v2016 = vsel %vm1447, %v1992, 0
        %v2019 = vsel %vm1447, %v1995, 0
        %v2022 = vsel %vm1447, %v1998, 0
        %v2025 = vsel %vm1447, %v2001, 0
        %v2028 = vsel %vm1447, %v2004, 0
        %v2031 = vsel %vm1447, %v2007, 0
        %v2034 = vsel %vm1447, %v2010, 0
        %2036 = vmatpush.msra.mxu0 0.0
        %2037 = vmatpush.msra.mxu0 0.0
        %2038 = vmatpush.msra.mxu0 0.0
        %2039 = vmatpush.msra.mxu0 0.0
        %2040 = vmatpush.msra.mxu0 0.0
        %2041 = vmatpush.msra.mxu0 0.0
        %2042 = vmatpush.msra.mxu0 0.0
        %2043 = vmatpush.msra.mxu0 0.0
        %2044 = vmatpush.msra.mxu0 0.0
        %2045 = vmatpush.msra.mxu0 0.0
        %2046 = vmatpush.msra.mxu0 0.0
        %2047 = vmatpush.msra.mxu0 0.0
        %2048 = vmatpush.msra.mxu0 0.0
        %2049 = vmatpush.msra.mxu0 0.0
        %2050 = vmatpush.msra.mxu0 0.0
        %2051 = vmatpush.msra.mxu0 %v466
        %2052 = vmatmul.f32.gmra.mxu0 %v2013
        %v2053 = vpop.f32.mrf.mxu0
        %v2054 = vadd.f32 0.0, %v2053
        %2055 = vmatmul.f32.gmra.mxu0 %v2016
        %v2056 = vpop.f32.mrf.mxu0
        %v2057 = vadd.f32 0.0, %v2056
        %2058 = vmatmul.f32.gmra.mxu0 %v2019
        %v2059 = vpop.f32.mrf.mxu0
        %v2060 = vadd.f32 0.0, %v2059
        %2061 = vmatmul.f32.gmra.mxu0 %v2022
        %v2062 = vpop.f32.mrf.mxu0
        %v2063 = vadd.f32 0.0, %v2062
        %2064 = vmatmul.f32.gmra.mxu0 %v2025
        %v2065 = vpop.f32.mrf.mxu0
        %v2066 = vadd.f32 0.0, %v2065
        %2067 = vmatmul.f32.gmra.mxu0 %v2028
        %v2068 = vpop.f32.mrf.mxu0
        %v2069 = vadd.f32 0.0, %v2068
        %2070 = vmatmul.f32.gmra.mxu0 %v2031
        %v2071 = vpop.f32.mrf.mxu0
        %v2072 = vadd.f32 0.0, %v2071
        %2073 = vmatmul.f32.gmra.mxu0 %v2034
        %v2074 = vpop.f32.mrf.mxu0
        %v2075 = vadd.f32 0.0, %v2074
        %2076 = vdwg.mxu0
        %v2078 = vsel %vm1447, %v1683, 0
        %v2081 = vsel %vm1447, %v1686, 0
        %v2084 = vsel %vm1447, %v1689, 0
        %v2087 = vsel %vm1447, %v1692, 0
        %v2090 = vsel %vm1447, %v1695, 0
        %v2093 = vsel %vm1447, %v1698, 0
        %v2096 = vsel %vm1447, %v1701, 0
        %v2099 = vsel %vm1447, %v1704, 0
        %2101 = vmatpush.msra.mxu0 0.0
        %2102 = vmatpush.msra.mxu0 0.0
        %2103 = vmatpush.msra.mxu0 0.0
        %2104 = vmatpush.msra.mxu0 0.0
        %2105 = vmatpush.msra.mxu0 0.0
        %2106 = vmatpush.msra.mxu0 0.0
        %2107 = vmatpush.msra.mxu0 0.0
        %2108 = vmatpush.msra.mxu0 0.0
        %2109 = vmatpush.msra.mxu0 0.0
        %2110 = vmatpush.msra.mxu0 0.0
        %2111 = vmatpush.msra.mxu0 0.0
        %2112 = vmatpush.msra.mxu0 0.0
        %2113 = vmatpush.msra.mxu0 0.0
        %2114 = vmatpush.msra.mxu0 0.0
        %2115 = vmatpush.msra.mxu0 0.0
        %2116 = vmatpush.msra.mxu0 %v465
        %2117 = vmatmul.f32.gmra.mxu0 %v2078
        %v2118 = vpop.f32.mrf.mxu0
        %v2119 = vadd.f32 %v2054, %v2118
        %2120 = vmatmul.f32.gmra.mxu0 %v2081
        %v2121 = vpop.f32.mrf.mxu0
        %v2122 = vadd.f32 %v2057, %v2121
        %2123 = vmatmul.f32.gmra.mxu0 %v2084
        %v2124 = vpop.f32.mrf.mxu0
        %v2125 = vadd.f32 %v2060, %v2124
        %2126 = vmatmul.f32.gmra.mxu0 %v2087
        %v2127 = vpop.f32.mrf.mxu0
        %v2128 = vadd.f32 %v2063, %v2127
        %2129 = vmatmul.f32.gmra.mxu0 %v2090
        %v2130 = vpop.f32.mrf.mxu0
        %v2131 = vadd.f32 %v2066, %v2130
        %2132 = vmatmul.f32.gmra.mxu0 %v2093
        %v2133 = vpop.f32.mrf.mxu0
        %v2134 = vadd.f32 %v2069, %v2133
        %2135 = vmatmul.f32.gmra.mxu0 %v2096
        %v2136 = vpop.f32.mrf.mxu0
        %v2137 = vadd.f32 %v2072, %v2136
        %2138 = vmatmul.f32.gmra.mxu0 %v2099
        %v2139 = vpop.f32.mrf.mxu0
        %v2140 = vadd.f32 %v2075, %v2139
        %2141 = vdwg.mxu0
        %2142 = vrot.lane.b32.xlu0 %v1318, 112
        %v2143 = vpop.permute.xlu0 %2142
        %2144 = vrot.lane.b32.xlu0 %v1321, 112
        %v2145 = vpop.permute.xlu0 %2144
        %2146 = vrot.lane.b32.xlu0 %v1324, 112
        %v2147 = vpop.permute.xlu0 %2146
        %2148 = vrot.lane.b32.xlu0 %v1327, 112
        %v2149 = vpop.permute.xlu0 %2148
        %2150 = vrot.lane.b32.xlu0 %v1330, 112
        %v2151 = vpop.permute.xlu0 %2150
        %2152 = vrot.lane.b32.xlu0 %v1333, 112
        %v2153 = vpop.permute.xlu0 %2152
        %2154 = vrot.lane.b32.xlu0 %v1336, 112
        %v2155 = vpop.permute.xlu0 %2154
        %2156 = vrot.lane.b32.xlu0 %v1339, 112
        %v2157 = vpop.permute.xlu0 %2156
        %2158 = vrot.lane.b32.xlu0 %v1371, 112
        %v2159 = vpop.permute.xlu0 %2158
        %2160 = vrot.lane.b32.xlu0 %v1374, 112
        %v2161 = vpop.permute.xlu0 %2160
        %2162 = vrot.lane.b32.xlu0 %v1377, 112
        %v2163 = vpop.permute.xlu0 %2162
        %2164 = vrot.lane.b32.xlu0 %v1380, 112
        %v2165 = vpop.permute.xlu0 %2164
        %2166 = vrot.lane.b32.xlu0 %v1383, 112
        %v2167 = vpop.permute.xlu0 %2166
        %2168 = vrot.lane.b32.xlu0 %v1386, 112
        %v2169 = vpop.permute.xlu0 %2168
        %2170 = vrot.lane.b32.xlu0 %v1389, 112
        %v2171 = vpop.permute.xlu0 %2170
        %2172 = vrot.lane.b32.xlu0 %v1392, 112
        %v2173 = vpop.permute.xlu0 %2172
        %v2174 = vsel %vm1447, %v2143, 0
        %v2176 = vsel %vm1447, %v2145, 0
        %v2178 = vsel %vm1447, %v2147, 0
        %v2180 = vsel %vm1447, %v2149, 0
        %v2182 = vsel %vm1447, %v2151, 0
        %v2184 = vsel %vm1447, %v2153, 0
        %v2186 = vsel %vm1447, %v2155, 0
        %v2188 = vsel %vm1447, %v2157, 0
        %v2190 = vsel %vm1447, %v2159, 0
        %v2192 = vsel %vm1447, %v2161, 0
        %v2194 = vsel %vm1447, %v2163, 0
        %v2196 = vsel %vm1447, %v2165, 0
        %v2198 = vsel %vm1447, %v2167, 0
        %v2200 = vsel %vm1447, %v2169, 0
        %v2202 = vsel %vm1447, %v2171, 0
        %v2204 = vsel %vm1447, %v2173, 0
        %2206 = vmatpush.xpose.msra.mxu0 0.0
        %2207 = vmatpush.xpose.msra.mxu0 0.0
        %2208 = vmatpush.xpose.msra.mxu0 0.0
        %2209 = vmatpush.xpose.msra.mxu0 0.0
        %2210 = vmatpush.xpose.msra.mxu0 0.0
        %2211 = vmatpush.xpose.msra.mxu0 0.0
        %2212 = vmatpush.xpose.msra.mxu0 0.0
        %2213 = vmatpush.xpose.msra.mxu0 0.0
        %2214 = vmatpush.xpose.msra.mxu0 %v2204
        %2215 = vmatpush.xpose.msra.mxu0 %v2202
        %2216 = vmatpush.xpose.msra.mxu0 %v2200
        %2217 = vmatpush.xpose.msra.mxu0 %v2198
        %2218 = vmatpush.xpose.msra.mxu0 %v2196
        %2219 = vmatpush.xpose.msra.mxu0 %v2194
        %2220 = vmatpush.xpose.msra.mxu0 %v2192
        %2221 = vmatpush.xpose.msra.mxu0 %v2190
        %2222 = vmatmul.f32.gmra.mxu0 %v2174
        %v2223 = vpop.f32.mrf.mxu0
        %v2224 = vadd.f32 0.0, %v2223
        %2225 = vmatmul.f32.gmra.mxu0 %v2176
        %v2226 = vpop.f32.mrf.mxu0
        %v2227 = vadd.f32 0.0, %v2226
        %2228 = vmatmul.f32.gmra.mxu0 %v2178
        %v2229 = vpop.f32.mrf.mxu0
        %v2230 = vadd.f32 0.0, %v2229
        %2231 = vmatmul.f32.gmra.mxu0 %v2180
        %v2232 = vpop.f32.mrf.mxu0
        %v2233 = vadd.f32 0.0, %v2232
        %2234 = vmatmul.f32.gmra.mxu0 %v2182
        %v2235 = vpop.f32.mrf.mxu0
        %v2236 = vadd.f32 0.0, %v2235
        %2237 = vmatmul.f32.gmra.mxu0 %v2184
        %v2238 = vpop.f32.mrf.mxu0
        %v2239 = vadd.f32 0.0, %v2238
        %2240 = vmatmul.f32.gmra.mxu0 %v2186
        %v2241 = vpop.f32.mrf.mxu0
        %v2242 = vadd.f32 0.0, %v2241
        %2243 = vmatmul.f32.gmra.mxu0 %v2188
        %v2244 = vpop.f32.mrf.mxu0
        %v2245 = vadd.f32 0.0, %v2244
        %2246 = vdwg.mxu0
        %v2247 = vmul.f32 %v2224, 0.35355338
        %v2248 = vmul.f32 %v2227, 0.35355338
        %v2249 = vmul.f32 %v2230, 0.35355338
        %v2250 = vmul.f32 %v2233, 0.35355338
        %v2251 = vmul.f32 %v2236, 0.35355338
        %v2252 = vmul.f32 %v2239, 0.35355338
        %v2253 = vmul.f32 %v2242, 0.35355338
        %v2254 = vmul.f32 %v2245, 0.35355338
        %v2255 = vadd.f32 %v2247, %v453
        %v2256 = vadd.f32 %v2248, %v454
        %v2257 = vadd.f32 %v2249, %v455
        %v2258 = vadd.f32 %v2250, %v456
        %v2259 = vadd.f32 %v2251, %v457
        %v2260 = vadd.f32 %v2252, %v458
        %v2261 = vadd.f32 %v2253, %v459
        %v2262 = vadd.f32 %v2254, %v460
        %v2263 = vsel %vm700, %v2255, -inf
        %2264 = vmax.xlane.f32.xlu0 %v2263
        %v2265 = vpop.xlane.xlu0 %2264
        %v2266 = vsel %vm700, %v2256, -inf
        %2267 = vmax.xlane.f32.xlu0 %v2266
        %v2268 = vpop.xlane.xlu0 %2267
        %v2269 = vsel %vm700, %v2257, -inf
        %2270 = vmax.xlane.f32.xlu0 %v2269
        %v2271 = vpop.xlane.xlu0 %2270
        %v2272 = vsel %vm700, %v2258, -inf
        %2273 = vmax.xlane.f32.xlu0 %v2272
        %v2274 = vpop.xlane.xlu0 %2273
        %v2275 = vsel %vm700, %v2259, -inf
        %2276 = vmax.xlane.f32.xlu0 %v2275
        %v2277 = vpop.xlane.xlu0 %2276
        %v2278 = vsel %vm700, %v2260, -inf
        %2279 = vmax.xlane.f32.xlu0 %v2278
        %v2280 = vpop.xlane.xlu0 %2279
        %v2281 = vsel %vm700, %v2261, -inf
        %2282 = vmax.xlane.f32.xlu0 %v2281
        %v2283 = vpop.xlane.xlu0 %2282
        %v2284 = vsel %vm700, %v2262, -inf
        %2285 = vmax.xlane.f32.xlu0 %v2284
        %v2286 = vpop.xlane.xlu0 %2285
        %v2287 = vsub.f32 %v2255, %v2265
        %v2288 = vsub.f32 %v2256, %v2268
        %v2289 = vsub.f32 %v2257, %v2271
        %v2290 = vsub.f32 %v2258, %v2274
        %v2291 = vsub.f32 %v2259, %v2277
        %v2292 = vsub.f32 %v2260, %v2280
        %v2293 = vsub.f32 %v2261, %v2283
        %v2294 = vsub.f32 %v2262, %v2286
        %v2295 = vmul.f32 %v2287, 1.442695
        %v2296 = vpow.pop %v2295
        %v2297 = vmul.f32 %v2288, 1.442695
        %v2298 = vpow.pop %v2297
        %v2299 = vmul.f32 %v2289, 1.442695
        %v2300 = vpow.pop %v2299
        %v2301 = vmul.f32 %v2290, 1.442695
        %v2302 = vpow.pop %v2301
        %v2303 = vmul.f32 %v2291, 1.442695
        %v2304 = vpow.pop %v2303
        %v2305 = vmul.f32 %v2292, 1.442695
        %v2306 = vpow.pop %v2305
        %v2307 = vmul.f32 %v2293, 1.442695
        %v2308 = vpow.pop %v2307
        %v2309 = vmul.f32 %v2294, 1.442695
        %v2310 = vpow.pop %v2309
        %v2311 = vsel %vm700, %v2296, 0.0
        %2312 = vadd.xlane.f32.xlu0 %v2311
        %v2313 = vpop.xlane.xlu0 %2312
        %v2314 = vsel %vm700, %v2298, 0.0
        %2315 = vadd.xlane.f32.xlu0 %v2314
        %v2316 = vpop.xlane.xlu0 %2315
        %v2317 = vsel %vm700, %v2300, 0.0
        %2318 = vadd.xlane.f32.xlu0 %v2317
        %v2319 = vpop.xlane.xlu0 %2318
        %v2320 = vsel %vm700, %v2302, 0.0
        %2321 = vadd.xlane.f32.xlu0 %v2320
        %v2322 = vpop.xlane.xlu0 %2321
        %v2323 = vsel %vm700, %v2304, 0.0
        %2324 = vadd.xlane.f32.xlu0 %v2323
        %v2325 = vpop.xlane.xlu0 %2324
        %v2326 = vsel %vm700, %v2306, 0.0
        %2327 = vadd.xlane.f32.xlu0 %v2326
        %v2328 = vpop.xlane.xlu0 %2327
        %v2329 = vsel %vm700, %v2308, 0.0
        %2330 = vadd.xlane.f32.xlu0 %v2329
        %v2331 = vpop.xlane.xlu0 %2330
        %v2332 = vsel %vm700, %v2310, 0.0
        %2333 = vadd.xlane.f32.xlu0 %v2332
        %v2334 = vpop.xlane.xlu0 %2333
        %v2335 = vrcp.pop %v2313
        %v2336 = vrcp.pop %v2316
        %v2337 = vrcp.pop %v2319
        %v2338 = vrcp.pop %v2322
        %v2339 = vrcp.pop %v2325
        %v2340 = vrcp.pop %v2328
        %v2341 = vrcp.pop %v2331
        %v2342 = vrcp.pop %v2334
        %v2343 = vmul.f32 %v2296, %v2335
        %v2344 = vmul.f32 %v2298, %v2336
        %v2345 = vmul.f32 %v2300, %v2337
        %v2346 = vmul.f32 %v2302, %v2338
        %v2347 = vmul.f32 %v2304, %v2339
        %v2348 = vmul.f32 %v2306, %v2340
        %v2349 = vmul.f32 %v2308, %v2341
        %v2350 = vmul.f32 %v2310, %v2342
        %2351 = vrot.lane.b32.xlu0 %v1424, 112
        %v2352 = vpop.permute.xlu0 %2351
        %2353 = vrot.lane.b32.xlu0 %v1427, 112
        %v2354 = vpop.permute.xlu0 %2353
        %2355 = vrot.lane.b32.xlu0 %v1430, 112
        %v2356 = vpop.permute.xlu0 %2355
        %2357 = vrot.lane.b32.xlu0 %v1433, 112
        %v2358 = vpop.permute.xlu0 %2357
        %2359 = vrot.lane.b32.xlu0 %v1436, 112
        %v2360 = vpop.permute.xlu0 %2359
        %2361 = vrot.lane.b32.xlu0 %v1439, 112
        %v2362 = vpop.permute.xlu0 %2361
        %2363 = vrot.lane.b32.xlu0 %v1442, 112
        %v2364 = vpop.permute.xlu0 %2363
        %2365 = vrot.lane.b32.xlu0 %v1445, 112
        %v2366 = vpop.permute.xlu0 %2365
        %v2376 = vsel %vm700, %v2343, 0
        %v2379 = vsel %vm700, %v2344, 0
        %v2382 = vsel %vm700, %v2345, 0
        %v2385 = vsel %vm700, %v2346, 0
        %v2388 = vsel %vm700, %v2347, 0
        %v2391 = vsel %vm700, %v2348, 0
        %v2394 = vsel %vm700, %v2349, 0
        %v2397 = vsel %vm700, %v2350, 0
        %2399 = vmatpush.msra.mxu0 0.0
        %2400 = vmatpush.msra.mxu0 0.0
        %2401 = vmatpush.msra.mxu0 0.0
        %2402 = vmatpush.msra.mxu0 0.0
        %2403 = vmatpush.msra.mxu0 0.0
        %2404 = vmatpush.msra.mxu0 0.0
        %2405 = vmatpush.msra.mxu0 0.0
        %2406 = vmatpush.msra.mxu0 0.0
        %2407 = vmatpush.msra.mxu0 %v2366
        %2408 = vmatpush.msra.mxu0 %v2364
        %2409 = vmatpush.msra.mxu0 %v2362
        %2410 = vmatpush.msra.mxu0 %v2360
        %2411 = vmatpush.msra.mxu0 %v2358
        %2412 = vmatpush.msra.mxu0 %v2356
        %2413 = vmatpush.msra.mxu0 %v2354
        %2414 = vmatpush.msra.mxu0 %v2352
        %2415 = vmatmul.f32.gmra.mxu0 %v2376
        %v2416 = vpop.f32.mrf.mxu0
        %v2417 = vadd.f32 0.0, %v2416
        %2418 = vmatmul.f32.gmra.mxu0 %v2379
        %v2419 = vpop.f32.mrf.mxu0
        %v2420 = vadd.f32 0.0, %v2419
        %2421 = vmatmul.f32.gmra.mxu0 %v2382
        %v2422 = vpop.f32.mrf.mxu0
        %v2423 = vadd.f32 0.0, %v2422
        %2424 = vmatmul.f32.gmra.mxu0 %v2385
        %v2425 = vpop.f32.mrf.mxu0
        %v2426 = vadd.f32 0.0, %v2425
        %2427 = vmatmul.f32.gmra.mxu0 %v2388
        %v2428 = vpop.f32.mrf.mxu0
        %v2429 = vadd.f32 0.0, %v2428
        %2430 = vmatmul.f32.gmra.mxu0 %v2391
        %v2431 = vpop.f32.mrf.mxu0
        %v2432 = vadd.f32 0.0, %v2431
        %2433 = vmatmul.f32.gmra.mxu0 %v2394
        %v2434 = vpop.f32.mrf.mxu0
        %v2435 = vadd.f32 0.0, %v2434
        %2436 = vmatmul.f32.gmra.mxu0 %v2397
        %v2437 = vpop.f32.mrf.mxu0
        %v2438 = vadd.f32 0.0, %v2437
        %2439 = vdwg.mxu0
        %v2441 = vsel %vm1447, %v2417, 0
        %v2444 = vsel %vm1447, %v2420, 0
        %v2447 = vsel %vm1447, %v2423, 0
        %v2450 = vsel %vm1447, %v2426, 0
        %v2453 = vsel %vm1447, %v2429, 0
        %v2456 = vsel %vm1447, %v2432, 0
        %v2459 = vsel %vm1447, %v2435, 0
        %v2462 = vsel %vm1447, %v2438, 0
        %2464 = vmatpush.msra.mxu0 0.0
        %2465 = vmatpush.msra.mxu0 0.0
        %2466 = vmatpush.msra.mxu0 0.0
        %2467 = vmatpush.msra.mxu0 0.0
        %2468 = vmatpush.msra.mxu0 0.0
        %2469 = vmatpush.msra.mxu0 0.0
        %2470 = vmatpush.msra.mxu0 0.0
        %2471 = vmatpush.msra.mxu0 0.0
        %2472 = vmatpush.msra.mxu0 0.0
        %2473 = vmatpush.msra.mxu0 0.0
        %2474 = vmatpush.msra.mxu0 0.0
        %2475 = vmatpush.msra.mxu0 0.0
        %2476 = vmatpush.msra.mxu0 0.0
        %2477 = vmatpush.msra.mxu0 0.0
        %2478 = vmatpush.msra.mxu0 0.0
        %2479 = vmatpush.msra.mxu0 %v467
        %2480 = vmatmul.f32.gmra.mxu0 %v2441
        %v2481 = vpop.f32.mrf.mxu0
        %v2482 = vadd.f32 0.0, %v2481
        %2483 = vmatmul.f32.gmra.mxu0 %v2444
        %v2484 = vpop.f32.mrf.mxu0
        %v2485 = vadd.f32 0.0, %v2484
        %2486 = vmatmul.f32.gmra.mxu0 %v2447
        %v2487 = vpop.f32.mrf.mxu0
        %v2488 = vadd.f32 0.0, %v2487
        %2489 = vmatmul.f32.gmra.mxu0 %v2450
        %v2490 = vpop.f32.mrf.mxu0
        %v2491 = vadd.f32 0.0, %v2490
        %2492 = vmatmul.f32.gmra.mxu0 %v2453
        %v2493 = vpop.f32.mrf.mxu0
        %v2494 = vadd.f32 0.0, %v2493
        %2495 = vmatmul.f32.gmra.mxu0 %v2456
        %v2496 = vpop.f32.mrf.mxu0
        %v2497 = vadd.f32 0.0, %v2496
        %2498 = vmatmul.f32.gmra.mxu0 %v2459
        %v2499 = vpop.f32.mrf.mxu0
        %v2500 = vadd.f32 0.0, %v2499
        %2501 = vmatmul.f32.gmra.mxu0 %v2462
        %v2502 = vpop.f32.mrf.mxu0
        %v2503 = vadd.f32 0.0, %v2502
        %2504 = vdwg.mxu0
        %v2505 = vadd.f32 %v2119, %v2482
        %v2506 = vadd.f32 %v2122, %v2485
        %v2507 = vadd.f32 %v2125, %v2488
        %v2508 = vadd.f32 %v2128, %v2491
        %v2509 = vadd.f32 %v2131, %v2494
        %v2510 = vadd.f32 %v2134, %v2497
        %v2511 = vadd.f32 %v2137, %v2500
        %v2512 = vadd.f32 %v2140, %v2503
        %2513 = vrot.lane.b32.xlu0 %v1318, 104
        %v2514 = vpop.permute.xlu0 %2513
        %2515 = vrot.lane.b32.xlu0 %v1321, 104
        %v2516 = vpop.permute.xlu0 %2515
        %2517 = vrot.lane.b32.xlu0 %v1324, 104
        %v2518 = vpop.permute.xlu0 %2517
        %2519 = vrot.lane.b32.xlu0 %v1327, 104
        %v2520 = vpop.permute.xlu0 %2519
        %2521 = vrot.lane.b32.xlu0 %v1330, 104
        %v2522 = vpop.permute.xlu0 %2521
        %2523 = vrot.lane.b32.xlu0 %v1333, 104
        %v2524 = vpop.permute.xlu0 %2523
        %2525 = vrot.lane.b32.xlu0 %v1336, 104
        %v2526 = vpop.permute.xlu0 %2525
        %2527 = vrot.lane.b32.xlu0 %v1339, 104
        %v2528 = vpop.permute.xlu0 %2527
        %2529 = vrot.lane.b32.xlu0 %v1371, 104
        %v2530 = vpop.permute.xlu0 %2529
        %2531 = vrot.lane.b32.xlu0 %v1374, 104
        %v2532 = vpop.permute.xlu0 %2531
        %2533 = vrot.lane.b32.xlu0 %v1377, 104
        %v2534 = vpop.permute.xlu0 %2533
        %2535 = vrot.lane.b32.xlu0 %v1380, 104
        %v2536 = vpop.permute.xlu0 %2535
        %2537 = vrot.lane.b32.xlu0 %v1383, 104
        %v2538 = vpop.permute.xlu0 %2537
        %2539 = vrot.lane.b32.xlu0 %v1386, 104
        %v2540 = vpop.permute.xlu0 %2539
        %2541 = vrot.lane.b32.xlu0 %v1389, 104
        %v2542 = vpop.permute.xlu0 %2541
        %2543 = vrot.lane.b32.xlu0 %v1392, 104
        %v2544 = vpop.permute.xlu0 %2543
        %v2545 = vsel %vm1447, %v2514, 0
        %v2547 = vsel %vm1447, %v2516, 0
        %v2549 = vsel %vm1447, %v2518, 0
        %v2551 = vsel %vm1447, %v2520, 0
        %v2553 = vsel %vm1447, %v2522, 0
        %v2555 = vsel %vm1447, %v2524, 0
        %v2557 = vsel %vm1447, %v2526, 0
        %v2559 = vsel %vm1447, %v2528, 0
        %v2561 = vsel %vm1447, %v2530, 0
        %v2563 = vsel %vm1447, %v2532, 0
        %v2565 = vsel %vm1447, %v2534, 0
        %v2567 = vsel %vm1447, %v2536, 0
        %v2569 = vsel %vm1447, %v2538, 0
        %v2571 = vsel %vm1447, %v2540, 0
        %v2573 = vsel %vm1447, %v2542, 0
        %v2575 = vsel %vm1447, %v2544, 0
        %2577 = vmatpush.xpose.msra.mxu0 0.0
        %2578 = vmatpush.xpose.msra.mxu0 0.0
        %2579 = vmatpush.xpose.msra.mxu0 0.0
        %2580 = vmatpush.xpose.msra.mxu0 0.0
        %2581 = vmatpush.xpose.msra.mxu0 0.0
        %2582 = vmatpush.xpose.msra.mxu0 0.0
        %2583 = vmatpush.xpose.msra.mxu0 0.0
        %2584 = vmatpush.xpose.msra.mxu0 0.0
        %2585 = vmatpush.xpose.msra.mxu0 %v2575
        %2586 = vmatpush.xpose.msra.mxu0 %v2573
        %2587 = vmatpush.xpose.msra.mxu0 %v2571
        %2588 = vmatpush.xpose.msra.mxu0 %v2569
        %2589 = vmatpush.xpose.msra.mxu0 %v2567
        %2590 = vmatpush.xpose.msra.mxu0 %v2565
        %2591 = vmatpush.xpose.msra.mxu0 %v2563
        %2592 = vmatpush.xpose.msra.mxu0 %v2561
        %2593 = vmatmul.f32.gmra.mxu0 %v2545
        %v2594 = vpop.f32.mrf.mxu0
        %v2595 = vadd.f32 0.0, %v2594
        %2596 = vmatmul.f32.gmra.mxu0 %v2547
        %v2597 = vpop.f32.mrf.mxu0
        %v2598 = vadd.f32 0.0, %v2597
        %2599 = vmatmul.f32.gmra.mxu0 %v2549
        %v2600 = vpop.f32.mrf.mxu0
        %v2601 = vadd.f32 0.0, %v2600
        %2602 = vmatmul.f32.gmra.mxu0 %v2551
        %v2603 = vpop.f32.mrf.mxu0
        %v2604 = vadd.f32 0.0, %v2603
        %2605 = vmatmul.f32.gmra.mxu0 %v2553
        %v2606 = vpop.f32.mrf.mxu0
        %v2607 = vadd.f32 0.0, %v2606
        %2608 = vmatmul.f32.gmra.mxu0 %v2555
        %v2609 = vpop.f32.mrf.mxu0
        %v2610 = vadd.f32 0.0, %v2609
        %2611 = vmatmul.f32.gmra.mxu0 %v2557
        %v2612 = vpop.f32.mrf.mxu0
        %v2613 = vadd.f32 0.0, %v2612
        %2614 = vmatmul.f32.gmra.mxu0 %v2559
        %v2615 = vpop.f32.mrf.mxu0
        %v2616 = vadd.f32 0.0, %v2615
        %2617 = vdwg.mxu0
        %v2618 = vmul.f32 %v2595, 0.35355338
        %v2619 = vmul.f32 %v2598, 0.35355338
        %v2620 = vmul.f32 %v2601, 0.35355338
        %v2621 = vmul.f32 %v2604, 0.35355338
        %v2622 = vmul.f32 %v2607, 0.35355338
        %v2623 = vmul.f32 %v2610, 0.35355338
        %v2624 = vmul.f32 %v2613, 0.35355338
        %v2625 = vmul.f32 %v2616, 0.35355338
        %v2626 = vadd.f32 %v2618, %v453
        %v2627 = vadd.f32 %v2619, %v454
        %v2628 = vadd.f32 %v2620, %v455
        %v2629 = vadd.f32 %v2621, %v456
        %v2630 = vadd.f32 %v2622, %v457
        %v2631 = vadd.f32 %v2623, %v458
        %v2632 = vadd.f32 %v2624, %v459
        %v2633 = vadd.f32 %v2625, %v460
        %v2634 = vsel %vm700, %v2626, -inf
        %2635 = vmax.xlane.f32.xlu0 %v2634
        %v2636 = vpop.xlane.xlu0 %2635
        %v2637 = vsel %vm700, %v2627, -inf
        %2638 = vmax.xlane.f32.xlu0 %v2637
        %v2639 = vpop.xlane.xlu0 %2638
        %v2640 = vsel %vm700, %v2628, -inf
        %2641 = vmax.xlane.f32.xlu0 %v2640
        %v2642 = vpop.xlane.xlu0 %2641
        %v2643 = vsel %vm700, %v2629, -inf
        %2644 = vmax.xlane.f32.xlu0 %v2643
        %v2645 = vpop.xlane.xlu0 %2644
        %v2646 = vsel %vm700, %v2630, -inf
        %2647 = vmax.xlane.f32.xlu0 %v2646
        %v2648 = vpop.xlane.xlu0 %2647
        %v2649 = vsel %vm700, %v2631, -inf
        %2650 = vmax.xlane.f32.xlu0 %v2649
        %v2651 = vpop.xlane.xlu0 %2650
        %v2652 = vsel %vm700, %v2632, -inf
        %2653 = vmax.xlane.f32.xlu0 %v2652
        %v2654 = vpop.xlane.xlu0 %2653
        %v2655 = vsel %vm700, %v2633, -inf
        %2656 = vmax.xlane.f32.xlu0 %v2655
        %v2657 = vpop.xlane.xlu0 %2656
        %v2658 = vsub.f32 %v2626, %v2636
        %v2659 = vsub.f32 %v2627, %v2639
        %v2660 = vsub.f32 %v2628, %v2642
        %v2661 = vsub.f32 %v2629, %v2645
        %v2662 = vsub.f32 %v2630, %v2648
        %v2663 = vsub.f32 %v2631, %v2651
        %v2664 = vsub.f32 %v2632, %v2654
        %v2665 = vsub.f32 %v2633, %v2657
        %v2666 = vmul.f32 %v2658, 1.442695
        %v2667 = vpow.pop %v2666
        %v2668 = vmul.f32 %v2659, 1.442695
        %v2669 = vpow.pop %v2668
        %v2670 = vmul.f32 %v2660, 1.442695
        %v2671 = vpow.pop %v2670
        %v2672 = vmul.f32 %v2661, 1.442695
        %v2673 = vpow.pop %v2672
        %v2674 = vmul.f32 %v2662, 1.442695
        %v2675 = vpow.pop %v2674
        %v2676 = vmul.f32 %v2663, 1.442695
        %v2677 = vpow.pop %v2676
        %v2678 = vmul.f32 %v2664, 1.442695
        %v2679 = vpow.pop %v2678
        %v2680 = vmul.f32 %v2665, 1.442695
        %v2681 = vpow.pop %v2680
        %v2682 = vsel %vm700, %v2667, 0.0
        %2683 = vadd.xlane.f32.xlu0 %v2682
        %v2684 = vpop.xlane.xlu0 %2683
        %v2685 = vsel %vm700, %v2669, 0.0
        %2686 = vadd.xlane.f32.xlu0 %v2685
        %v2687 = vpop.xlane.xlu0 %2686
        %v2688 = vsel %vm700, %v2671, 0.0
        %2689 = vadd.xlane.f32.xlu0 %v2688
        %v2690 = vpop.xlane.xlu0 %2689
        %v2691 = vsel %vm700, %v2673, 0.0
        %2692 = vadd.xlane.f32.xlu0 %v2691
        %v2693 = vpop.xlane.xlu0 %2692
        %v2694 = vsel %vm700, %v2675, 0.0
        %2695 = vadd.xlane.f32.xlu0 %v2694
        %v2696 = vpop.xlane.xlu0 %2695
        %v2697 = vsel %vm700, %v2677, 0.0
        %2698 = vadd.xlane.f32.xlu0 %v2697
        %v2699 = vpop.xlane.xlu0 %2698
        %v2700 = vsel %vm700, %v2679, 0.0
        %2701 = vadd.xlane.f32.xlu0 %v2700
        %v2702 = vpop.xlane.xlu0 %2701
        %v2703 = vsel %vm700, %v2681, 0.0
        %2704 = vadd.xlane.f32.xlu0 %v2703
        %v2705 = vpop.xlane.xlu0 %2704
        %v2706 = vrcp.pop %v2684
        %v2707 = vrcp.pop %v2687
        %v2708 = vrcp.pop %v2690
        %v2709 = vrcp.pop %v2693
        %v2710 = vrcp.pop %v2696
        %v2711 = vrcp.pop %v2699
        %v2712 = vrcp.pop %v2702
        %v2713 = vrcp.pop %v2705
        %v2714 = vmul.f32 %v2667, %v2706
        %v2715 = vmul.f32 %v2669, %v2707
        %v2716 = vmul.f32 %v2671, %v2708
        %v2717 = vmul.f32 %v2673, %v2709
        %v2718 = vmul.f32 %v2675, %v2710
        %v2719 = vmul.f32 %v2677, %v2711
        %v2720 = vmul.f32 %v2679, %v2712
        %v2721 = vmul.f32 %v2681, %v2713
        %2722 = vrot.lane.b32.xlu0 %v1424, 104
        %v2723 = vpop.permute.xlu0 %2722
        %2724 = vrot.lane.b32.xlu0 %v1427, 104
        %v2725 = vpop.permute.xlu0 %2724
        %2726 = vrot.lane.b32.xlu0 %v1430, 104
        %v2727 = vpop.permute.xlu0 %2726
        %2728 = vrot.lane.b32.xlu0 %v1433, 104
        %v2729 = vpop.permute.xlu0 %2728
        %2730 = vrot.lane.b32.xlu0 %v1436, 104
        %v2731 = vpop.permute.xlu0 %2730
        %2732 = vrot.lane.b32.xlu0 %v1439, 104
        %v2733 = vpop.permute.xlu0 %2732
        %2734 = vrot.lane.b32.xlu0 %v1442, 104
        %v2735 = vpop.permute.xlu0 %2734
        %2736 = vrot.lane.b32.xlu0 %v1445, 104
        %v2737 = vpop.permute.xlu0 %2736
        %v2747 = vsel %vm700, %v2714, 0
        %v2750 = vsel %vm700, %v2715, 0
        %v2753 = vsel %vm700, %v2716, 0
        %v2756 = vsel %vm700, %v2717, 0
        %v2759 = vsel %vm700, %v2718, 0
        %v2762 = vsel %vm700, %v2719, 0
        %v2765 = vsel %vm700, %v2720, 0
        %v2768 = vsel %vm700, %v2721, 0
        %2770 = vmatpush.msra.mxu0 0.0
        %2771 = vmatpush.msra.mxu0 0.0
        %2772 = vmatpush.msra.mxu0 0.0
        %2773 = vmatpush.msra.mxu0 0.0
        %2774 = vmatpush.msra.mxu0 0.0
        %2775 = vmatpush.msra.mxu0 0.0
        %2776 = vmatpush.msra.mxu0 0.0
        %2777 = vmatpush.msra.mxu0 0.0
        %2778 = vmatpush.msra.mxu0 %v2737
        %2779 = vmatpush.msra.mxu0 %v2735
        %2780 = vmatpush.msra.mxu0 %v2733
        %2781 = vmatpush.msra.mxu0 %v2731
        %2782 = vmatpush.msra.mxu0 %v2729
        %2783 = vmatpush.msra.mxu0 %v2727
        %2784 = vmatpush.msra.mxu0 %v2725
        %2785 = vmatpush.msra.mxu0 %v2723
        %2786 = vmatmul.f32.gmra.mxu0 %v2747
        %v2787 = vpop.f32.mrf.mxu0
        %v2788 = vadd.f32 0.0, %v2787
        %2789 = vmatmul.f32.gmra.mxu0 %v2750
        %v2790 = vpop.f32.mrf.mxu0
        %v2791 = vadd.f32 0.0, %v2790
        %2792 = vmatmul.f32.gmra.mxu0 %v2753
        %v2793 = vpop.f32.mrf.mxu0
        %v2794 = vadd.f32 0.0, %v2793
        %2795 = vmatmul.f32.gmra.mxu0 %v2756
        %v2796 = vpop.f32.mrf.mxu0
        %v2797 = vadd.f32 0.0, %v2796
        %2798 = vmatmul.f32.gmra.mxu0 %v2759
        %v2799 = vpop.f32.mrf.mxu0
        %v2800 = vadd.f32 0.0, %v2799
        %2801 = vmatmul.f32.gmra.mxu0 %v2762
        %v2802 = vpop.f32.mrf.mxu0
        %v2803 = vadd.f32 0.0, %v2802
        %2804 = vmatmul.f32.gmra.mxu0 %v2765
        %v2805 = vpop.f32.mrf.mxu0
        %v2806 = vadd.f32 0.0, %v2805
        %2807 = vmatmul.f32.gmra.mxu0 %v2768
        %v2808 = vpop.f32.mrf.mxu0
        %v2809 = vadd.f32 0.0, %v2808
        %2810 = vdwg.mxu0
        %v2812 = vsel %vm1447, %v2788, 0
        %v2815 = vsel %vm1447, %v2791, 0
        %v2818 = vsel %vm1447, %v2794, 0
        %v2821 = vsel %vm1447, %v2797, 0
        %v2824 = vsel %vm1447, %v2800, 0
        %v2827 = vsel %vm1447, %v2803, 0
        %v2830 = vsel %vm1447, %v2806, 0
        %v2833 = vsel %vm1447, %v2809, 0
        %2835 = vmatpush.msra.mxu0 0.0
        %2836 = vmatpush.msra.mxu0 0.0
        %2837 = vmatpush.msra.mxu0 0.0
        %2838 = vmatpush.msra.mxu0 0.0
        %2839 = vmatpush.msra.mxu0 0.0
        %2840 = vmatpush.msra.mxu0 0.0
        %2841 = vmatpush.msra.mxu0 0.0
        %2842 = vmatpush.msra.mxu0 0.0
        %2843 = vmatpush.msra.mxu0 0.0
        %2844 = vmatpush.msra.mxu0 0.0
        %2845 = vmatpush.msra.mxu0 0.0
        %2846 = vmatpush.msra.mxu0 0.0
        %2847 = vmatpush.msra.mxu0 0.0
        %2848 = vmatpush.msra.mxu0 0.0
        %2849 = vmatpush.msra.mxu0 0.0
        %2850 = vmatpush.msra.mxu0 %v468
        %2851 = vmatmul.f32.gmra.mxu0 %v2812
        %v2852 = vpop.f32.mrf.mxu0
        %v2853 = vadd.f32 0.0, %v2852
        %2854 = vmatmul.f32.gmra.mxu0 %v2815
        %v2855 = vpop.f32.mrf.mxu0
        %v2856 = vadd.f32 0.0, %v2855
        %2857 = vmatmul.f32.gmra.mxu0 %v2818
        %v2858 = vpop.f32.mrf.mxu0
        %v2859 = vadd.f32 0.0, %v2858
        %2860 = vmatmul.f32.gmra.mxu0 %v2821
        %v2861 = vpop.f32.mrf.mxu0
        %v2862 = vadd.f32 0.0, %v2861
        %2863 = vmatmul.f32.gmra.mxu0 %v2824
        %v2864 = vpop.f32.mrf.mxu0
        %v2865 = vadd.f32 0.0, %v2864
        %2866 = vmatmul.f32.gmra.mxu0 %v2827
        %v2867 = vpop.f32.mrf.mxu0
        %v2868 = vadd.f32 0.0, %v2867
        %2869 = vmatmul.f32.gmra.mxu0 %v2830
        %v2870 = vpop.f32.mrf.mxu0
        %v2871 = vadd.f32 0.0, %v2870
        %2872 = vmatmul.f32.gmra.mxu0 %v2833
        %v2873 = vpop.f32.mrf.mxu0
        %v2874 = vadd.f32 0.0, %v2873
        %2875 = vdwg.mxu0
        %v2876 = vadd.f32 %v2505, %v2853
        %v2877 = vadd.f32 %v2506, %v2856
        %v2878 = vadd.f32 %v2507, %v2859
        %v2879 = vadd.f32 %v2508, %v2862
        %v2880 = vadd.f32 %v2509, %v2865
        %v2881 = vadd.f32 %v2510, %v2868
        %v2882 = vadd.f32 %v2511, %v2871
        %v2883 = vadd.f32 %v2512, %v2874
        %2884 = vrot.lane.b32.xlu0 %v471, 64
        %v2885 = vpop.permute.xlu0 %2884
        %v2887 = vadd.f32 %v2876, %v2885
        %v2888 = vadd.f32 %v2877, %v2885
        %v2889 = vadd.f32 %v2878, %v2885
        %v2890 = vadd.f32 %v2879, %v2885
        %v2891 = vadd.f32 %v2880, %v2885
        %v2892 = vadd.f32 %v2881, %v2885
        %v2893 = vadd.f32 %v2882, %v2885
        %v2894 = vadd.f32 %v2883, %v2885
        %v2895 = vlaneseq
        %v2896 = vshrl.u32 %v2895, 7
        %v2897 = vadd.s32 %v2896, 8
        %v2898 = vmul.u32 %v2896, 4
        %v2899 = vmul.u32 %v2897, 4
        %v2900 = vlaneseq
        %v2901 = vand.u32 %v2900, 127
        %vm2902 = vcmp.eq.s32.totalorder %v2901, %v2898
        %vm2903 = vcmp.eq.s32.totalorder %v2901, %v2899
        %v2904 = vsel %vm2902, 1, 0
        %v2905 = vsel %vm2903, 1, 0
        %v2906 = vcvt.s32.f32 %v2904
        %v2907 = vcvt.s32.f32 %v2905
        %v2909 = vsel %vm700, %v2906, 0
        %v2912 = vsel %vm700, %v2907, 0
        %2914 = vmatpush.msra.mxu0 0.0
        %2915 = vmatpush.msra.mxu0 0.0
        %2916 = vmatpush.msra.mxu0 0.0
        %2917 = vmatpush.msra.mxu0 0.0
        %2918 = vmatpush.msra.mxu0 0.0
        %2919 = vmatpush.msra.mxu0 0.0
        %2920 = vmatpush.msra.mxu0 0.0
        %2921 = vmatpush.msra.mxu0 0.0
        %2922 = vmatpush.msra.mxu0 %v2894
        %2923 = vmatpush.msra.mxu0 %v2893
        %2924 = vmatpush.msra.mxu0 %v2892
        %2925 = vmatpush.msra.mxu0 %v2891
        %2926 = vmatpush.msra.mxu0 %v2890
        %2927 = vmatpush.msra.mxu0 %v2889
        %2928 = vmatpush.msra.mxu0 %v2888
        %2929 = vmatpush.msra.mxu0 %v2887
        %2930 = vmatmul.f32.gmra.mxu0 %v2909
        %v2931 = vpop.f32.mrf.mxu0
        %v2932 = vadd.f32 0.0, %v2931
        %2933 = vmatmul.f32.gmra.mxu0 %v2912
        %v2934 = vpop.f32.mrf.mxu0
        %v2935 = vadd.f32 0.0, %v2934
        %2936 = vdwg.mxu0
        %v2937 = vadd.s32 %v2898, 1
        %v2938 = vadd.s32 %v2899, 1
        %vm2939 = vcmp.eq.s32.totalorder %v2901, %v2937
        %vm2940 = vcmp.eq.s32.totalorder %v2901, %v2938
        %v2941 = vsel %vm2939, 1, 0
        %v2942 = vsel %vm2940, 1, 0
        %v2943 = vcvt.s32.f32 %v2941
        %v2944 = vcvt.s32.f32 %v2942
        %v2946 = vsel %vm700, %v2943, 0
        %v2949 = vsel %vm700, %v2944, 0
        %2951 = vmatpush.msra.mxu0 0.0
        %2952 = vmatpush.msra.mxu0 0.0
        %2953 = vmatpush.msra.mxu0 0.0
        %2954 = vmatpush.msra.mxu0 0.0
        %2955 = vmatpush.msra.mxu0 0.0
        %2956 = vmatpush.msra.mxu0 0.0
        %2957 = vmatpush.msra.mxu0 0.0
        %2958 = vmatpush.msra.mxu0 0.0
        %2959 = vmatpush.msra.mxu0 %v2894
        %2960 = vmatpush.msra.mxu0 %v2893
        %2961 = vmatpush.msra.mxu0 %v2892
        %2962 = vmatpush.msra.mxu0 %v2891
        %2963 = vmatpush.msra.mxu0 %v2890
        %2964 = vmatpush.msra.mxu0 %v2889
        %2965 = vmatpush.msra.mxu0 %v2888
        %2966 = vmatpush.msra.mxu0 %v2887
        %2967 = vmatmul.f32.gmra.mxu0 %v2946
        %v2968 = vpop.f32.mrf.mxu0
        %v2969 = vadd.f32 0.0, %v2968
        %2970 = vmatmul.f32.gmra.mxu0 %v2949
        %v2971 = vpop.f32.mrf.mxu0
        %v2972 = vadd.f32 0.0, %v2971
        %2973 = vdwg.mxu0
        %v2974 = vadd.s32 %v2898, 2
        %v2975 = vadd.s32 %v2899, 2
        %vm2976 = vcmp.eq.s32.totalorder %v2901, %v2974
        %vm2977 = vcmp.eq.s32.totalorder %v2901, %v2975
        %v2978 = vsel %vm2976, 1, 0
        %v2979 = vsel %vm2977, 1, 0
        %v2980 = vcvt.s32.f32 %v2978
        %v2981 = vcvt.s32.f32 %v2979
        %v2983 = vsel %vm700, %v2980, 0
        %v2986 = vsel %vm700, %v2981, 0
        %2988 = vmatpush.msra.mxu0 0.0
        %2989 = vmatpush.msra.mxu0 0.0
        %2990 = vmatpush.msra.mxu0 0.0
        %2991 = vmatpush.msra.mxu0 0.0
        %2992 = vmatpush.msra.mxu0 0.0
        %2993 = vmatpush.msra.mxu0 0.0
        %2994 = vmatpush.msra.mxu0 0.0
        %2995 = vmatpush.msra.mxu0 0.0
        %2996 = vmatpush.msra.mxu0 %v2894
        %2997 = vmatpush.msra.mxu0 %v2893
        %2998 = vmatpush.msra.mxu0 %v2892
        %2999 = vmatpush.msra.mxu0 %v2891
        %3000 = vmatpush.msra.mxu0 %v2890
        %3001 = vmatpush.msra.mxu0 %v2889
        %3002 = vmatpush.msra.mxu0 %v2888
        %3003 = vmatpush.msra.mxu0 %v2887
        %3004 = vmatmul.f32.gmra.mxu0 %v2983
        %v3005 = vpop.f32.mrf.mxu0
        %v3006 = vadd.f32 0.0, %v3005
        %3007 = vmatmul.f32.gmra.mxu0 %v2986
        %v3008 = vpop.f32.mrf.mxu0
        %v3009 = vadd.f32 0.0, %v3008
        %3010 = vdwg.mxu0
        %v3011 = vadd.s32 %v2898, 3
        %v3012 = vadd.s32 %v2899, 3
        %vm3013 = vcmp.eq.s32.totalorder %v2901, %v3011
        %vm3014 = vcmp.eq.s32.totalorder %v2901, %v3012
        %v3015 = vsel %vm3013, 1, 0
        %v3016 = vsel %vm3014, 1, 0
        %v3017 = vcvt.s32.f32 %v3015
        %v3018 = vcvt.s32.f32 %v3016
        %v3020 = vsel %vm700, %v3017, 0
        %v3023 = vsel %vm700, %v3018, 0
        %3025 = vmatpush.msra.mxu0 0.0
        %3026 = vmatpush.msra.mxu0 0.0
        %3027 = vmatpush.msra.mxu0 0.0
        %3028 = vmatpush.msra.mxu0 0.0
        %3029 = vmatpush.msra.mxu0 0.0
        %3030 = vmatpush.msra.mxu0 0.0
        %3031 = vmatpush.msra.mxu0 0.0
        %3032 = vmatpush.msra.mxu0 0.0
        %3033 = vmatpush.msra.mxu0 %v2894
        %3034 = vmatpush.msra.mxu0 %v2893
        %3035 = vmatpush.msra.mxu0 %v2892
        %3036 = vmatpush.msra.mxu0 %v2891
        %3037 = vmatpush.msra.mxu0 %v2890
        %3038 = vmatpush.msra.mxu0 %v2889
        %3039 = vmatpush.msra.mxu0 %v2888
        %3040 = vmatpush.msra.mxu0 %v2887
        %3041 = vmatmul.f32.gmra.mxu0 %v3020
        %v3042 = vpop.f32.mrf.mxu0
        %v3043 = vadd.f32 0.0, %v3042
        %3044 = vmatmul.f32.gmra.mxu0 %v3023
        %v3045 = vpop.f32.mrf.mxu0
        %v3046 = vadd.f32 0.0, %v3045
        %3047 = vdwg.mxu0
        %3050 = vrot.lane.b32.xlu0 %v2969, 32
        %v3051 = vpop.permute.xlu0 %3050
        %3052 = vrot.lane.b32.xlu0 %v2972, 32
        %v3053 = vpop.permute.xlu0 %3052
        %3058 = vrot.lane.b32.xlu0 %v3006, 64
        %v3059 = vpop.permute.xlu0 %3058
        %3060 = vrot.lane.b32.xlu0 %v3009, 64
        %v3061 = vpop.permute.xlu0 %3060
        %3066 = vrot.lane.b32.xlu0 %v3043, 96
        %v3067 = vpop.permute.xlu0 %3066
        %3068 = vrot.lane.b32.xlu0 %v3046, 96
        %v3069 = vpop.permute.xlu0 %3068
        %v3072 = vsel %vm473, %v2932, %v3051
        %v3073 = vsel %vm473, %v2935, %v3053
        %v3074 = vsel %vm700, %v3072, %v3059
        %v3075 = vsel %vm700, %v3073, %v3061
        %vm3076 = vcmask 785408
        %v3077 = vsel %vm3076, %v3074, %v3067
        %v3078 = vsel %vm3076, %v3075, %v3069
        %3079 = vst [vmem:[%s331] sm:$0xff] %v3077
        %3080 = vst [vmem:[%s331 + $0x8] sm:$0xff] %v3078
        %s3081 = sand.u32 %s201, 1
        %s3082 = scalar_lea.sflag [#allocation3], %s3081
        %s3083 = sand.u32 %s201, 1
        %s3084 = smul.addr %s3083, 16
        %s3085 = scalar_lea.vmem [#allocation2], %s3084
        // Predicated region
        $region49: #{tpu_custom_call.1} parent=47 // pred_check
          %p3086 = pneg %p211
        $region50: #{tpu_custom_call.1} parent=47 // pred_check_branch
          %3088 = sbr.rel (%p3086) target = $region52
        $region51: #{tpu_custom_call.1} parent=47 // pred_region
          %3090 = vsyncadd %s3082, 0
          %s3091 = smul.addr %s21, 2
          %s3092 = smul.addr %s3091, 8
          %s3093 = scalar_lea.hbm %s7, %s3092
          %s3094 = sshll.u32 %s3085, 4
          %s3095 = int_to_ptr.vmem [resolvable:$true] %s3094
          %s3096 = sshll.u32 %s3093, 4
          %s3097 = int_to_ptr.hbm [resolvable:$true] %s3096
          %3102 = dma.vmem_to_hbm [thread:$0]  %s3095, 256, %s3097, %s3082, 128, 128, 8
        $region52: #{tpu_custom_call.1} parent=47 // pred_fallthru
          _
      $region48: #{tpu_custom_call.1} parent=5 // pred_fallthru
        _
      %p3103 = scmp.le.s32.totalorder 2, %s16
      // Predicated region
      $region53: #{tpu_custom_call.1} parent=5 // pred_check
        %p3104 = pneg %p3103
      $region54: #{tpu_custom_call.1} parent=5 // pred_check_branch
        %3106 = sbr.rel (%p3104) target = $region56
      $region55: #{tpu_custom_call.1} parent=5 // pred_region
        %s3107 = ssub.s32 %s16, 2
        // Predicated region
        $region57: #{tpu_custom_call.1} parent=55 // pred_check
          %p3108 = pneg %p217
        $region58: #{tpu_custom_call.1} parent=55 // pred_check_branch
          %3110 = sbr.rel (%p3108) target = $region60
        $region59: #{tpu_custom_call.1} parent=55 // pred_region
          %s3111 = sand.u32 %s202, 1
          %s3112 = scalar_lea.sflag [#allocation3], %s3111
          %s3113 = sand.u32 %s202, 1
          %s3114 = smul.addr %s3113, 16
          %s3115 = scalar_lea.vmem [#allocation2], %s3114
          %3117 = dma.done %s3112, 256
        $region60: #{tpu_custom_call.1} parent=55 // pred_fallthru
          _
      $region56: #{tpu_custom_call.1} parent=5 // pred_fallthru
        _
    $region6: #{tpu_custom_call.1} parent=1 // loop_footer
      %s20 = sadd.s32 1, %s16
    $region7: #{tpu_custom_call.1} parent=1 // loop_footer_branch
      %15 = sbr.rel target = $region3
    $region8: #{tpu_custom_call.1} parent=1 // loop_exit
      _
    %3118 = vsyncpa [#allocation3], 1
    %s3119 = scalar_lea.sflag [#allocation3], 1
    %3120 = vsyncpa %s3119, 1

</llo_original>
